<compile_context>
chip_gen: v7x
topology: tpu7x:2x2x1
jax: 0.10.0
libtpu: 0.0.40
codegen_flags: <defaults>
</compile_context>

<pallas_src>
import functools

import jax
import jax.numpy as jnp
from jax.experimental import pallas as pl
from jax.experimental.pallas import tpu as pltpu

LANE = 128                          # TPU lane width; channel dims padded to this
_VMEM_BUDGET = 40 * 1024 * 1024     # stay well under v7x's 64 MiB per TensorCore


def _round_up(x, m):
    return ((x + m - 1) // m) * m


def _pad_to(a, shape):
    pads = [(0, t - s) for s, t in zip(a.shape, shape)]
    return jnp.pad(a, pads)


def _vmem_estimate(n_pad, tile_m, tile_k, cin, c, cj):
    # Conservative: count 2 buffers even for constant-index (resident) inputs.
    a = 2 * tile_m * tile_k * 2                 # A tiles, double-buffered bf16
    x = 2 * n_pad * cin * 2                     # resident X (bf16)
    w = 2 * (cin * c * 2 + c * 4 + c * cj * 2)  # W, bias, W_jk
    h = 2 * tile_m * c * 2                      # h out, double-buffered bf16
    jk = 2 * 2 * tile_m * cj * 4                # jk carry in + out, fp32
    acc = tile_m * c * 4                        # fp32 accumulator scratch
    return a + x + w + h + jk + acc


def _choose_tiles(n, cin, c, cj):
    """Pick (tile_m, tile_k, n_pad, vmem_limit_bytes) for the fused layer kernel."""
    n128 = _round_up(n, LANE)
    pad_cap = int(n128 * 1.3)       # bound wasted A rows/cols from tile padding
    tile_k = LANE
    for t in (2048, 1024, 512, 256, 128):   # bigger A tiles amortize step overhead
        if _round_up(n, t) <= pad_cap:
            tile_k = t
            break
    n_pad = _round_up(n, tile_k)
    tile_m = n_pad                           # fallback: single row tile (tiny graphs)
    for t in (512, 256, 128):                # keep >= 2 row tiles for megacore split
        if n_pad % t == 0 and n_pad // t >= 2:
            tile_m = t
            break
    # Shrink tiles if the (generous) VMEM estimate exceeds the budget.
    while (_vmem_estimate(n_pad, tile_m, tile_k, cin, c, cj) > _VMEM_BUDGET
           and tile_k > LANE):
        tile_k //= 2
    while (_vmem_estimate(n_pad, tile_m, tile_k, cin, c, cj) > _VMEM_BUDGET
           and tile_m > LANE):
        tile_m //= 2
    est = _vmem_estimate(n_pad, tile_m, tile_k, cin, c, cj)
    vmem_limit = int(min(44 * 1024 * 1024,
                         max(est + 2 * 1024 * 1024, 32 * 1024 * 1024)))
    return tile_m, tile_k, n_pad, vmem_limit


# ------------------------------ Pallas kernel -------------------------------


def _jknet_layer_kernel(a_ref, x_ref, w_ref, b_ref, wjk_ref, jk_in_ref,
                        h_ref, jk_ref, acc_ref, *, apply_relu, tile_k):
    # grid = (row tiles, K tiles); K (reduction over source nodes) is last.
    k = pl.program_id(1)
    row0 = pl.multiple_of(k * tile_k, tile_k)

    # Fused GCN feature transform: recompute this K-slice of XW = X @ W from
    # the VMEM-resident X / W (bf16 x bf16, fp32 accumulate).
    xw_k = jnp.dot(x_ref[pl.ds(row0, tile_k), :], w_ref[...],
                   preferred_element_type=jnp.float32).astype(jnp.bfloat16)

    # bf16 x bf16 -> fp32 MXU accumulation of A_tile @ XW_slice.
    prod = jnp.dot(a_ref[...], xw_k, preferred_element_type=jnp.float32)

    @pl.when(k == 0)
    def _first():
        acc_ref[...] = prod            # direct assign: no zero-init round trip

    @pl.when(k > 0)
    def _rest():
        acc_ref[...] += prod

    @pl.when(k == pl.num_programs(1) - 1)
    def _finalize():
        h = acc_ref[...] + b_ref[...]              # bias broadcasts over rows
        if apply_relu:                             # skipped on the last GCN layer
            h = jnp.maximum(h, 0.0)
        h_bf16 = h.astype(h_ref.dtype)             # bf16 write-back
        h_ref[...] = h_bf16
        # Fused JumpingKnowledge('cat') + final Linear: this layer's slice of
        # the concatenated matmul, accumulated into the in-place JK carry.
        jk_ref[...] = jk_in_ref[...] + jnp.dot(
            h_bf16, wjk_ref[...], preferred_element_type=jnp.float32)


# ----------------------------- kernel wrapper --------------------------------


def gcn_jk_layer(a_bf16, x_bf16, w_bf16, b, wjk_bf16, jk_prev, *, apply_relu,
                 tile_m, tile_k, vmem_limit):
    """h = relu?(A_norm @ (X @ W) + b);  jk += h @ W_jk   (single fused kernel)."""
    n_pad = a_bf16.shape[0]
    cin = x_bf16.shape[1]          # padded layer input width
    c = w_bf16.shape[1]            # padded layer output width
    cj = jk_prev.shape[1]          # padded JK / final-linear width
    b2 = b.reshape(1, c).astype(jnp.float32)
    kernel = functools.partial(_jknet_layer_kernel, apply_relu=apply_relu,
                               tile_k=tile_k)
    cost = pl.CostEstimate(
        flops=(2 * n_pad * n_pad * c                        # A @ XW
               + 2 * (n_pad // tile_m) * n_pad * cin * c    # fused XW recompute
               + 2 * n_pad * c * cj),                       # JK epilogue
        transcendentals=0,
        bytes_accessed=(a_bf16.size * 2 + x_bf16.size * 2 + w_bf16.size * 2
                        + wjk_bf16.size * 2 + 2 * jk_prev.size * 4
                        + n_pad * c * 2 + c * 4))
    h, jk = pl.pallas_call(
        kernel,
        out_shape=(jax.ShapeDtypeStruct((n_pad, c), jnp.bfloat16),
                   jax.ShapeDtypeStruct((n_pad, cj), jnp.float32)),
        grid_spec=pltpu.PrefetchScalarGridSpec(
            num_scalar_prefetch=0,
            grid=(n_pad // tile_m, n_pad // tile_k),
            in_specs=[
                pl.BlockSpec((tile_m, tile_k), lambda i, k: (i, k)),  # A tile
                pl.BlockSpec((n_pad, cin), lambda i, k: (0, 0)),      # X resident
                pl.BlockSpec((cin, c), lambda i, k: (0, 0)),          # W resident
                pl.BlockSpec((1, c), lambda i, k: (0, 0)),            # bias
                pl.BlockSpec((c, cj), lambda i, k: (0, 0)),           # W_jk slice
                pl.BlockSpec((tile_m, cj), lambda i, k: (i, 0)),      # jk carry in
            ],
            out_specs=(
                pl.BlockSpec((tile_m, c), lambda i, k: (i, 0)),       # layer out h
                pl.BlockSpec((tile_m, cj), lambda i, k: (i, 0)),      # jk carry out
            ),
            scratch_shapes=[pltpu.VMEM((tile_m, c), jnp.float32)]),
        compiler_params=pltpu.CompilerParams(
            dimension_semantics=("parallel", "arbitrary"),
            vmem_limit_bytes=vmem_limit),
        cost_estimate=cost,
        input_output_aliases={5: 1},   # JK accumulator updated in place
    )(a_bf16, x_bf16, w_bf16, b2, wjk_bf16, jk_prev)
    return h, jk


# -------------------------------- JAX glue -----------------------------------


def gcn_norm_dense(adj):
    """Dense gcn_norm: D^-1/2 (A + I) D^-1/2 (add_self_loops, fill=1.0)."""
    n = adj.shape[0]
    a_hat = adj + jnp.eye(n, dtype=adj.dtype)
    deg = a_hat.sum(axis=1)
    d_inv_sqrt = jnp.where(deg > 0, 1.0 / jnp.sqrt(deg), 0.0)
    return d_inv_sqrt[:, None] * a_hat * d_inv_sqrt[None, :]


def init_jknet_params(key, in_channels, hidden_channels, out_channels,
                      num_layers):
    """Glorot weights, zero biases (matches GCNConv/Linear reset semantics)."""

    def glorot(k, fan_in, fan_out):
        limit = jnp.sqrt(6.0 / (fan_in + fan_out))
        return jax.random.uniform(k, (fan_in, fan_out), jnp.float32,
                                  -limit, limit)

    dims = [in_channels] + [hidden_channels] * (num_layers - 1) + [out_channels]
    keys = jax.random.split(key, num_layers + 1)
    convs = []
    for i in range(num_layers):
        w = glorot(keys[i], dims[i], dims[i + 1])
        b = jnp.zeros((dims[i + 1],), jnp.float32)
        convs.append((w, b))
    lin_w = glorot(keys[-1], hidden_channels * num_layers, hidden_channels)
    lin_b = jnp.zeros((hidden_channels,), jnp.float32)
    return {"convs": convs, "lin_w": lin_w, "lin_b": lin_b}


@jax.jit
def jknet_forward(x, adj, params):
    """JKNet forward (eval mode: dropout = identity). Returns (N, hidden)."""
    n, in_c = x.shape
    convs = params["convs"]
    lin_w, lin_b = params["lin_w"], params["lin_b"]
    num_layers = len(convs)
    hidden = convs[0][0].shape[1]

    cj = _round_up(hidden, LANE)
    cin_max = max(_round_up(w.shape[0], LANE) for (w, _b) in convs)
    cout_max = max(_round_up(w.shape[1], LANE) for (w, _b) in convs)
    tile_m, tile_k, n_pad, vmem_limit = _choose_tiles(n, cin_max, cout_max, cj)

    # Normalized adjacency once per forward (cached=True semantics), bf16:
    # it is the dominant N^2 HBM stream, re-read every layer; acc stays fp32.
    # TODO(synk): optional int8 (v5e/v6e) / fp8-e4m3 (v7x) quantization of
    # A_norm would halve the dominant stream again; gate on accuracy.
    a_norm = gcn_norm_dense(adj)
    a_bf16 = _pad_to(a_norm, (n_pad, n_pad)).astype(jnp.bfloat16)

    # Fused JK('cat') + Linear accumulator, seeded with the linear bias.
    jk = jnp.zeros((n_pad, cj), jnp.float32) + _pad_to(lin_b, (cj,))[None, :]

    # Per-layer row offsets into lin_w (concat order of the JK inputs).
    offsets, off = [], 0
    for (w, _b) in convs:
        offsets.append(off)
        off += w.shape[1]
    assert off == lin_w.shape[0], "JKNet requires out_channels == hidden"

    h = _pad_to(x, (n_pad, _round_up(in_c, LANE))).astype(jnp.bfloat16)
    for l, (w, b) in enumerate(convs):
        c_in_l, c_out_l = w.shape
        cp_in = _round_up(c_in_l, LANE)
        cp_out = _round_up(c_out_l, LANE)
        w_pad = _pad_to(w, (cp_in, cp_out)).astype(jnp.bfloat16)  # zero pad: no-op math
        b_pad = _pad_to(b, (cp_out,))
        wjk = lin_w[offsets[l]:offsets[l] + c_out_l, :]
        wjk_pad = _pad_to(wjk, (cp_out, cj)).astype(jnp.bfloat16)
        h, jk = gcn_jk_layer(a_bf16, h, w_pad, b_pad, wjk_pad, jk,
                             apply_relu=(l < num_layers - 1),
                             tile_m=tile_m, tile_k=tile_k,
                             vmem_limit=vmem_limit)
    return jk[:n, :hidden]


def jknet_reference(x, adj, params):
    """Pure-JAX fp32 reference (mirrors the PyTorch forward, eval mode)."""
    dot = functools.partial(jnp.dot, precision=jax.lax.Precision.HIGHEST)
    a = gcn_norm_dense(adj)
    convs = params["convs"]
    xs, h = [], x
    for l, (w, b) in enumerate(convs):
        h = dot(a, dot(h, w)) + b
        if l < len(convs) - 1:
            h = jnp.maximum(h, 0.0)
        xs.append(h)
    cat = jnp.concatenate(xs, axis=1)
    return dot(cat, params["lin_w"]) + params["lin_b"]


# ---------------------------------- main -------------------------------------


if __name__ == "__main__":
    N = 640        # number of graph nodes (pads to 768 -> (3, 3) tile grid:
                   # exercises multi-row tiles, K accumulation, and row padding)
    IN_C = 16      # in_channels
    HID = 32       # hidden_channels
    OUT_C = 32     # out_channels (== hidden so JK-'cat' width matches lin)
    LAYERS = 3     # num_layers
    # dropout p is irrelevant at eval time (F.dropout(training=False) == id)

    key = jax.random.PRNGKey(0)
    k_x, k_adj, k_params = jax.random.split(key, 3)

    x = jax.random.normal(k_x, (N, IN_C), jnp.float32)

    # deterministic symmetric binary adjacency, no self loops (gcn_norm adds them)
    a_rand = jax.random.bernoulli(k_adj, p=0.05, shape=(N, N)).astype(jnp.float32)
    adj = jnp.clip(a_rand + a_rand.T, 0.0, 1.0)
    adj = adj * (1.0 - jnp.eye(N, dtype=jnp.float32))

    params = init_jknet_params(k_params, IN_C, HID, OUT_C, LAYERS)

    out = jax.block_until_ready(jknet_forward(x, adj, params))
    ref = jax.block_until_ready(jknet_reference(x, adj, params))

    assert out.shape == (N, HID), out.shape
    assert bool(jnp.all(jnp.isfinite(out)))
    rel_err = float(jnp.linalg.norm(out - ref) /
                    (jnp.linalg.norm(ref) + 1e-8))
    assert rel_err < 5e-2, f"relative error too large: {rel_err}"
    print("KERNEL_OK")
</pallas_src>

<mosaic_0001>
module attributes {stable_mosaic.version = 11 : i64} {
  func.func @_jknet_layer_kernel(%arg0: i32, %arg1: i32, %arg2: memref<256x256xbf16, #tpu.memory_space<vmem>>, %arg3: memref<768x128xbf16, #tpu.memory_space<vmem>>, %arg4: memref<128x128xbf16, #tpu.memory_space<vmem>>, %arg5: memref<1x128xf32, #tpu.memory_space<vmem>>, %arg6: memref<128x128xbf16, #tpu.memory_space<vmem>>, %arg7: memref<256x128xf32, #tpu.memory_space<vmem>>, %arg8: memref<256x128xbf16, #tpu.memory_space<vmem>>, %arg9: memref<256x128xf32, #tpu.memory_space<vmem>>, %arg10: memref<256x128xf32, #tpu.memory_space<vmem>>) attributes {dimension_semantics = [#tpu.dimension_semantics<parallel>, #tpu.dimension_semantics<arbitrary>], iteration_bounds = array<i64: 3, 3>, scalar_prefetch = 0 : i64, scratch_operands = 1 : i64, tpu.core_type = #tpu.core_type<tc>, window_params = [{transform_indices = @transform_0, window_bounds = array<i64: 256, 256>}, {pipeline_mode = #tpu.pipeline_mode<synchronous>, transform_indices = @transform_1, window_bounds = array<i64: 768, 128>}, {pipeline_mode = #tpu.pipeline_mode<synchronous>, transform_indices = @transform_2, window_bounds = array<i64: 128, 128>}, {pipeline_mode = #tpu.pipeline_mode<synchronous>, transform_indices = @transform_3, window_bounds = array<i64: 1, 128>}, {pipeline_mode = #tpu.pipeline_mode<synchronous>, transform_indices = @transform_4, window_bounds = array<i64: 128, 128>}, {transform_indices = @transform_5, window_bounds = array<i64: 256, 128>}, {transform_indices = @transform_6, window_bounds = array<i64: 256, 128>}, {transform_indices = @transform_7, window_bounds = array<i64: 256, 128>}]} {
    %c256_i32 = arith.constant 256 : i32
    %0 = arith.muli %arg1, %c256_i32 : i32
    %1 = tpu.assume_multiple %0, 256 : i32
    %2 = arith.index_cast %1 : i32 to index
    %c0 = arith.constant 0 : index
    %3 = vector.load %arg3[%2, %c0] : memref<768x128xbf16, #tpu.memory_space<vmem>>, vector<256x128xbf16>
    %c0_0 = arith.constant 0 : index
    %c0_1 = arith.constant 0 : index
    %4 = vector.load %arg4[%c0_0, %c0_1] : memref<128x128xbf16, #tpu.memory_space<vmem>>, vector<128x128xbf16>
    %cst = arith.constant dense<0.000000e+00> : vector<256x128xf32>
    %5 = tpu.matmul %3, %4, %cst {dimension_numbers = #tpu.dot_dimension_numbers<[1], [0], [0], [1], [0, 0, 1, 1], [], []>} : vector<256x128xbf16>, vector<128x128xbf16>, vector<256x128xf32> -> vector<256x128xf32>
    %6 = arith.truncf %5 : vector<256x128xf32> to vector<256x128xbf16>
    %c0_2 = arith.constant 0 : index
    %c0_3 = arith.constant 0 : index
    %7 = vector.load %arg2[%c0_2, %c0_3] : memref<256x256xbf16, #tpu.memory_space<vmem>>, vector<256x256xbf16>
    %cst_4 = arith.constant dense<0.000000e+00> : vector<256x128xf32>
    %8 = tpu.matmul %7, %6, %cst_4 {dimension_numbers = #tpu.dot_dimension_numbers<[1], [0], [0], [1], [0, 0, 1, 1], [], []>} : vector<256x256xbf16>, vector<256x128xbf16>, vector<256x128xf32> -> vector<256x128xf32>
    %c0_i32 = arith.constant 0 : i32
    %9 = arith.cmpi eq, %arg1, %c0_i32 : i32
    %10 = arith.extui %9 : i1 to i32
    %c0_i32_5 = arith.constant 0 : i32
    %11 = arith.cmpi ne, %10, %c0_i32_5 : i32
    scf.if %11 {
      %c0_9 = arith.constant 0 : index
      %c0_10 = arith.constant 0 : index
      %18 = vector.load %arg10[%c0_9, %c0_10] : memref<256x128xf32, #tpu.memory_space<vmem>>, vector<256x128xf32>
      tpu.vector_store %arg10[%c0_9, %c0_10], %8 {strides = array<i32>} : memref<256x128xf32, #tpu.memory_space<vmem>>, vector<256x128xf32>,
    } else {
    }
    %c0_i32_6 = arith.constant 0 : i32
    %12 = arith.cmpi sgt, %arg1, %c0_i32_6 : i32
    %13 = arith.extui %12 : i1 to i32
    %c0_i32_7 = arith.constant 0 : i32
    %14 = arith.cmpi ne, %13, %c0_i32_7 : i32
    scf.if %14 {
      %c0_9 = arith.constant 0 : index
      %c0_10 = arith.constant 0 : index
      %18 = vector.load %arg10[%c0_9, %c0_10] : memref<256x128xf32, #tpu.memory_space<vmem>>, vector<256x128xf32>
      %19 = arith.addf %18, %8 : vector<256x128xf32>
      %c0_11 = arith.constant 0 : index
      %c0_12 = arith.constant 0 : index
      %20 = vector.load %arg10[%c0_11, %c0_12] : memref<256x128xf32, #tpu.memory_space<vmem>>, vector<256x128xf32>
      tpu.vector_store %arg10[%c0_11, %c0_12], %19 {strides = array<i32>} : memref<256x128xf32, #tpu.memory_space<vmem>>, vector<256x128xf32>,
    } else {
    }
    %c2_i32 = arith.constant 2 : i32
    %15 = arith.cmpi eq, %arg1, %c2_i32 : i32
    %16 = arith.extui %15 : i1 to i32
    %c0_i32_8 = arith.constant 0 : i32
    %17 = arith.cmpi ne, %16, %c0_i32_8 : i32
    scf.if %17 {
      %c0_9 = arith.constant 0 : index
      %c0_10 = arith.constant 0 : index
      %18 = vector.load %arg10[%c0_9, %c0_10] : memref<256x128xf32, #tpu.memory_space<vmem>>, vector<256x128xf32>
      %c0_11 = arith.constant 0 : index
      %c0_12 = arith.constant 0 : index
      %19 = vector.load %arg5[%c0_11, %c0_12] : memref<1x128xf32, #tpu.memory_space<vmem>>, vector<1x128xf32>
      %20 = vector.broadcast %19 : vector<1x128xf32> to vector<256x128xf32>
      %21 = arith.addf %18, %20 : vector<256x128xf32>
      %cst_13 = arith.constant 0.000000e+00 : f32
      %22 = vector.broadcast %cst_13 : f32 to vector<256x128xf32>
      %23 = arith.maximumf %21, %22 : vector<256x128xf32>
      %24 = arith.truncf %23 : vector<256x128xf32> to vector<256x128xbf16>
      %c0_14 = arith.constant 0 : index
      %c0_15 = arith.constant 0 : index
      %25 = vector.load %arg8[%c0_14, %c0_15] : memref<256x128xbf16, #tpu.memory_space<vmem>>, vector<256x128xbf16>
      tpu.vector_store %arg8[%c0_14, %c0_15], %24 {strides = array<i32>} : memref<256x128xbf16, #tpu.memory_space<vmem>>, vector<256x128xbf16>,
      %c0_16 = arith.constant 0 : index
      %c0_17 = arith.constant 0 : index
      %26 = vector.load %arg7[%c0_16, %c0_17] : memref<256x128xf32, #tpu.memory_space<vmem>>, vector<256x128xf32>
      %c0_18 = arith.constant 0 : index
      %c0_19 = arith.constant 0 : index
      %27 = vector.load %arg6[%c0_18, %c0_19] : memref<128x128xbf16, #tpu.memory_space<vmem>>, vector<128x128xbf16>
      %cst_20 = arith.constant dense<0.000000e+00> : vector<256x128xf32>
      %28 = tpu.matmul %24, %27, %cst_20 {dimension_numbers = #tpu.dot_dimension_numbers<[1], [0], [0], [1], [0, 0, 1, 1], [], []>} : vector<256x128xbf16>, vector<128x128xbf16>, vector<256x128xf32> -> vector<256x128xf32>
      %29 = arith.addf %26, %28 : vector<256x128xf32>
      %c0_21 = arith.constant 0 : index
      %c0_22 = arith.constant 0 : index
      %30 = vector.load %arg9[%c0_21, %c0_22] : memref<256x128xf32, #tpu.memory_space<vmem>>, vector<256x128xf32>
      tpu.vector_store %arg9[%c0_21, %c0_22], %29 {strides = array<i32>} : memref<256x128xf32, #tpu.memory_space<vmem>>, vector<256x128xf32>,
    } else {
    }
    return
  }
  func.func @transform_0(%arg0: i32, %arg1: i32) -> (i32, i32) {
    %c0_i32 = arith.constant 0 : i32
    return %arg0, %arg1 : i32, i32
  }
  func.func @transform_1(%arg0: i32, %arg1: i32) -> (i32, i32) {
    %c0_i32 = arith.constant 0 : i32
    %c0_i32_0 = arith.constant 0 : i32
    %c0_i32_1 = arith.constant 0 : i32
    return %c0_i32, %c0_i32_0 : i32, i32
  }
  func.func @transform_2(%arg0: i32, %arg1: i32) -> (i32, i32) {
    %c0_i32 = arith.constant 0 : i32
    %c0_i32_0 = arith.constant 0 : i32
    %c0_i32_1 = arith.constant 0 : i32
    return %c0_i32, %c0_i32_0 : i32, i32
  }
  func.func @transform_3(%arg0: i32, %arg1: i32) -> (i32, i32) {
    %c0_i32 = arith.constant 0 : i32
    %c0_i32_0 = arith.constant 0 : i32
    %c0_i32_1 = arith.constant 0 : i32
    return %c0_i32, %c0_i32_0 : i32, i32
  }
  func.func @transform_4(%arg0: i32, %arg1: i32) -> (i32, i32) {
    %c0_i32 = arith.constant 0 : i32
    %c0_i32_0 = arith.constant 0 : i32
    %c0_i32_1 = arith.constant 0 : i32
    return %c0_i32, %c0_i32_0 : i32, i32
  }
  func.func @transform_5(%arg0: i32, %arg1: i32) -> (i32, i32) {
    %c0_i32 = arith.constant 0 : i32
    %c0_i32_0 = arith.constant 0 : i32
    return %arg0, %c0_i32 : i32, i32
  }
  func.func @transform_6(%arg0: i32, %arg1: i32) -> (i32, i32) {
    %c0_i32 = arith.constant 0 : i32
    %c0_i32_0 = arith.constant 0 : i32
    return %arg0, %c0_i32 : i32, i32
  }
  func.func @transform_7(%arg0: i32, %arg1: i32) -> (i32, i32) {
    %c0_i32 = arith.constant 0 : i32
    %c0_i32_0 = arith.constant 0 : i32
    return %arg0, %c0_i32 : i32, i32
  }
}

module attributes {stable_mosaic.version = 11 : i64} {
  func.func @_jknet_layer_kernel(%arg0: i32, %arg1: i32, %arg2: memref<256x256xbf16, #tpu.memory_space<vmem>>, %arg3: memref<768x128xbf16, #tpu.memory_space<vmem>>, %arg4: memref<128x128xbf16, #tpu.memory_space<vmem>>, %arg5: memref<1x128xf32, #tpu.memory_space<vmem>>, %arg6: memref<128x128xbf16, #tpu.memory_space<vmem>>, %arg7: memref<256x128xf32, #tpu.memory_space<vmem>>, %arg8: memref<256x128xbf16, #tpu.memory_space<vmem>>, %arg9: memref<256x128xf32, #tpu.memory_space<vmem>>, %arg10: memref<256x128xf32, #tpu.memory_space<vmem>>) attributes {dimension_semantics = [#tpu.dimension_semantics<parallel>, #tpu.dimension_semantics<arbitrary>], iteration_bounds = array<i64: 3, 3>, scalar_prefetch = 0 : i64, scratch_operands = 1 : i64, tpu.core_type = #tpu.core_type<tc>, window_params = [{transform_indices = @transform_0, window_bounds = array<i64: 256, 256>}, {pipeline_mode = #tpu.pipeline_mode<synchronous>, transform_indices = @transform_1, window_bounds = array<i64: 768, 128>}, {pipeline_mode = #tpu.pipeline_mode<synchronous>, transform_indices = @transform_2, window_bounds = array<i64: 128, 128>}, {pipeline_mode = #tpu.pipeline_mode<synchronous>, transform_indices = @transform_3, window_bounds = array<i64: 1, 128>}, {pipeline_mode = #tpu.pipeline_mode<synchronous>, transform_indices = @transform_4, window_bounds = array<i64: 128, 128>}, {transform_indices = @transform_5, window_bounds = array<i64: 256, 128>}, {transform_indices = @transform_6, window_bounds = array<i64: 256, 128>}, {transform_indices = @transform_7, window_bounds = array<i64: 256, 128>}]} {
    %c256_i32 = arith.constant 256 : i32
    %0 = arith.muli %arg1, %c256_i32 : i32
    %1 = tpu.assume_multiple %0, 256 : i32
    %2 = arith.index_cast %1 : i32 to index
    %c0 = arith.constant 0 : index
    %3 = vector.load %arg3[%2, %c0] : memref<768x128xbf16, #tpu.memory_space<vmem>>, vector<256x128xbf16>
    %c0_0 = arith.constant 0 : index
    %c0_1 = arith.constant 0 : index
    %4 = vector.load %arg4[%c0_0, %c0_1] : memref<128x128xbf16, #tpu.memory_space<vmem>>, vector<128x128xbf16>
    %cst = arith.constant dense<0.000000e+00> : vector<256x128xf32>
    %5 = tpu.matmul %3, %4, %cst {dimension_numbers = #tpu.dot_dimension_numbers<[1], [0], [0], [1], [0, 0, 1, 1], [], []>} : vector<256x128xbf16>, vector<128x128xbf16>, vector<256x128xf32> -> vector<256x128xf32>
    %6 = arith.truncf %5 : vector<256x128xf32> to vector<256x128xbf16>
    %c0_2 = arith.constant 0 : index
    %c0_3 = arith.constant 0 : index
    %7 = vector.load %arg2[%c0_2, %c0_3] : memref<256x256xbf16, #tpu.memory_space<vmem>>, vector<256x256xbf16>
    %cst_4 = arith.constant dense<0.000000e+00> : vector<256x128xf32>
    %8 = tpu.matmul %7, %6, %cst_4 {dimension_numbers = #tpu.dot_dimension_numbers<[1], [0], [0], [1], [0, 0, 1, 1], [], []>} : vector<256x256xbf16>, vector<256x128xbf16>, vector<256x128xf32> -> vector<256x128xf32>
    %c0_i32 = arith.constant 0 : i32
    %9 = arith.cmpi eq, %arg1, %c0_i32 : i32
    %10 = arith.extui %9 : i1 to i32
    %c0_i32_5 = arith.constant 0 : i32
    %11 = arith.cmpi ne, %10, %c0_i32_5 : i32
    scf.if %11 {
      %c0_9 = arith.constant 0 : index
      %c0_10 = arith.constant 0 : index
      %18 = vector.load %arg10[%c0_9, %c0_10] : memref<256x128xf32, #tpu.memory_space<vmem>>, vector<256x128xf32>
      tpu.vector_store %arg10[%c0_9, %c0_10], %8 {strides = array<i32>} : memref<256x128xf32, #tpu.memory_space<vmem>>, vector<256x128xf32>,
    } else {
    }
    %c0_i32_6 = arith.constant 0 : i32
    %12 = arith.cmpi sgt, %arg1, %c0_i32_6 : i32
    %13 = arith.extui %12 : i1 to i32
    %c0_i32_7 = arith.constant 0 : i32
    %14 = arith.cmpi ne, %13, %c0_i32_7 : i32
    scf.if %14 {
      %c0_9 = arith.constant 0 : index
      %c0_10 = arith.constant 0 : index
      %18 = vector.load %arg10[%c0_9, %c0_10] : memref<256x128xf32, #tpu.memory_space<vmem>>, vector<256x128xf32>
      %19 = arith.addf %18, %8 : vector<256x128xf32>
      %c0_11 = arith.constant 0 : index
      %c0_12 = arith.constant 0 : index
      %20 = vector.load %arg10[%c0_11, %c0_12] : memref<256x128xf32, #tpu.memory_space<vmem>>, vector<256x128xf32>
      tpu.vector_store %arg10[%c0_11, %c0_12], %19 {strides = array<i32>} : memref<256x128xf32, #tpu.memory_space<vmem>>, vector<256x128xf32>,
    } else {
    }
    %c2_i32 = arith.constant 2 : i32
    %15 = arith.cmpi eq, %arg1, %c2_i32 : i32
    %16 = arith.extui %15 : i1 to i32
    %c0_i32_8 = arith.constant 0 : i32
    %17 = arith.cmpi ne, %16, %c0_i32_8 : i32
    scf.if %17 {
      %c0_9 = arith.constant 0 : index
      %c0_10 = arith.constant 0 : index
      %18 = vector.load %arg10[%c0_9, %c0_10] : memref<256x128xf32, #tpu.memory_space<vmem>>, vector<256x128xf32>
      %c0_11 = arith.constant 0 : index
      %c0_12 = arith.constant 0 : index
      %19 = vector.load %arg5[%c0_11, %c0_12] : memref<1x128xf32, #tpu.memory_space<vmem>>, vector<1x128xf32>
      %20 = vector.broadcast %19 : vector<1x128xf32> to vector<256x128xf32>
      %21 = arith.addf %18, %20 : vector<256x128xf32>
      %22 = arith.truncf %21 : vector<256x128xf32> to vector<256x128xbf16>
      %c0_13 = arith.constant 0 : index
      %c0_14 = arith.constant 0 : index
      %23 = vector.load %arg8[%c0_13, %c0_14] : memref<256x128xbf16, #tpu.memory_space<vmem>>, vector<256x128xbf16>
      tpu.vector_store %arg8[%c0_13, %c0_14], %22 {strides = array<i32>} : memref<256x128xbf16, #tpu.memory_space<vmem>>, vector<256x128xbf16>,
      %c0_15 = arith.constant 0 : index
      %c0_16 = arith.constant 0 : index
      %24 = vector.load %arg7[%c0_15, %c0_16] : memref<256x128xf32, #tpu.memory_space<vmem>>, vector<256x128xf32>
      %c0_17 = arith.constant 0 : index
      %c0_18 = arith.constant 0 : index
      %25 = vector.load %arg6[%c0_17, %c0_18] : memref<128x128xbf16, #tpu.memory_space<vmem>>, vector<128x128xbf16>
      %cst_19 = arith.constant dense<0.000000e+00> : vector<256x128xf32>
      %26 = tpu.matmul %22, %25, %cst_19 {dimension_numbers = #tpu.dot_dimension_numbers<[1], [0], [0], [1], [0, 0, 1, 1], [], []>} : vector<256x128xbf16>, vector<128x128xbf16>, vector<256x128xf32> -> vector<256x128xf32>
      %27 = arith.addf %24, %26 : vector<256x128xf32>
      %c0_20 = arith.constant 0 : index
      %c0_21 = arith.constant 0 : index
      %28 = vector.load %arg9[%c0_20, %c0_21] : memref<256x128xf32, #tpu.memory_space<vmem>>, vector<256x128xf32>
      tpu.vector_store %arg9[%c0_20, %c0_21], %27 {strides = array<i32>} : memref<256x128xf32, #tpu.memory_space<vmem>>, vector<256x128xf32>,
    } else {
    }
    return
  }
  func.func @transform_0(%arg0: i32, %arg1: i32) -> (i32, i32) {
    %c0_i32 = arith.constant 0 : i32
    return %arg0, %arg1 : i32, i32
  }
  func.func @transform_1(%arg0: i32, %arg1: i32) -> (i32, i32) {
    %c0_i32 = arith.constant 0 : i32
    %c0_i32_0 = arith.constant 0 : i32
    %c0_i32_1 = arith.constant 0 : i32
    return %c0_i32, %c0_i32_0 : i32, i32
  }
  func.func @transform_2(%arg0: i32, %arg1: i32) -> (i32, i32) {
    %c0_i32 = arith.constant 0 : i32
    %c0_i32_0 = arith.constant 0 : i32
    %c0_i32_1 = arith.constant 0 : i32
    return %c0_i32, %c0_i32_0 : i32, i32
  }
  func.func @transform_3(%arg0: i32, %arg1: i32) -> (i32, i32) {
    %c0_i32 = arith.constant 0 : i32
    %c0_i32_0 = arith.constant 0 : i32
    %c0_i32_1 = arith.constant 0 : i32
    return %c0_i32, %c0_i32_0 : i32, i32
  }
  func.func @transform_4(%arg0: i32, %arg1: i32) -> (i32, i32) {
    %c0_i32 = arith.constant 0 : i32
    %c0_i32_0 = arith.constant 0 : i32
    %c0_i32_1 = arith.constant 0 : i32
    return %c0_i32, %c0_i32_0 : i32, i32
  }
  func.func @transform_5(%arg0: i32, %arg1: i32) -> (i32, i32) {
    %c0_i32 = arith.constant 0 : i32
    %c0_i32_0 = arith.constant 0 : i32
    return %arg0, %c0_i32 : i32, i32
  }
  func.func @transform_6(%arg0: i32, %arg1: i32) -> (i32, i32) {
    %c0_i32 = arith.constant 0 : i32
    %c0_i32_0 = arith.constant 0 : i32
    return %arg0, %c0_i32 : i32, i32
  }
  func.func @transform_7(%arg0: i32, %arg1: i32) -> (i32, i32) {
    %c0_i32 = arith.constant 0 : i32
    %c0_i32_0 = arith.constant 0 : i32
    return %arg0, %c0_i32 : i32, i32
  }
}

</mosaic_0001>

<llo_original>
// kernel: jknet_forward.5
$region0: #{jknet_forward.5}
  #allocation0 [shape = 'u32[]', space=smem, size = 0x4, offset = 0x4, fixed_abs, tag = 'smem constant byte address 0x4 - core index']
  #allocation1 [shape = 'u32[144,128]{1,0:T(1,128)}', space=vmem, size = 0x12000, scoped, tag = 'internal scratch']
  #allocation2 [shape = 'f32[256,128]{1,0:T(8,128)}', space=vmem, size = 0x20000, scoped, tag = 'scratch operand']
  %s0 = inlined_call_operand.vmem [shape: bf16[768,768], index: 0, kind: input, shape index: {}]
  %s1 = inlined_call_operand.vmem [shape: bf16[768,128], index: 1, kind: input, shape index: {}]
  %s2 = inlined_call_operand.vmem [shape: bf16[128,128], index: 2, kind: input, shape index: {}]
  %s3 = inlined_call_operand.vmem [shape: f32[1,128], index: 3, kind: input, shape index: {}]
  %s4 = inlined_call_operand.vmem [shape: bf16[128,128], index: 4, kind: input, shape index: {}]
  %s5 = inlined_call_operand.vmem [shape: f32[768,128], index: 5, kind: input, shape index: {}, may-alias: {5,7}]
  %s6 = inlined_call_operand.hbm [shape: bf16[768,128], index: 6, kind: output, shape index: {0}]
  %s7 = inlined_call_operand.vmem [shape: f32[768,128], index: 7, kind: output, shape index: {1}, may-alias: {5,7}]
  %8 = xla_tuple %s6, %s7
  %s9 = sld [smem:[#allocation0]]
  $region115: #{jknet_forward.5} parent=0
    _
  %s11 = ssub.s32 1, %s9
  %s12 = scalar_select 0, %s11, %s9
  $region1: #{jknet_forward.5} parent=0
    #allocation3 [shape = 'u8[262144]{0}', space=vmem, size = 0x40000, scoped, tag = 'input window, operand 0']
    #allocation4 [shape = 'u8[131072]{0}', space=vmem, size = 0x20000, scoped, tag = 'output window, operand 0']
    #allocation5 [shape = 's32[2]{0}', space=sflag, size = 0x8, scoped, tag = 'scoped memory for jknet_forward.5']
    %13 = vsyncpa [#allocation5], 0
    %s14 = scalar_lea.sflag [#allocation5], 1
    %15 = vsyncpa %s14, 0
    loop: start=0, step=1, limit=11
    $region2: #{jknet_forward.5} parent=1 // loop_pre_header
      _
    $region3: #{jknet_forward.5} parent=1 // loop_header
      %s17 = sphi 0, %s21
      %p18 = scmp.ge.s32.totalorder %s17, 11
      %s24 = sphi 0, %s36
      %s25 = sphi 0, %s32
      %s26 = sphi 0, %s24
      %s27 = sphi 0, %s25
      %s28 = sphi 0, %s26
      %s29 = sphi 0, %s27
      %s41 = sphi 0, %s43
      %s44 = sphi 0, %s41
      %s45 = sphi 0, %s44
      %s61 = sphi 0, %s45
      %s65 = sphi 0, %s65
      %s67 = sphi 0, %s65
      %s68 = sphi 0, %s67
      %s82 = sphi 0, %s68
      %s86 = sphi 0, %s86
      %s88 = sphi 0, %s86
      %s89 = sphi 0, %s88
      %s103 = sphi 0, %s89
      %s107 = sphi 0, %s107
      %s109 = sphi 0, %s107
      %s110 = sphi 0, %s109
      %s124 = sphi 0, %s110
      %s128 = sphi 0, %s128
      %s130 = sphi 0, %s128
      %s131 = sphi 0, %s130
      %s145 = sphi 0, %s131
      %s151 = sphi 0, %s153
      %s154 = sphi 0, %s151
      %s155 = sphi 0, %s154
      %s171 = sphi 0, %s155
      %s177 = sphi 0, %s179
      %s180 = sphi 0, %s177
      %s181 = sphi 0, %s180
      %s197 = sphi 0, %s181
      %s203 = sphi 0, %s205
      %s206 = sphi 0, %s203
      %s207 = sphi 0, %s206
      %s223 = sphi 0, %s207
    $region4: #{jknet_forward.5} parent=1 // loop_header_branch
      %20 = sbr.rel (%p18) target = $region8
    $region5: #{jknet_forward.5} parent=1 // loop_body
      %s22 = ssub.s32 %s17, 1
      %s23 = ssub.s32 %s17, 2
      %s30 = sadd.s32 1, %s25
      %p31 = scmp.ge.s32.totalorder %s30, 3
      %s32 = scalar_select %p31, 0, %s30
      %s33 = sadd.s32 1, %s24
      %s34 = scalar_select %p31, %s33, %s24
      %p35 = scmp.ge.s32.totalorder %s34, 3
      %s36 = scalar_select %p35, 0, %s34
      %s37 = ssub.s32 %s24, %s36
      %s38 = ssub.s32 %s25, %s32
      %s39 = sor.u32 %s37, %s38
      %p40 = scmp.eq.s32.totalorder %s39, 0
      %s42 = sadd.s32 %s41, 1
      %s43 = scalar_select %p40, %s41, %s42
      %p46 = pneg %p40
      %p47 = scmp.eq.s32.totalorder %s17, 8
      %p48 = por %p46, %p47
      %p49 = scmp.ne.s32.totalorder %s41, %s44
      %p50 = scmp.eq.s32.totalorder %s17, 0
      %p51 = por %p49, %p50
      %p52 = scmp.ne.s32.totalorder %s41, %s44
      %p53 = scmp.eq.s32.totalorder %s22, 8
      %p54 = por %p52, %p53
      %p55 = scmp.ne.s32.totalorder %s44, %s45
      %p56 = scmp.eq.s32.totalorder %s22, 0
      %p57 = por %p55, %p56
      %p58 = scmp.ne.s32.totalorder %s44, %s45
      %p59 = scmp.eq.s32.totalorder %s23, 8
      %p60 = por %p58, %p59
      %p62 = scmp.ne.s32.totalorder %s45, %s61
      %p63 = scmp.eq.s32.totalorder %s23, 0
      %p64 = por %p62, %p63
      %s66 = sadd.s32 %s65, 1
      %p69 = scmp.eq.s32.totalorder %s17, 8
      %p70 = scmp.ne.s32.totalorder %s65, %s67
      %p71 = scmp.eq.s32.totalorder %s17, 0
      %p72 = por %p70, %p71
      %p73 = scmp.ne.s32.totalorder %s65, %s67
      %p74 = scmp.eq.s32.totalorder %s22, 8
      %p75 = por %p73, %p74
      %p76 = scmp.ne.s32.totalorder %s67, %s68
      %p77 = scmp.eq.s32.totalorder %s22, 0
      %p78 = por %p76, %p77
      %p79 = scmp.ne.s32.totalorder %s67, %s68
      %p80 = scmp.eq.s32.totalorder %s23, 8
      %p81 = por %p79, %p80
      %p83 = scmp.ne.s32.totalorder %s68, %s82
      %p84 = scmp.eq.s32.totalorder %s23, 0
      %p85 = por %p83, %p84
      %s87 = sadd.s32 %s86, 1
      %p90 = scmp.eq.s32.totalorder %s17, 8
      %p91 = scmp.ne.s32.totalorder %s86, %s88
      %p92 = scmp.eq.s32.totalorder %s17, 0
      %p93 = por %p91, %p92
      %p94 = scmp.ne.s32.totalorder %s86, %s88
      %p95 = scmp.eq.s32.totalorder %s22, 8
      %p96 = por %p94, %p95
      %p97 = scmp.ne.s32.totalorder %s88, %s89
      %p98 = scmp.eq.s32.totalorder %s22, 0
      %p99 = por %p97, %p98
      %p100 = scmp.ne.s32.totalorder %s88, %s89
      %p101 = scmp.eq.s32.totalorder %s23, 8
      %p102 = por %p100, %p101
      %p104 = scmp.ne.s32.totalorder %s89, %s103
      %p105 = scmp.eq.s32.totalorder %s23, 0
      %p106 = por %p104, %p105
      %s108 = sadd.s32 %s107, 1
      %p111 = scmp.eq.s32.totalorder %s17, 8
      %p112 = scmp.ne.s32.totalorder %s107, %s109
      %p113 = scmp.eq.s32.totalorder %s17, 0
      %p114 = por %p112, %p113
      %p115 = scmp.ne.s32.totalorder %s107, %s109
      %p116 = scmp.eq.s32.totalorder %s22, 8
      %p117 = por %p115, %p116
      %p118 = scmp.ne.s32.totalorder %s109, %s110
      %p119 = scmp.eq.s32.totalorder %s22, 0
      %p120 = por %p118, %p119
      %p121 = scmp.ne.s32.totalorder %s109, %s110
      %p122 = scmp.eq.s32.totalorder %s23, 8
      %p123 = por %p121, %p122
      %p125 = scmp.ne.s32.totalorder %s110, %s124
      %p126 = scmp.eq.s32.totalorder %s23, 0
      %p127 = por %p125, %p126
      %s129 = sadd.s32 %s128, 1
      %p132 = scmp.eq.s32.totalorder %s17, 8
      %p133 = scmp.ne.s32.totalorder %s128, %s130
      %p134 = scmp.eq.s32.totalorder %s17, 0
      %p135 = por %p133, %p134
      %p136 = scmp.ne.s32.totalorder %s128, %s130
      %p137 = scmp.eq.s32.totalorder %s22, 8
      %p138 = por %p136, %p137
      %p139 = scmp.ne.s32.totalorder %s130, %s131
      %p140 = scmp.eq.s32.totalorder %s22, 0
      %p141 = por %p139, %p140
      %p142 = scmp.ne.s32.totalorder %s130, %s131
      %p143 = scmp.eq.s32.totalorder %s23, 8
      %p144 = por %p142, %p143
      %p146 = scmp.ne.s32.totalorder %s131, %s145
      %p147 = scmp.eq.s32.totalorder %s23, 0
      %p148 = por %p146, %p147
      %s149 = ssub.s32 %s24, %s36
      %p150 = scmp.eq.s32.totalorder %s149, 0
      %s152 = sadd.s32 %s151, 1
      %s153 = scalar_select %p150, %s151, %s152
      %p156 = pneg %p150
      %p157 = scmp.eq.s32.totalorder %s17, 8
      %p158 = por %p156, %p157
      %p159 = scmp.ne.s32.totalorder %s151, %s154
      %p160 = scmp.eq.s32.totalorder %s17, 0
      %p161 = por %p159, %p160
      %p162 = scmp.ne.s32.totalorder %s151, %s154
      %p163 = scmp.eq.s32.totalorder %s22, 8
      %p164 = por %p162, %p163
      %p165 = scmp.ne.s32.totalorder %s154, %s155
      %p166 = scmp.eq.s32.totalorder %s22, 0
      %p167 = por %p165, %p166
      %p168 = scmp.ne.s32.totalorder %s154, %s155
      %p169 = scmp.eq.s32.totalorder %s23, 8
      %p170 = por %p168, %p169
      %p172 = scmp.ne.s32.totalorder %s155, %s171
      %p173 = scmp.eq.s32.totalorder %s23, 0
      %p174 = por %p172, %p173
      %s175 = ssub.s32 %s24, %s36
      %p176 = scmp.eq.s32.totalorder %s175, 0
      %s178 = sadd.s32 %s177, 1
      %s179 = scalar_select %p176, %s177, %s178
      %p182 = pneg %p176
      %p183 = scmp.eq.s32.totalorder %s17, 8
      %p184 = por %p182, %p183
      %p185 = scmp.ne.s32.totalorder %s177, %s180
      %p186 = scmp.eq.s32.totalorder %s17, 0
      %p187 = por %p185, %p186
      %p188 = scmp.ne.s32.totalorder %s177, %s180
      %p189 = scmp.eq.s32.totalorder %s22, 8
      %p190 = por %p188, %p189
      %p191 = scmp.ne.s32.totalorder %s180, %s181
      %p192 = scmp.eq.s32.totalorder %s22, 0
      %p193 = por %p191, %p192
      %p194 = scmp.ne.s32.totalorder %s180, %s181
      %p195 = scmp.eq.s32.totalorder %s23, 8
      %p196 = por %p194, %p195
      %p198 = scmp.ne.s32.totalorder %s181, %s197
      %p199 = scmp.eq.s32.totalorder %s23, 0
      %p200 = por %p198, %p199
      %s201 = ssub.s32 %s24, %s36
      %p202 = scmp.eq.s32.totalorder %s201, 0
      %s204 = sadd.s32 %s203, 1
      %s205 = scalar_select %p202, %s203, %s204
      %p208 = pneg %p202
      %p209 = scmp.eq.s32.totalorder %s17, 8
      %p210 = por %p208, %p209
      %p211 = scmp.ne.s32.totalorder %s203, %s206
      %p212 = scmp.eq.s32.totalorder %s17, 0
      %p213 = por %p211, %p212
      %p214 = scmp.ne.s32.totalorder %s203, %s206
      %p215 = scmp.eq.s32.totalorder %s22, 8
      %p216 = por %p214, %p215
      %p217 = scmp.ne.s32.totalorder %s206, %s207
      %p218 = scmp.eq.s32.totalorder %s22, 0
      %p219 = por %p217, %p218
      %p220 = scmp.ne.s32.totalorder %s206, %s207
      %p221 = scmp.eq.s32.totalorder %s23, 8
      %p222 = por %p220, %p221
      %p224 = scmp.ne.s32.totalorder %s207, %s223
      %p225 = scmp.eq.s32.totalorder %s23, 0
      %p226 = por %p224, %p225
      %p227 = scmp.le.s32.totalorder 1, %s17
      %p228 = scmp.lt.s32.totalorder %s17, 10
      %p229 = pnand %p227, %p228
      %p230 = pneg %p229
      // Predicated region
      $region9: #{jknet_forward.5} parent=5 // pred_check
        _
      $region10: #{jknet_forward.5} parent=5 // pred_check_branch
        %232 = sbr.rel (%p229) target = $region12
      $region11: #{jknet_forward.5} parent=5 // pred_region
        %s233 = ssub.s32 %s17, 1
        // Predicated region
        $region13: #{jknet_forward.5} parent=11 // pred_check
          %p234 = pneg %p78
        $region14: #{jknet_forward.5} parent=11 // pred_check_branch
          %236 = sbr.rel (%p234) target = $region16
        $region15: #{jknet_forward.5} parent=11 // pred_region
          _
        $region16: #{jknet_forward.5} parent=11 // pred_fallthru
          _
        // Predicated region
        $region17: #{jknet_forward.5} parent=11 // pred_check
          %p237 = pneg %p99
        $region18: #{jknet_forward.5} parent=11 // pred_check_branch
          %239 = sbr.rel (%p237) target = $region20
        $region19: #{jknet_forward.5} parent=11 // pred_region
          _
        $region20: #{jknet_forward.5} parent=11 // pred_fallthru
          _
        // Predicated region
        $region21: #{jknet_forward.5} parent=11 // pred_check
          %p240 = pneg %p120
        $region22: #{jknet_forward.5} parent=11 // pred_check_branch
          %242 = sbr.rel (%p240) target = $region24
        $region23: #{jknet_forward.5} parent=11 // pred_region
          _
        $region24: #{jknet_forward.5} parent=11 // pred_fallthru
          _
        // Predicated region
        $region25: #{jknet_forward.5} parent=11 // pred_check
          %p243 = pneg %p141
        $region26: #{jknet_forward.5} parent=11 // pred_check_branch
          %245 = sbr.rel (%p243) target = $region28
        $region27: #{jknet_forward.5} parent=11 // pred_region
          _
        $region28: #{jknet_forward.5} parent=11 // pred_fallthru
          _
      $region12: #{jknet_forward.5} parent=5 // pred_fallthru
        _
      %p246 = scmp.lt.s32.totalorder %s17, 9
      // Predicated region
      $region29: #{jknet_forward.5} parent=5 // pred_check
        %p247 = pneg %p246
      $region30: #{jknet_forward.5} parent=5 // pred_check_branch
        %249 = sbr.rel (%p247) target = $region32
      $region31: #{jknet_forward.5} parent=5 // pred_region
        // Predicated region
        $region33: #{jknet_forward.5} parent=31 // pred_check
          %p250 = pneg %p51
        $region34: #{jknet_forward.5} parent=31 // pred_check_branch
          %252 = sbr.rel (%p250) target = $region36
        $region35: #{jknet_forward.5} parent=31 // pred_region
          %s253 = sand.u32 %s41, 1
          %s254 = sand.u32 %s41, 1
          %s255 = smul.addr %s254, 256
          %s256 = scalar_lea.vmem [#allocation3], %s255
          %s257 = smul.u32 32, %s24
          %s258 = smul.u32 2, %s25
          %s259 = smul.addr %s257, 6
          %s260 = sadd.s32 %s258, %s259
          %s261 = smul.addr %s260, 4
          %s262 = scalar_lea.vmem %s0, %s261
          // Predicated region
          $region37: #{jknet_forward.5} parent=35 // pred_check
            _
          $region38: #{jknet_forward.5} parent=35 // pred_check_branch
            %264 = sbr.rel (0) target = $region40
          $region39: #{jknet_forward.5} parent=35 // pred_region
            // Predicated region
            $region41: #{jknet_forward.5} parent=39 // pred_check
              _
            $region42: #{jknet_forward.5} parent=39 // pred_check_branch
              %266 = sbr.rel (0) target = $region44
            $region43: #{jknet_forward.5} parent=39 // pred_region
              // Predicated region
              $region56: #{jknet_forward.5} parent=43 // pred_check
                _
              $region57: #{jknet_forward.5} parent=43 // pred_check_branch
                %343 = sbr.rel (0) target = $region59
              $region58: #{jknet_forward.5} parent=43 // pred_region
                loop: start=0, step=1, limit=1
                $region60: #{jknet_forward.5} parent=58 // loop_pre_header
                  _
                $region61: #{jknet_forward.5} parent=58 // loop_header
                  %s345 = sphi 0, %s349
                  %p346 = scmp.ge.s32.totalorder %s345, 1
                  %s350 = sphi %s262, %s262
                  %s351 = sphi %s256, %s256
                $region62: #{jknet_forward.5} parent=58 // loop_header_branch
                  %348 = sbr.rel (%p346) target = $region66
                $region63: #{jknet_forward.5} parent=58 // loop_body
                  %v352 = vld [vmem:[%s350] sm:$0xff]
                  %353 = vst [vmem:[%s351] sm:$0xff] %v352
                  %v354 = vld [vmem:[%s350 + $0x18] sm:$0xff]
                  %355 = vst [vmem:[%s351 + $0x8] sm:$0xff] %v354
                  %v356 = vld [vmem:[%s350 + $0x30] sm:$0xff]
                  %357 = vst [vmem:[%s351 + $0x10] sm:$0xff] %v356
                  %v358 = vld [vmem:[%s350 + $0x48] sm:$0xff]
                  %359 = vst [vmem:[%s351 + $0x18] sm:$0xff] %v358
                  %v360 = vld [vmem:[%s350 + $0x60] sm:$0xff]
                  %361 = vst [vmem:[%s351 + $0x20] sm:$0xff] %v360
                  %v362 = vld [vmem:[%s350 + $0x78] sm:$0xff]
                  %363 = vst [vmem:[%s351 + $0x28] sm:$0xff] %v362
                  %v364 = vld [vmem:[%s350 + $0x90] sm:$0xff]
                  %365 = vst [vmem:[%s351 + $0x30] sm:$0xff] %v364
                  %v366 = vld [vmem:[%s350 + $0xa8] sm:$0xff]
                  %367 = vst [vmem:[%s351 + $0x38] sm:$0xff] %v366
                  %v368 = vld [vmem:[%s350 + $0xc0] sm:$0xff]
                  %369 = vst [vmem:[%s351 + $0x40] sm:$0xff] %v368
                  %v370 = vld [vmem:[%s350 + $0xd8] sm:$0xff]
                  %371 = vst [vmem:[%s351 + $0x48] sm:$0xff] %v370
                  %v372 = vld [vmem:[%s350 + $0xf0] sm:$0xff]
                  %373 = vst [vmem:[%s351 + $0x50] sm:$0xff] %v372
                  %v374 = vld [vmem:[%s350 + $0x108] sm:$0xff]
                  %375 = vst [vmem:[%s351 + $0x58] sm:$0xff] %v374
                  %v376 = vld [vmem:[%s350 + $0x120] sm:$0xff]
                  %377 = vst [vmem:[%s351 + $0x60] sm:$0xff] %v376
                  %v378 = vld [vmem:[%s350 + $0x138] sm:$0xff]
                  %379 = vst [vmem:[%s351 + $0x68] sm:$0xff] %v378
                  %v380 = vld [vmem:[%s350 + $0x150] sm:$0xff]
                  %381 = vst [vmem:[%s351 + $0x70] sm:$0xff] %v380
                  %v382 = vld [vmem:[%s350 + $0x168] sm:$0xff]
                  %383 = vst [vmem:[%s351 + $0x78] sm:$0xff] %v382
                  %v384 = vld [vmem:[%s350 + $0x180] sm:$0xff]
                  %385 = vst [vmem:[%s351 + $0x80] sm:$0xff] %v384
                  %v386 = vld [vmem:[%s350 + $0x198] sm:$0xff]
                  %387 = vst [vmem:[%s351 + $0x88] sm:$0xff] %v386
                  %v388 = vld [vmem:[%s350 + $0x1b0] sm:$0xff]
                  %389 = vst [vmem:[%s351 + $0x90] sm:$0xff] %v388
                  %v390 = vld [vmem:[%s350 + $0x1c8] sm:$0xff]
                  %391 = vst [vmem:[%s351 + $0x98] sm:$0xff] %v390
                  %v392 = vld [vmem:[%s350 + $0x1e0] sm:$0xff]
                  %393 = vst [vmem:[%s351 + $0xa0] sm:$0xff] %v392
                  %v394 = vld [vmem:[%s350 + $0x1f8] sm:$0xff]
                  %395 = vst [vmem:[%s351 + $0xa8] sm:$0xff] %v394
                  %v396 = vld [vmem:[%s350 + $0x210] sm:$0xff]
                  %397 = vst [vmem:[%s351 + $0xb0] sm:$0xff] %v396
                  %v398 = vld [vmem:[%s350 + $0x228] sm:$0xff]
                  %399 = vst [vmem:[%s351 + $0xb8] sm:$0xff] %v398
                  %v400 = vld [vmem:[%s350 + $0x240] sm:$0xff]
                  %401 = vst [vmem:[%s351 + $0xc0] sm:$0xff] %v400
                  %v402 = vld [vmem:[%s350 + $0x258] sm:$0xff]
                  %403 = vst [vmem:[%s351 + $0xc8] sm:$0xff] %v402
                  %v404 = vld [vmem:[%s350 + $0x270] sm:$0xff]
                  %405 = vst [vmem:[%s351 + $0xd0] sm:$0xff] %v404
                  %v406 = vld [vmem:[%s350 + $0x288] sm:$0xff]
                  %407 = vst [vmem:[%s351 + $0xd8] sm:$0xff] %v406
                  %v408 = vld [vmem:[%s350 + $0x2a0] sm:$0xff]
                  %409 = vst [vmem:[%s351 + $0xe0] sm:$0xff] %v408
                  %v410 = vld [vmem:[%s350 + $0x2b8] sm:$0xff]
                  %411 = vst [vmem:[%s351 + $0xe8] sm:$0xff] %v410
                  %v412 = vld [vmem:[%s350 + $0x2d0] sm:$0xff]
                  %413 = vst [vmem:[%s351 + $0xf0] sm:$0xff] %v412
                  %v414 = vld [vmem:[%s350 + $0x2e8] sm:$0xff]
                  %415 = vst [vmem:[%s351 + $0xf8] sm:$0xff] %v414
                $region64: #{jknet_forward.5} parent=58 // loop_footer
                  %s349 = sadd.s32 1, %s345
                $region65: #{jknet_forward.5} parent=58 // loop_footer_branch
                  %344 = sbr.rel target = $region61
                $region66: #{jknet_forward.5} parent=58 // loop_exit
                  _
              $region59: #{jknet_forward.5} parent=43 // pred_fallthru
                _
              // Predicated region
              $region67: #{jknet_forward.5} parent=43 // pred_check
                _
              $region68: #{jknet_forward.5} parent=43 // pred_check_branch
                %417 = sbr.rel target = $region70
              $region69: #{jknet_forward.5} parent=43 // pred_region
                _
              $region70: #{jknet_forward.5} parent=43 // pred_fallthru
                _
            $region44: #{jknet_forward.5} parent=39 // pred_fallthru
              _
            // Predicated region
            $region45: #{jknet_forward.5} parent=39 // pred_check
              _
            $region46: #{jknet_forward.5} parent=39 // pred_check_branch
              %268 = sbr.rel target = $region48
            $region47: #{jknet_forward.5} parent=39 // pred_region
              loop: start=0, step=1, limit=1
              $region49: #{jknet_forward.5} parent=47 // loop_pre_header
                _
              $region50: #{jknet_forward.5} parent=47 // loop_header
                %s271 = sphi 0, %s275
                %p272 = scmp.ge.s32.totalorder %s271, 1
                %s276 = sphi %s262, %s262
                %s277 = sphi %s256, %s256
              $region51: #{jknet_forward.5} parent=47 // loop_header_branch
                %274 = sbr.rel (%p272) target = $region55
              $region52: #{jknet_forward.5} parent=47 // loop_body
                %v278 = vld [vmem:[%s276] sm:$0xff]
                %279 = vst [vmem:[%s277] sm:$0xff] %v278
                %v280 = vld [vmem:[%s276 + $0x18] sm:$0xff]
                %281 = vst [vmem:[%s277 + $0x8] sm:$0xff] %v280
                %v282 = vld [vmem:[%s276 + $0x30] sm:$0xff]
                %283 = vst [vmem:[%s277 + $0x10] sm:$0xff] %v282
                %v284 = vld [vmem:[%s276 + $0x48] sm:$0xff]
                %285 = vst [vmem:[%s277 + $0x18] sm:$0xff] %v284
                %v286 = vld [vmem:[%s276 + $0x60] sm:$0xff]
                %287 = vst [vmem:[%s277 + $0x20] sm:$0xff] %v286
                %v288 = vld [vmem:[%s276 + $0x78] sm:$0xff]
                %289 = vst [vmem:[%s277 + $0x28] sm:$0xff] %v288
                %v290 = vld [vmem:[%s276 + $0x90] sm:$0xff]
                %291 = vst [vmem:[%s277 + $0x30] sm:$0xff] %v290
                %v292 = vld [vmem:[%s276 + $0xa8] sm:$0xff]
                %293 = vst [vmem:[%s277 + $0x38] sm:$0xff] %v292
                %v294 = vld [vmem:[%s276 + $0xc0] sm:$0xff]
                %295 = vst [vmem:[%s277 + $0x40] sm:$0xff] %v294
                %v296 = vld [vmem:[%s276 + $0xd8] sm:$0xff]
                %297 = vst [vmem:[%s277 + $0x48] sm:$0xff] %v296
                %v298 = vld [vmem:[%s276 + $0xf0] sm:$0xff]
                %299 = vst [vmem:[%s277 + $0x50] sm:$0xff] %v298
                %v300 = vld [vmem:[%s276 + $0x108] sm:$0xff]
                %301 = vst [vmem:[%s277 + $0x58] sm:$0xff] %v300
                %v302 = vld [vmem:[%s276 + $0x120] sm:$0xff]
                %303 = vst [vmem:[%s277 + $0x60] sm:$0xff] %v302
                %v304 = vld [vmem:[%s276 + $0x138] sm:$0xff]
                %305 = vst [vmem:[%s277 + $0x68] sm:$0xff] %v304
                %v306 = vld [vmem:[%s276 + $0x150] sm:$0xff]
                %307 = vst [vmem:[%s277 + $0x70] sm:$0xff] %v306
                %v308 = vld [vmem:[%s276 + $0x168] sm:$0xff]
                %309 = vst [vmem:[%s277 + $0x78] sm:$0xff] %v308
                %v310 = vld [vmem:[%s276 + $0x180] sm:$0xff]
                %311 = vst [vmem:[%s277 + $0x80] sm:$0xff] %v310
                %v312 = vld [vmem:[%s276 + $0x198] sm:$0xff]
                %313 = vst [vmem:[%s277 + $0x88] sm:$0xff] %v312
                %v314 = vld [vmem:[%s276 + $0x1b0] sm:$0xff]
                %315 = vst [vmem:[%s277 + $0x90] sm:$0xff] %v314
                %v316 = vld [vmem:[%s276 + $0x1c8] sm:$0xff]
                %317 = vst [vmem:[%s277 + $0x98] sm:$0xff] %v316
                %v318 = vld [vmem:[%s276 + $0x1e0] sm:$0xff]
                %319 = vst [vmem:[%s277 + $0xa0] sm:$0xff] %v318
                %v320 = vld [vmem:[%s276 + $0x1f8] sm:$0xff]
                %321 = vst [vmem:[%s277 + $0xa8] sm:$0xff] %v320
                %v322 = vld [vmem:[%s276 + $0x210] sm:$0xff]
                %323 = vst [vmem:[%s277 + $0xb0] sm:$0xff] %v322
                %v324 = vld [vmem:[%s276 + $0x228] sm:$0xff]
                %325 = vst [vmem:[%s277 + $0xb8] sm:$0xff] %v324
                %v326 = vld [vmem:[%s276 + $0x240] sm:$0xff]
                %327 = vst [vmem:[%s277 + $0xc0] sm:$0xff] %v326
                %v328 = vld [vmem:[%s276 + $0x258] sm:$0xff]
                %329 = vst [vmem:[%s277 + $0xc8] sm:$0xff] %v328
                %v330 = vld [vmem:[%s276 + $0x270] sm:$0xff]
                %331 = vst [vmem:[%s277 + $0xd0] sm:$0xff] %v330
                %v332 = vld [vmem:[%s276 + $0x288] sm:$0xff]
                %333 = vst [vmem:[%s277 + $0xd8] sm:$0xff] %v332
                %v334 = vld [vmem:[%s276 + $0x2a0] sm:$0xff]
                %335 = vst [vmem:[%s277 + $0xe0] sm:$0xff] %v334
                %v336 = vld [vmem:[%s276 + $0x2b8] sm:$0xff]
                %337 = vst [vmem:[%s277 + $0xe8] sm:$0xff] %v336
                %v338 = vld [vmem:[%s276 + $0x2d0] sm:$0xff]
                %339 = vst [vmem:[%s277 + $0xf0] sm:$0xff] %v338
                %v340 = vld [vmem:[%s276 + $0x2e8] sm:$0xff]
                %341 = vst [vmem:[%s277 + $0xf8] sm:$0xff] %v340
              $region53: #{jknet_forward.5} parent=47 // loop_footer
                %s275 = sadd.s32 1, %s271
              $region54: #{jknet_forward.5} parent=47 // loop_footer_branch
                %270 = sbr.rel target = $region50
              $region55: #{jknet_forward.5} parent=47 // loop_exit
                _
            $region48: #{jknet_forward.5} parent=39 // pred_fallthru
              _
          $region40: #{jknet_forward.5} parent=35 // pred_fallthru
            _
          %418 = vnop
        $region36: #{jknet_forward.5} parent=31 // pred_fallthru
          _
        // Predicated region
        $region71: #{jknet_forward.5} parent=31 // pred_check
          %p419 = pneg %p161
        $region72: #{jknet_forward.5} parent=31 // pred_check_branch
          %421 = sbr.rel (%p419) target = $region74
        $region73: #{jknet_forward.5} parent=31 // pred_region
          %s422 = smul.u32 32, %s24
          %p423 = scmp.lt.s32.totalorder %s422, 95
          %s424 = scalar_select %p423, %s422, 95
          %s425 = smul.addr %s424, 8
          %s426 = scalar_lea.vmem %s5, %s425
          %s427 = smul.u32 32, %s24
        $region74: #{jknet_forward.5} parent=31 // pred_fallthru
          _
      $region32: #{jknet_forward.5} parent=5 // pred_fallthru
        _
      %p428 = scmp.le.s32.totalorder 1, %s17
      %p429 = scmp.lt.s32.totalorder %s17, 10
      %p430 = pnand %p428, %p429
      %p431 = pneg %p430
      // Predicated region
      $region75: #{jknet_forward.5} parent=5 // pred_check
        _
      $region76: #{jknet_forward.5} parent=5 // pred_check_branch
        %433 = sbr.rel (%p430) target = $region78
      $region77: #{jknet_forward.5} parent=5 // pred_region
        %s434 = ssub.s32 %s17, 1
        %s435 = sand.u32 %s44, 1
        %s436 = sand.u32 %s44, 1
        %s437 = smul.addr %s436, 256
        %s438 = scalar_lea.vmem [#allocation3], %s437
        // Predicated region
        $region79: #{jknet_forward.5} parent=77 // pred_check
          %p439 = pneg %p57
        $region80: #{jknet_forward.5} parent=77 // pred_check_branch
          %441 = sbr.rel (%p439) target = $region82
        $region81: #{jknet_forward.5} parent=77 // pred_region
          _
        $region82: #{jknet_forward.5} parent=77 // pred_fallthru
          _
        %s442 = sand.u32 %s44, 1
        %s443 = sand.u32 %s44, 1
        %s444 = smul.addr %s443, 256
        %s445 = scalar_lea.vmem [#allocation3], %s444
        %p446 = pneg %p57
        %p447 = pneg %p54
        %p448 = pneg %p78
        %p449 = pneg %p75
        %p450 = pneg %p99
        %p451 = pneg %p96
        %p452 = pneg %p120
        %p453 = pneg %p117
        %p454 = pneg %p141
        %p455 = pneg %p138
        %s456 = smul.u32 32, %s26
        %p457 = scmp.lt.s32.totalorder %s456, 95
        %s458 = scalar_select %p457, %s456, 95
        %s459 = smul.addr %s458, 8
        %s460 = scalar_lea.vmem %s5, %s459
        %p461 = pneg %p167
        %p462 = pneg %p164
        %p463 = pneg %p193
        %p464 = pneg %p190
        %s465 = sand.u32 %s180, 1
        %s466 = scalar_lea.sflag [#allocation5], %s465
        %s467 = sand.u32 %s180, 1
        %s468 = smul.addr %s467, 128
        %s469 = scalar_lea.vmem [#allocation4], %s468
        %p470 = pneg %p219
        %p471 = pneg %p216
        %s472 = smul.u32 32, %s26
        %p473 = scmp.lt.s32.totalorder %s472, 95
        %s474 = scalar_select %p473, %s472, 95
        %s475 = smul.addr %s474, 8
        %s476 = scalar_lea.vmem %s7, %s475
        %s477 = smul.u32 32, %s26
        %s478 = smul.u32 2, %s27
        %s479 = smul.u32 32, %s26
        %p480 = scmp.lt.s32.totalorder %s479, 95
        %s481 = scalar_select %p480, %s479, 95
        %s482 = smul.addr %s481, 8
        %s483 = scalar_lea.vmem %s5, %s482
        %s484 = smul.u32 32, %s26
        %s485 = smul.u32 32, %s26
        %s486 = smul.u32 32, %s26
        %p487 = scmp.lt.s32.totalorder %s486, 95
        %s488 = scalar_select %p487, %s486, 95
        %s489 = smul.addr %s488, 8
        %s490 = scalar_lea.vmem %s7, %s489
        %s491 = smul.u32 32, %s26
        %s493 = smul.u32 %s27, 256
        %s494 = sshra.s32 %s493, 3
        %s495 = sand.u32 %s493, 7
        %s496 = smul.addr %s494, 4
        %s497 = scalar_lea.vmem %s1, %s496
        %v498 = vld [vmem:[%s497] sm:$0xf]
        %v499 = vld [vmem:[%s497 + $0x4] sm:$0xf]
        %v500 = vld [vmem:[%s497 + $0x8] sm:$0xf]
        %v501 = vld [vmem:[%s497 + $0xc] sm:$0xf]
        %v502 = vld [vmem:[%s497 + $0x10] sm:$0xf]
        %v503 = vld [vmem:[%s497 + $0x14] sm:$0xf]
        %v504 = vld [vmem:[%s497 + $0x18] sm:$0xf]
        %v505 = vld [vmem:[%s497 + $0x1c] sm:$0xf]
        %v506 = vld [vmem:[%s497 + $0x20] sm:$0xf]
        %v507 = vld [vmem:[%s497 + $0x24] sm:$0xf]
        %v508 = vld [vmem:[%s497 + $0x28] sm:$0xf]
        %v509 = vld [vmem:[%s497 + $0x2c] sm:$0xf]
        %v510 = vld [vmem:[%s497 + $0x30] sm:$0xf]
        %v511 = vld [vmem:[%s497 + $0x34] sm:$0xf]
        %v512 = vld [vmem:[%s497 + $0x38] sm:$0xf]
        %v513 = vld [vmem:[%s497 + $0x3c] sm:$0xf]
        %v514 = vld [vmem:[%s497 + $0x40] sm:$0xf]
        %v515 = vld [vmem:[%s497 + $0x44] sm:$0xf]
        %v516 = vld [vmem:[%s497 + $0x48] sm:$0xf]
        %v517 = vld [vmem:[%s497 + $0x4c] sm:$0xf]
        %v518 = vld [vmem:[%s497 + $0x50] sm:$0xf]
        %v519 = vld [vmem:[%s497 + $0x54] sm:$0xf]
        %v520 = vld [vmem:[%s497 + $0x58] sm:$0xf]
        %v521 = vld [vmem:[%s497 + $0x5c] sm:$0xf]
        %v522 = vld [vmem:[%s497 + $0x60] sm:$0xf]
        %v523 = vld [vmem:[%s497 + $0x64] sm:$0xf]
        %v524 = vld [vmem:[%s497 + $0x68] sm:$0xf]
        %v525 = vld [vmem:[%s497 + $0x6c] sm:$0xf]
        %v526 = vld [vmem:[%s497 + $0x70] sm:$0xf]
        %v527 = vld [vmem:[%s497 + $0x74] sm:$0xf]
        %v528 = vld [vmem:[%s497 + $0x78] sm:$0xf]
        %v529 = vld [vmem:[%s497 + $0x7c] sm:$0xf]
        %v530 = vld [vmem:[%s2] sm:$0xf]
        %v531 = vld [vmem:[%s2 + $0x4] sm:$0xf]
        %v532 = vld [vmem:[%s2 + $0x8] sm:$0xf]
        %v533 = vld [vmem:[%s2 + $0xc] sm:$0xf]
        %v534 = vld [vmem:[%s2 + $0x10] sm:$0xf]
        %v535 = vld [vmem:[%s2 + $0x14] sm:$0xf]
        %v536 = vld [vmem:[%s2 + $0x18] sm:$0xf]
        %v537 = vld [vmem:[%s2 + $0x1c] sm:$0xf]
        %v538 = vld [vmem:[%s2 + $0x20] sm:$0xf]
        %v539 = vld [vmem:[%s2 + $0x24] sm:$0xf]
        %v540 = vld [vmem:[%s2 + $0x28] sm:$0xf]
        %v541 = vld [vmem:[%s2 + $0x2c] sm:$0xf]
        %v542 = vld [vmem:[%s2 + $0x30] sm:$0xf]
        %v543 = vld [vmem:[%s2 + $0x34] sm:$0xf]
        %v544 = vld [vmem:[%s2 + $0x38] sm:$0xf]
        %v545 = vld [vmem:[%s2 + $0x3c] sm:$0xf]
        %v578 = vunpack.c.l.b16 %v498
        %v579 = vunpack.c.l.b16 %v499
        %v580 = vunpack.c.l.b16 %v500
        %v581 = vunpack.c.l.b16 %v501
        %v582 = vunpack.c.l.b16 %v502
        %v583 = vunpack.c.l.b16 %v503
        %v584 = vunpack.c.l.b16 %v504
        %v585 = vunpack.c.l.b16 %v505
        %v586 = vunpack.c.l.b16 %v506
        %v587 = vunpack.c.l.b16 %v507
        %v588 = vunpack.c.l.b16 %v508
        %v589 = vunpack.c.l.b16 %v509
        %v590 = vunpack.c.l.b16 %v510
        %v591 = vunpack.c.l.b16 %v511
        %v592 = vunpack.c.l.b16 %v512
        %v593 = vunpack.c.l.b16 %v513
        %v594 = vunpack.c.l.b16 %v514
        %v595 = vunpack.c.l.b16 %v515
        %v596 = vunpack.c.l.b16 %v516
        %v597 = vunpack.c.l.b16 %v517
        %v598 = vunpack.c.l.b16 %v518
        %v599 = vunpack.c.l.b16 %v519
        %v600 = vunpack.c.l.b16 %v520
        %v601 = vunpack.c.l.b16 %v521
        %v602 = vunpack.c.l.b16 %v522
        %v603 = vunpack.c.l.b16 %v523
        %v604 = vunpack.c.l.b16 %v524
        %v605 = vunpack.c.l.b16 %v525
        %v606 = vunpack.c.l.b16 %v526
        %v607 = vunpack.c.l.b16 %v527
        %v608 = vunpack.c.l.b16 %v528
        %v609 = vunpack.c.l.b16 %v529
        %v610 = vpack.c.b16 %v579, %v578
        %v611 = vpack.c.b16 %v581, %v580
        %v612 = vpack.c.b16 %v583, %v582
        %v613 = vpack.c.b16 %v585, %v584
        %v614 = vpack.c.b16 %v587, %v586
        %v615 = vpack.c.b16 %v589, %v588
        %v616 = vpack.c.b16 %v591, %v590
        %v617 = vpack.c.b16 %v593, %v592
        %v618 = vpack.c.b16 %v595, %v594
        %v619 = vpack.c.b16 %v597, %v596
        %v620 = vpack.c.b16 %v599, %v598
        %v621 = vpack.c.b16 %v601, %v600
        %v622 = vpack.c.b16 %v603, %v602
        %v623 = vpack.c.b16 %v605, %v604
        %v624 = vpack.c.b16 %v607, %v606
        %v625 = vpack.c.b16 %v609, %v608
        %v658 = vunpack.c.l.b16 %v530
        %v659 = vunpack.c.l.b16 %v531
        %v660 = vunpack.c.l.b16 %v532
        %v661 = vunpack.c.l.b16 %v533
        %v662 = vunpack.c.l.b16 %v534
        %v663 = vunpack.c.l.b16 %v535
        %v664 = vunpack.c.l.b16 %v536
        %v665 = vunpack.c.l.b16 %v537
        %v666 = vunpack.c.l.b16 %v538
        %v667 = vunpack.c.l.b16 %v539
        %v668 = vunpack.c.l.b16 %v540
        %v669 = vunpack.c.l.b16 %v541
        %v670 = vunpack.c.l.b16 %v542
        %v671 = vunpack.c.l.b16 %v543
        %v672 = vunpack.c.l.b16 %v544
        %v673 = vunpack.c.l.b16 %v545
        %v674 = vpack.c.b16 %v659, %v658
        %v675 = vpack.c.b16 %v661, %v660
        %v676 = vpack.c.b16 %v663, %v662
        %v677 = vpack.c.b16 %v665, %v664
        %v678 = vpack.c.b16 %v667, %v666
        %v679 = vpack.c.b16 %v669, %v668
        %v680 = vpack.c.b16 %v671, %v670
        %v681 = vpack.c.b16 %v673, %v672
        %690 = vmatprep.subr.bf16.mxu0 0
        %691 = vmatpush1.bf16.msra.mxu0 %v674
        %692 = vmatprep.subr.bf16.mxu0 0
        %693 = vmatpush1.bf16.msra.mxu0 %v675
        %694 = vmatprep.subr.bf16.mxu0 0
        %695 = vmatpush1.bf16.msra.mxu0 %v676
        %696 = vmatprep.subr.bf16.mxu0 0
        %697 = vmatpush1.bf16.msra.mxu0 %v677
        %698 = vmatprep.subr.bf16.mxu0 0
        %699 = vmatpush1.bf16.msra.mxu0 %v678
        %700 = vmatprep.subr.bf16.mxu0 0
        %701 = vmatpush1.bf16.msra.mxu0 %v679
        %702 = vmatprep.subr.bf16.mxu0 0
        %703 = vmatpush1.bf16.msra.mxu0 %v680
        %704 = vmatprep.subr.bf16.mxu0 0
        %705 = vmatpush1.bf16.msra.mxu0 %v681
        %706 = vmatprep.subr.bf16.mxu0 0
        %707 = vmatpush1.bf16.msra.mxu0 0
        %708 = vmatprep.subr.bf16.mxu0 0
        %709 = vmatpush1.bf16.msra.mxu0 0
        %710 = vmatprep.subr.bf16.mxu0 0
        %711 = vmatpush1.bf16.msra.mxu0 0
        %712 = vmatprep.subr.bf16.mxu0 0
        %713 = vmatpush1.bf16.msra.mxu0 0
        %714 = vmatprep.subr.bf16.mxu0 0
        %715 = vmatpush1.bf16.msra.mxu0 0
        %716 = vmatprep.subr.bf16.mxu0 0
        %717 = vmatpush1.bf16.msra.mxu0 0
        %718 = vmatprep.subr.bf16.mxu0 0
        %719 = vmatpush1.bf16.msra.mxu0 0
        %720 = vmatprep.subr.bf16.mxu0 0
        %721 = vmatpush1.bf16.msra.mxu0 0
        %722 = vmatprep.mubr.bf16.mxu0 0
        %723 = vmatmul.mubr.bf16.gmra.mrb[0].mxu0 %v610
        %v724 = vpop.f32.mrb[0].mxu0
        %v725 = vadd.f32 0.0, %v724
        %v726 = vpop.f32.mrb[0].mxu0
        %v727 = vpop.f32.mrb[0].mxu0
        %v728 = vadd.f32 0.0, %v727
        %v729 = vpop.f32.mrb[0].mxu0
        %730 = vmatprep.mubr.bf16.mxu0 0
        %731 = vmatmul.mubr.bf16.gmra.mrb[0].mxu0 %v611
        %v732 = vpop.f32.mrb[0].mxu0
        %v733 = vadd.f32 0.0, %v732
        %v734 = vpop.f32.mrb[0].mxu0
        %v735 = vpop.f32.mrb[0].mxu0
        %v736 = vadd.f32 0.0, %v735
        %v737 = vpop.f32.mrb[0].mxu0
        %738 = vmatprep.mubr.bf16.mxu0 0
        %739 = vmatmul.mubr.bf16.gmra.mrb[0].mxu0 %v612
        %v740 = vpop.f32.mrb[0].mxu0
        %v741 = vadd.f32 0.0, %v740
        %v742 = vpop.f32.mrb[0].mxu0
        %v743 = vpop.f32.mrb[0].mxu0
        %v744 = vadd.f32 0.0, %v743
        %v745 = vpop.f32.mrb[0].mxu0
        %746 = vmatprep.mubr.bf16.mxu0 0
        %747 = vmatmul.mubr.bf16.gmra.mrb[0].mxu0 %v613
        %v748 = vpop.f32.mrb[0].mxu0
        %v749 = vadd.f32 0.0, %v748
        %v750 = vpop.f32.mrb[0].mxu0
        %v751 = vpop.f32.mrb[0].mxu0
        %v752 = vadd.f32 0.0, %v751
        %v753 = vpop.f32.mrb[0].mxu0
        %754 = vmatprep.mubr.bf16.mxu0 0
        %755 = vmatmul.mubr.bf16.gmra.mrb[0].mxu0 %v614
        %v756 = vpop.f32.mrb[0].mxu0
        %v757 = vadd.f32 0.0, %v756
        %v758 = vpop.f32.mrb[0].mxu0
        %v759 = vpop.f32.mrb[0].mxu0
        %v760 = vadd.f32 0.0, %v759
        %v761 = vpop.f32.mrb[0].mxu0
        %762 = vmatprep.mubr.bf16.mxu0 0
        %763 = vmatmul.mubr.bf16.gmra.mrb[0].mxu0 %v615
        %v764 = vpop.f32.mrb[0].mxu0
        %v765 = vadd.f32 0.0, %v764
        %v766 = vpop.f32.mrb[0].mxu0
        %v767 = vpop.f32.mrb[0].mxu0
        %v768 = vadd.f32 0.0, %v767
        %v769 = vpop.f32.mrb[0].mxu0
        %770 = vmatprep.mubr.bf16.mxu0 0
        %771 = vmatmul.mubr.bf16.gmra.mrb[0].mxu0 %v616
        %v772 = vpop.f32.mrb[0].mxu0
        %v773 = vadd.f32 0.0, %v772
        %v774 = vpop.f32.mrb[0].mxu0
        %v775 = vpop.f32.mrb[0].mxu0
        %v776 = vadd.f32 0.0, %v775
        %v777 = vpop.f32.mrb[0].mxu0
        %778 = vmatprep.mubr.bf16.mxu0 0
        %779 = vmatmul.mubr.bf16.gmra.mrb[0].mxu0 %v617
        %v780 = vpop.f32.mrb[0].mxu0
        %v781 = vadd.f32 0.0, %v780
        %v782 = vpop.f32.mrb[0].mxu0
        %v783 = vpop.f32.mrb[0].mxu0
        %v784 = vadd.f32 0.0, %v783
        %v785 = vpop.f32.mrb[0].mxu0
        %786 = vmatprep.mubr.bf16.mxu0 0
        %787 = vmatmul.mubr.bf16.gmra.mrb[0].mxu0 %v618
        %v788 = vpop.f32.mrb[0].mxu0
        %v789 = vadd.f32 0.0, %v788
        %v790 = vpop.f32.mrb[0].mxu0
        %v791 = vpop.f32.mrb[0].mxu0
        %v792 = vadd.f32 0.0, %v791
        %v793 = vpop.f32.mrb[0].mxu0
        %794 = vmatprep.mubr.bf16.mxu0 0
        %795 = vmatmul.mubr.bf16.gmra.mrb[0].mxu0 %v619
        %v796 = vpop.f32.mrb[0].mxu0
        %v797 = vadd.f32 0.0, %v796
        %v798 = vpop.f32.mrb[0].mxu0
        %v799 = vpop.f32.mrb[0].mxu0
        %v800 = vadd.f32 0.0, %v799
        %v801 = vpop.f32.mrb[0].mxu0
        %802 = vmatprep.mubr.bf16.mxu0 0
        %803 = vmatmul.mubr.bf16.gmra.mrb[0].mxu0 %v620
        %v804 = vpop.f32.mrb[0].mxu0
        %v805 = vadd.f32 0.0, %v804
        %v806 = vpop.f32.mrb[0].mxu0
        %v807 = vpop.f32.mrb[0].mxu0
        %v808 = vadd.f32 0.0, %v807
        %v809 = vpop.f32.mrb[0].mxu0
        %810 = vmatprep.mubr.bf16.mxu0 0
        %811 = vmatmul.mubr.bf16.gmra.mrb[0].mxu0 %v621
        %v812 = vpop.f32.mrb[0].mxu0
        %v813 = vadd.f32 0.0, %v812
        %v814 = vpop.f32.mrb[0].mxu0
        %v815 = vpop.f32.mrb[0].mxu0
        %v816 = vadd.f32 0.0, %v815
        %v817 = vpop.f32.mrb[0].mxu0
        %818 = vmatprep.mubr.bf16.mxu0 0
        %819 = vmatmul.mubr.bf16.gmra.mrb[0].mxu0 %v622
        %v820 = vpop.f32.mrb[0].mxu0
        %v821 = vadd.f32 0.0, %v820
        %v822 = vpop.f32.mrb[0].mxu0
        %v823 = vpop.f32.mrb[0].mxu0
        %v824 = vadd.f32 0.0, %v823
        %v825 = vpop.f32.mrb[0].mxu0
        %826 = vmatprep.mubr.bf16.mxu0 0
        %827 = vmatmul.mubr.bf16.gmra.mrb[0].mxu0 %v623
        %v828 = vpop.f32.mrb[0].mxu0
        %v829 = vadd.f32 0.0, %v828
        %v830 = vpop.f32.mrb[0].mxu0
        %v831 = vpop.f32.mrb[0].mxu0
        %v832 = vadd.f32 0.0, %v831
        %v833 = vpop.f32.mrb[0].mxu0
        %834 = vmatprep.mubr.bf16.mxu0 0
        %835 = vmatmul.mubr.bf16.gmra.mrb[0].mxu0 %v624
        %v836 = vpop.f32.mrb[0].mxu0
        %v837 = vadd.f32 0.0, %v836
        %v838 = vpop.f32.mrb[0].mxu0
        %v839 = vpop.f32.mrb[0].mxu0
        %v840 = vadd.f32 0.0, %v839
        %v841 = vpop.f32.mrb[0].mxu0
        %842 = vmatprep.mubr.bf16.mxu0 0
        %843 = vmatmul.mubr.bf16.gmra.mrb[0].mxu0 %v625
        %v844 = vpop.f32.mrb[0].mxu0
        %v845 = vadd.f32 0.0, %v844
        %v846 = vpop.f32.mrb[0].mxu0
        %v847 = vpop.f32.mrb[0].mxu0
        %v848 = vadd.f32 0.0, %v847
        %v849 = vpop.f32.mrb[0].mxu0
        %850 = vdwg.mxu0
        %v851 = vpack.c.bf16 %v728, %v725
        %v852 = vpack.c.bf16 %v736, %v733
        %v853 = vpack.c.bf16 %v744, %v741
        %v854 = vpack.c.bf16 %v752, %v749
        %v855 = vpack.c.bf16 %v760, %v757
        %v856 = vpack.c.bf16 %v768, %v765
        %v857 = vpack.c.bf16 %v776, %v773
        %v858 = vpack.c.bf16 %v784, %v781
        %v859 = vpack.c.bf16 %v792, %v789
        %v860 = vpack.c.bf16 %v800, %v797
        %v861 = vpack.c.bf16 %v808, %v805
        %v862 = vpack.c.bf16 %v816, %v813
        %v863 = vpack.c.bf16 %v824, %v821
        %v864 = vpack.c.bf16 %v832, %v829
        %v865 = vpack.c.bf16 %v840, %v837
        %v866 = vpack.c.bf16 %v848, %v845
        %v867 = vld [vmem:[%s438] sm:$0xff]
        %v868 = vld [vmem:[%s438 + $0x8] sm:$0xff]
        %v869 = vld [vmem:[%s438 + $0x10] sm:$0xff]
        %v870 = vld [vmem:[%s438 + $0x18] sm:$0xff]
        %v871 = vld [vmem:[%s438 + $0x20] sm:$0xff]
        %v872 = vld [vmem:[%s438 + $0x28] sm:$0xff]
        %v873 = vld [vmem:[%s438 + $0x30] sm:$0xff]
        %v874 = vld [vmem:[%s438 + $0x38] sm:$0xff]
        %v875 = vld [vmem:[%s438 + $0x40] sm:$0xff]
        %v876 = vld [vmem:[%s438 + $0x48] sm:$0xff]
        %v877 = vld [vmem:[%s438 + $0x50] sm:$0xff]
        %v878 = vld [vmem:[%s438 + $0x58] sm:$0xff]
        %v879 = vld [vmem:[%s438 + $0x60] sm:$0xff]
        %v880 = vld [vmem:[%s438 + $0x68] sm:$0xff]
        %v881 = vld [vmem:[%s438 + $0x70] sm:$0xff]
        %v882 = vld [vmem:[%s438 + $0x78] sm:$0xff]
        %v883 = vld [vmem:[%s438 + $0x80] sm:$0xff]
        %v884 = vld [vmem:[%s438 + $0x88] sm:$0xff]
        %v885 = vld [vmem:[%s438 + $0x90] sm:$0xff]
        %v886 = vld [vmem:[%s438 + $0x98] sm:$0xff]
        %v887 = vld [vmem:[%s438 + $0xa0] sm:$0xff]
        %v888 = vld [vmem:[%s438 + $0xa8] sm:$0xff]
        %v889 = vld [vmem:[%s438 + $0xb0] sm:$0xff]
        %v890 = vld [vmem:[%s438 + $0xb8] sm:$0xff]
        %v891 = vld [vmem:[%s438 + $0xc0] sm:$0xff]
        %v892 = vld [vmem:[%s438 + $0xc8] sm:$0xff]
        %v893 = vld [vmem:[%s438 + $0xd0] sm:$0xff]
        %v894 = vld [vmem:[%s438 + $0xd8] sm:$0xff]
        %v895 = vld [vmem:[%s438 + $0xe0] sm:$0xff]
        %v896 = vld [vmem:[%s438 + $0xe8] sm:$0xff]
        %v897 = vld [vmem:[%s438 + $0xf0] sm:$0xff]
        %v898 = vld [vmem:[%s438 + $0xf8] sm:$0xff]
        %v931 = vunpack.c.l.b16 %v867
        %v932 = vunpack.c.h.b16 %v867
        %v933 = vunpack.c.l.b16 %v868
        %v934 = vunpack.c.h.b16 %v868
        %v935 = vunpack.c.l.b16 %v869
        %v936 = vunpack.c.h.b16 %v869
        %v937 = vunpack.c.l.b16 %v870
        %v938 = vunpack.c.h.b16 %v870
        %v939 = vunpack.c.l.b16 %v871
        %v940 = vunpack.c.h.b16 %v871
        %v941 = vunpack.c.l.b16 %v872
        %v942 = vunpack.c.h.b16 %v872
        %v943 = vunpack.c.l.b16 %v873
        %v944 = vunpack.c.h.b16 %v873
        %v945 = vunpack.c.l.b16 %v874
        %v946 = vunpack.c.h.b16 %v874
        %v947 = vunpack.c.l.b16 %v875
        %v948 = vunpack.c.h.b16 %v875
        %v949 = vunpack.c.l.b16 %v876
        %v950 = vunpack.c.h.b16 %v876
        %v951 = vunpack.c.l.b16 %v877
        %v952 = vunpack.c.h.b16 %v877
        %v953 = vunpack.c.l.b16 %v878
        %v954 = vunpack.c.h.b16 %v878
        %v955 = vunpack.c.l.b16 %v879
        %v956 = vunpack.c.h.b16 %v879
        %v957 = vunpack.c.l.b16 %v880
        %v958 = vunpack.c.h.b16 %v880
        %v959 = vunpack.c.l.b16 %v881
        %v960 = vunpack.c.h.b16 %v881
        %v961 = vunpack.c.l.b16 %v882
        %v962 = vunpack.c.h.b16 %v882
        %v963 = vunpack.c.l.b16 %v883
        %v964 = vunpack.c.h.b16 %v883
        %v965 = vunpack.c.l.b16 %v884
        %v966 = vunpack.c.h.b16 %v884
        %v967 = vunpack.c.l.b16 %v885
        %v968 = vunpack.c.h.b16 %v885
        %v969 = vunpack.c.l.b16 %v886
        %v970 = vunpack.c.h.b16 %v886
        %v971 = vunpack.c.l.b16 %v887
        %v972 = vunpack.c.h.b16 %v887
        %v973 = vunpack.c.l.b16 %v888
        %v974 = vunpack.c.h.b16 %v888
        %v975 = vunpack.c.l.b16 %v889
        %v976 = vunpack.c.h.b16 %v889
        %v977 = vunpack.c.l.b16 %v890
        %v978 = vunpack.c.h.b16 %v890
        %v979 = vunpack.c.l.b16 %v891
        %v980 = vunpack.c.h.b16 %v891
        %v981 = vunpack.c.l.b16 %v892
        %v982 = vunpack.c.h.b16 %v892
        %v983 = vunpack.c.l.b16 %v893
        %v984 = vunpack.c.h.b16 %v893
        %v985 = vunpack.c.l.b16 %v894
        %v986 = vunpack.c.h.b16 %v894
        %v987 = vunpack.c.l.b16 %v895
        %v988 = vunpack.c.h.b16 %v895
        %v989 = vunpack.c.l.b16 %v896
        %v990 = vunpack.c.h.b16 %v896
        %v991 = vunpack.c.l.b16 %v897
        %v992 = vunpack.c.h.b16 %v897
        %v993 = vunpack.c.l.b16 %v898
        %v994 = vunpack.c.h.b16 %v898
        %v995 = vpack.c.b16 %v933, %v931
        %v996 = vpack.c.b16 %v934, %v932
        %v997 = vpack.c.b16 %v937, %v935
        %v998 = vpack.c.b16 %v938, %v936
        %v999 = vpack.c.b16 %v941, %v939
        %v1000 = vpack.c.b16 %v942, %v940
        %v1001 = vpack.c.b16 %v945, %v943
        %v1002 = vpack.c.b16 %v946, %v944
        %v1003 = vpack.c.b16 %v949, %v947
        %v1004 = vpack.c.b16 %v950, %v948
        %v1005 = vpack.c.b16 %v953, %v951
        %v1006 = vpack.c.b16 %v954, %v952
        %v1007 = vpack.c.b16 %v957, %v955
        %v1008 = vpack.c.b16 %v958, %v956
        %v1009 = vpack.c.b16 %v961, %v959
        %v1010 = vpack.c.b16 %v962, %v960
        %v1011 = vpack.c.b16 %v965, %v963
        %v1012 = vpack.c.b16 %v966, %v964
        %v1013 = vpack.c.b16 %v969, %v967
        %v1014 = vpack.c.b16 %v970, %v968
        %v1015 = vpack.c.b16 %v973, %v971
        %v1016 = vpack.c.b16 %v974, %v972
        %v1017 = vpack.c.b16 %v977, %v975
        %v1018 = vpack.c.b16 %v978, %v976
        %v1019 = vpack.c.b16 %v981, %v979
        %v1020 = vpack.c.b16 %v982, %v980
        %v1021 = vpack.c.b16 %v985, %v983
        %v1022 = vpack.c.b16 %v986, %v984
        %v1023 = vpack.c.b16 %v989, %v987
        %v1024 = vpack.c.b16 %v990, %v988
        %v1025 = vpack.c.b16 %v993, %v991
        %v1026 = vpack.c.b16 %v994, %v992
        %1059 = vmatprep.subr.bf16.mxu0 0
        %1060 = vmatpush1.bf16.msra.mxu0 %v851
        %1061 = vmatprep.subr.bf16.mxu0 0
        %1062 = vmatpush1.bf16.msra.mxu0 %v852
        %1063 = vmatprep.subr.bf16.mxu0 0
        %1064 = vmatpush1.bf16.msra.mxu0 %v853
        %1065 = vmatprep.subr.bf16.mxu0 0
        %1066 = vmatpush1.bf16.msra.mxu0 %v854
        %1067 = vmatprep.subr.bf16.mxu0 0
        %1068 = vmatpush1.bf16.msra.mxu0 %v855
        %1069 = vmatprep.subr.bf16.mxu0 0
        %1070 = vmatpush1.bf16.msra.mxu0 %v856
        %1071 = vmatprep.subr.bf16.mxu0 0
        %1072 = vmatpush1.bf16.msra.mxu0 %v857
        %1073 = vmatprep.subr.bf16.mxu0 0
        %1074 = vmatpush1.bf16.msra.mxu0 %v858
        %1075 = vmatprep.subr.bf16.mxu0 0
        %1076 = vmatpush1.bf16.msra.mxu0 %v859
        %1077 = vmatprep.subr.bf16.mxu0 0
        %1078 = vmatpush1.bf16.msra.mxu0 %v860
        %1079 = vmatprep.subr.bf16.mxu0 0
        %1080 = vmatpush1.bf16.msra.mxu0 %v861
        %1081 = vmatprep.subr.bf16.mxu0 0
        %1082 = vmatpush1.bf16.msra.mxu0 %v862
        %1083 = vmatprep.subr.bf16.mxu0 0
        %1084 = vmatpush1.bf16.msra.mxu0 %v863
        %1085 = vmatprep.subr.bf16.mxu0 0
        %1086 = vmatpush1.bf16.msra.mxu0 %v864
        %1087 = vmatprep.subr.bf16.mxu0 0
        %1088 = vmatpush1.bf16.msra.mxu0 %v865
        %1089 = vmatprep.subr.bf16.mxu0 0
        %1090 = vmatpush1.bf16.msra.mxu0 %v866
        %1091 = vmatprep.mubr.bf16.mxu0 %v996
        %1092 = vmatmul.mubr.bf16.gmra.mrb[0].mxu0 %v995
        %v1093 = vpop.f32.mrb[0].mxu0
        %v1094 = vadd.f32 0.0, %v1093
        %v1095 = vpop.f32.mrb[0].mxu0
        %v1096 = vpop.f32.mrb[0].mxu0
        %v1097 = vadd.f32 0.0, %v1096
        %v1098 = vpop.f32.mrb[0].mxu0
        %1099 = vmatprep.mubr.bf16.mxu0 %v998
        %1100 = vmatmul.mubr.bf16.gmra.mrb[0].mxu0 %v997
        %v1101 = vpop.f32.mrb[0].mxu0
        %v1102 = vadd.f32 0.0, %v1101
        %v1103 = vpop.f32.mrb[0].mxu0
        %v1104 = vpop.f32.mrb[0].mxu0
        %v1105 = vadd.f32 0.0, %v1104
        %v1106 = vpop.f32.mrb[0].mxu0
        %1107 = vmatprep.mubr.bf16.mxu0 %v1000
        %1108 = vmatmul.mubr.bf16.gmra.mrb[0].mxu0 %v999
        %v1109 = vpop.f32.mrb[0].mxu0
        %v1110 = vadd.f32 0.0, %v1109
        %v1111 = vpop.f32.mrb[0].mxu0
        %v1112 = vpop.f32.mrb[0].mxu0
        %v1113 = vadd.f32 0.0, %v1112
        %v1114 = vpop.f32.mrb[0].mxu0
        %1115 = vmatprep.mubr.bf16.mxu0 %v1002
        %1116 = vmatmul.mubr.bf16.gmra.mrb[0].mxu0 %v1001
        %v1117 = vpop.f32.mrb[0].mxu0
        %v1118 = vadd.f32 0.0, %v1117
        %v1119 = vpop.f32.mrb[0].mxu0
        %v1120 = vpop.f32.mrb[0].mxu0
        %v1121 = vadd.f32 0.0, %v1120
        %v1122 = vpop.f32.mrb[0].mxu0
        %1123 = vmatprep.mubr.bf16.mxu0 %v1004
        %1124 = vmatmul.mubr.bf16.gmra.mrb[0].mxu0 %v1003
        %v1125 = vpop.f32.mrb[0].mxu0
        %v1126 = vadd.f32 0.0, %v1125
        %v1127 = vpop.f32.mrb[0].mxu0
        %v1128 = vpop.f32.mrb[0].mxu0
        %v1129 = vadd.f32 0.0, %v1128
        %v1130 = vpop.f32.mrb[0].mxu0
        %1131 = vmatprep.mubr.bf16.mxu0 %v1006
        %1132 = vmatmul.mubr.bf16.gmra.mrb[0].mxu0 %v1005
        %v1133 = vpop.f32.mrb[0].mxu0
        %v1134 = vadd.f32 0.0, %v1133
        %v1135 = vpop.f32.mrb[0].mxu0
        %v1136 = vpop.f32.mrb[0].mxu0
        %v1137 = vadd.f32 0.0, %v1136
        %v1138 = vpop.f32.mrb[0].mxu0
        %1139 = vmatprep.mubr.bf16.mxu0 %v1008
        %1140 = vmatmul.mubr.bf16.gmra.mrb[0].mxu0 %v1007
        %v1141 = vpop.f32.mrb[0].mxu0
        %v1142 = vadd.f32 0.0, %v1141
        %v1143 = vpop.f32.mrb[0].mxu0
        %v1144 = vpop.f32.mrb[0].mxu0
        %v1145 = vadd.f32 0.0, %v1144
        %v1146 = vpop.f32.mrb[0].mxu0
        %1147 = vmatprep.mubr.bf16.mxu0 %v1010
        %1148 = vmatmul.mubr.bf16.gmra.mrb[0].mxu0 %v1009
        %v1149 = vpop.f32.mrb[0].mxu0
        %v1150 = vadd.f32 0.0, %v1149
        %v1151 = vpop.f32.mrb[0].mxu0
        %v1152 = vpop.f32.mrb[0].mxu0
        %v1153 = vadd.f32 0.0, %v1152
        %v1154 = vpop.f32.mrb[0].mxu0
        %1155 = vmatprep.mubr.bf16.mxu0 %v1012
        %1156 = vmatmul.mubr.bf16.gmra.mrb[0].mxu0 %v1011
        %v1157 = vpop.f32.mrb[0].mxu0
        %v1158 = vadd.f32 0.0, %v1157
        %v1159 = vpop.f32.mrb[0].mxu0
        %v1160 = vpop.f32.mrb[0].mxu0
        %v1161 = vadd.f32 0.0, %v1160
        %v1162 = vpop.f32.mrb[0].mxu0
        %1163 = vmatprep.mubr.bf16.mxu0 %v1014
        %1164 = vmatmul.mubr.bf16.gmra.mrb[0].mxu0 %v1013
        %v1165 = vpop.f32.mrb[0].mxu0
        %v1166 = vadd.f32 0.0, %v1165
        %v1167 = vpop.f32.mrb[0].mxu0
        %v1168 = vpop.f32.mrb[0].mxu0
        %v1169 = vadd.f32 0.0, %v1168
        %v1170 = vpop.f32.mrb[0].mxu0
        %1171 = vmatprep.mubr.bf16.mxu0 %v1016
        %1172 = vmatmul.mubr.bf16.gmra.mrb[0].mxu0 %v1015
        %v1173 = vpop.f32.mrb[0].mxu0
        %v1174 = vadd.f32 0.0, %v1173
        %v1175 = vpop.f32.mrb[0].mxu0
        %v1176 = vpop.f32.mrb[0].mxu0
        %v1177 = vadd.f32 0.0, %v1176
        %v1178 = vpop.f32.mrb[0].mxu0
        %1179 = vmatprep.mubr.bf16.mxu0 %v1018
        %1180 = vmatmul.mubr.bf16.gmra.mrb[0].mxu0 %v1017
        %v1181 = vpop.f32.mrb[0].mxu0
        %v1182 = vadd.f32 0.0, %v1181
        %v1183 = vpop.f32.mrb[0].mxu0
        %v1184 = vpop.f32.mrb[0].mxu0
        %v1185 = vadd.f32 0.0, %v1184
        %v1186 = vpop.f32.mrb[0].mxu0
        %1187 = vmatprep.mubr.bf16.mxu0 %v1020
        %1188 = vmatmul.mubr.bf16.gmra.mrb[0].mxu0 %v1019
        %v1189 = vpop.f32.mrb[0].mxu0
        %v1190 = vadd.f32 0.0, %v1189
        %v1191 = vpop.f32.mrb[0].mxu0
        %v1192 = vpop.f32.mrb[0].mxu0
        %v1193 = vadd.f32 0.0, %v1192
        %v1194 = vpop.f32.mrb[0].mxu0
        %1195 = vmatprep.mubr.bf16.mxu0 %v1022
        %1196 = vmatmul.mubr.bf16.gmra.mrb[0].mxu0 %v1021
        %v1197 = vpop.f32.mrb[0].mxu0
        %v1198 = vadd.f32 0.0, %v1197
        %v1199 = vpop.f32.mrb[0].mxu0
        %v1200 = vpop.f32.mrb[0].mxu0
        %v1201 = vadd.f32 0.0, %v1200
        %v1202 = vpop.f32.mrb[0].mxu0
        %1203 = vmatprep.mubr.bf16.mxu0 %v1024
        %1204 = vmatmul.mubr.bf16.gmra.mrb[0].mxu0 %v1023
        %v1205 = vpop.f32.mrb[0].mxu0
        %v1206 = vadd.f32 0.0, %v1205
        %v1207 = vpop.f32.mrb[0].mxu0
        %v1208 = vpop.f32.mrb[0].mxu0
        %v1209 = vadd.f32 0.0, %v1208
        %v1210 = vpop.f32.mrb[0].mxu0
        %1211 = vmatprep.mubr.bf16.mxu0 %v1026
        %1212 = vmatmul.mubr.bf16.gmra.mrb[0].mxu0 %v1025
        %v1213 = vpop.f32.mrb[0].mxu0
        %v1214 = vadd.f32 0.0, %v1213
        %v1215 = vpop.f32.mrb[0].mxu0
        %v1216 = vpop.f32.mrb[0].mxu0
        %v1217 = vadd.f32 0.0, %v1216
        %v1218 = vpop.f32.mrb[0].mxu0
        %1219 = vdwg.mxu0
        %p1220 = scmp.eq.s32.totalorder %s27, 0
        // Predicated region
        $region83: #{jknet_forward.5} parent=77 // pred_check
          %p1221 = pneg %p1220
        $region84: #{jknet_forward.5} parent=77 // pred_check_branch
          %1223 = sbr.rel (%p1221) target = $region86
        $region85: #{jknet_forward.5} parent=77 // pred_region
          %1224 = vst [vmem:[#allocation2] sm:$0xff] %v1094
          %1225 = vst [vmem:[#allocation2 + $0x8] sm:$0xff] %v1097
          %1226 = vst [vmem:[#allocation2 + $0x10] sm:$0xff] %v1102
          %1227 = vst [vmem:[#allocation2 + $0x18] sm:$0xff] %v1105
          %1228 = vst [vmem:[#allocation2 + $0x20] sm:$0xff] %v1110
          %1229 = vst [vmem:[#allocation2 + $0x28] sm:$0xff] %v1113
          %1230 = vst [vmem:[#allocation2 + $0x30] sm:$0xff] %v1118
          %1231 = vst [vmem:[#allocation2 + $0x38] sm:$0xff] %v1121
          %1232 = vst [vmem:[#allocation2 + $0x40] sm:$0xff] %v1126
          %1233 = vst [vmem:[#allocation2 + $0x48] sm:$0xff] %v1129
          %1234 = vst [vmem:[#allocation2 + $0x50] sm:$0xff] %v1134
          %1235 = vst [vmem:[#allocation2 + $0x58] sm:$0xff] %v1137
          %1236 = vst [vmem:[#allocation2 + $0x60] sm:$0xff] %v1142
          %1237 = vst [vmem:[#allocation2 + $0x68] sm:$0xff] %v1145
          %1238 = vst [vmem:[#allocation2 + $0x70] sm:$0xff] %v1150
          %1239 = vst [vmem:[#allocation2 + $0x78] sm:$0xff] %v1153
          %1240 = vst [vmem:[#allocation2 + $0x80] sm:$0xff] %v1158
          %1241 = vst [vmem:[#allocation2 + $0x88] sm:$0xff] %v1161
          %1242 = vst [vmem:[#allocation2 + $0x90] sm:$0xff] %v1166
          %1243 = vst [vmem:[#allocation2 + $0x98] sm:$0xff] %v1169
          %1244 = vst [vmem:[#allocation2 + $0xa0] sm:$0xff] %v1174
          %1245 = vst [vmem:[#allocation2 + $0xa8] sm:$0xff] %v1177
          %1246 = vst [vmem:[#allocation2 + $0xb0] sm:$0xff] %v1182
          %1247 = vst [vmem:[#allocation2 + $0xb8] sm:$0xff] %v1185
          %1248 = vst [vmem:[#allocation2 + $0xc0] sm:$0xff] %v1190
          %1249 = vst [vmem:[#allocation2 + $0xc8] sm:$0xff] %v1193
          %1250 = vst [vmem:[#allocation2 + $0xd0] sm:$0xff] %v1198
          %1251 = vst [vmem:[#allocation2 + $0xd8] sm:$0xff] %v1201
          %1252 = vst [vmem:[#allocation2 + $0xe0] sm:$0xff] %v1206
          %1253 = vst [vmem:[#allocation2 + $0xe8] sm:$0xff] %v1209
          %1254 = vst [vmem:[#allocation2 + $0xf0] sm:$0xff] %v1214
          %1255 = vst [vmem:[#allocation2 + $0xf8] sm:$0xff] %v1217
        $region86: #{jknet_forward.5} parent=77 // pred_fallthru
          _
        %p1256 = scmp.gt.s32.totalorder %s27, 0
        // Predicated region
        $region87: #{jknet_forward.5} parent=77 // pred_check
          %p1257 = pneg %p1256
        $region88: #{jknet_forward.5} parent=77 // pred_check_branch
          %1259 = sbr.rel (%p1257) target = $region90
        $region89: #{jknet_forward.5} parent=77 // pred_region
          %v1260 = vld [vmem:[#allocation2] sm:$0xff]
          %v1261 = vld [vmem:[#allocation2 + $0x8] sm:$0xff]
          %v1262 = vld [vmem:[#allocation2 + $0x10] sm:$0xff]
          %v1263 = vld [vmem:[#allocation2 + $0x18] sm:$0xff]
          %v1264 = vld [vmem:[#allocation2 + $0x20] sm:$0xff]
          %v1265 = vld [vmem:[#allocation2 + $0x28] sm:$0xff]
          %v1266 = vld [vmem:[#allocation2 + $0x30] sm:$0xff]
          %v1267 = vld [vmem:[#allocation2 + $0x38] sm:$0xff]
          %v1268 = vld [vmem:[#allocation2 + $0x40] sm:$0xff]
          %v1269 = vld [vmem:[#allocation2 + $0x48] sm:$0xff]
          %v1270 = vld [vmem:[#allocation2 + $0x50] sm:$0xff]
          %v1271 = vld [vmem:[#allocation2 + $0x58] sm:$0xff]
          %v1272 = vld [vmem:[#allocation2 + $0x60] sm:$0xff]
          %v1273 = vld [vmem:[#allocation2 + $0x68] sm:$0xff]
          %v1274 = vld [vmem:[#allocation2 + $0x70] sm:$0xff]
          %v1275 = vld [vmem:[#allocation2 + $0x78] sm:$0xff]
          %v1276 = vld [vmem:[#allocation2 + $0x80] sm:$0xff]
          %v1277 = vld [vmem:[#allocation2 + $0x88] sm:$0xff]
          %v1278 = vld [vmem:[#allocation2 + $0x90] sm:$0xff]
          %v1279 = vld [vmem:[#allocation2 + $0x98] sm:$0xff]
          %v1280 = vld [vmem:[#allocation2 + $0xa0] sm:$0xff]
          %v1281 = vld [vmem:[#allocation2 + $0xa8] sm:$0xff]
          %v1282 = vld [vmem:[#allocation2 + $0xb0] sm:$0xff]
          %v1283 = vld [vmem:[#allocation2 + $0xb8] sm:$0xff]
          %v1284 = vld [vmem:[#allocation2 + $0xc0] sm:$0xff]
          %v1285 = vld [vmem:[#allocation2 + $0xc8] sm:$0xff]
          %v1286 = vld [vmem:[#allocation2 + $0xd0] sm:$0xff]
          %v1287 = vld [vmem:[#allocation2 + $0xd8] sm:$0xff]
          %v1288 = vld [vmem:[#allocation2 + $0xe0] sm:$0xff]
          %v1289 = vld [vmem:[#allocation2 + $0xe8] sm:$0xff]
          %v1290 = vld [vmem:[#allocation2 + $0xf0] sm:$0xff]
          %v1291 = vld [vmem:[#allocation2 + $0xf8] sm:$0xff]
          %v1292 = vadd.f32 %v1260, %v1094
          %v1293 = vadd.f32 %v1261, %v1097
          %v1294 = vadd.f32 %v1262, %v1102
          %v1295 = vadd.f32 %v1263, %v1105
          %v1296 = vadd.f32 %v1264, %v1110
          %v1297 = vadd.f32 %v1265, %v1113
          %v1298 = vadd.f32 %v1266, %v1118
          %v1299 = vadd.f32 %v1267, %v1121
          %v1300 = vadd.f32 %v1268, %v1126
          %v1301 = vadd.f32 %v1269, %v1129
          %v1302 = vadd.f32 %v1270, %v1134
          %v1303 = vadd.f32 %v1271, %v1137
          %v1304 = vadd.f32 %v1272, %v1142
          %v1305 = vadd.f32 %v1273, %v1145
          %v1306 = vadd.f32 %v1274, %v1150
          %v1307 = vadd.f32 %v1275, %v1153
          %v1308 = vadd.f32 %v1276, %v1158
          %v1309 = vadd.f32 %v1277, %v1161
          %v1310 = vadd.f32 %v1278, %v1166
          %v1311 = vadd.f32 %v1279, %v1169
          %v1312 = vadd.f32 %v1280, %v1174
          %v1313 = vadd.f32 %v1281, %v1177
          %v1314 = vadd.f32 %v1282, %v1182
          %v1315 = vadd.f32 %v1283, %v1185
          %v1316 = vadd.f32 %v1284, %v1190
          %v1317 = vadd.f32 %v1285, %v1193
          %v1318 = vadd.f32 %v1286, %v1198
          %v1319 = vadd.f32 %v1287, %v1201
          %v1320 = vadd.f32 %v1288, %v1206
          %v1321 = vadd.f32 %v1289, %v1209
          %v1322 = vadd.f32 %v1290, %v1214
          %v1323 = vadd.f32 %v1291, %v1217
          %1324 = vst [vmem:[#allocation2] sm:$0xff] %v1292
          %1325 = vst [vmem:[#allocation2 + $0x8] sm:$0xff] %v1293
          %1326 = vst [vmem:[#allocation2 + $0x10] sm:$0xff] %v1294
          %1327 = vst [vmem:[#allocation2 + $0x18] sm:$0xff] %v1295
          %1328 = vst [vmem:[#allocation2 + $0x20] sm:$0xff] %v1296
          %1329 = vst [vmem:[#allocation2 + $0x28] sm:$0xff] %v1297
          %1330 = vst [vmem:[#allocation2 + $0x30] sm:$0xff] %v1298
          %1331 = vst [vmem:[#allocation2 + $0x38] sm:$0xff] %v1299
          %1332 = vst [vmem:[#allocation2 + $0x40] sm:$0xff] %v1300
          %1333 = vst [vmem:[#allocation2 + $0x48] sm:$0xff] %v1301
          %1334 = vst [vmem:[#allocation2 + $0x50] sm:$0xff] %v1302
          %1335 = vst [vmem:[#allocation2 + $0x58] sm:$0xff] %v1303
          %1336 = vst [vmem:[#allocation2 + $0x60] sm:$0xff] %v1304
          %1337 = vst [vmem:[#allocation2 + $0x68] sm:$0xff] %v1305
          %1338 = vst [vmem:[#allocation2 + $0x70] sm:$0xff] %v1306
          %1339 = vst [vmem:[#allocation2 + $0x78] sm:$0xff] %v1307
          %1340 = vst [vmem:[#allocation2 + $0x80] sm:$0xff] %v1308
          %1341 = vst [vmem:[#allocation2 + $0x88] sm:$0xff] %v1309
          %1342 = vst [vmem:[#allocation2 + $0x90] sm:$0xff] %v1310
          %1343 = vst [vmem:[#allocation2 + $0x98] sm:$0xff] %v1311
          %1344 = vst [vmem:[#allocation2 + $0xa0] sm:$0xff] %v1312
          %1345 = vst [vmem:[#allocation2 + $0xa8] sm:$0xff] %v1313
          %1346 = vst [vmem:[#allocation2 + $0xb0] sm:$0xff] %v1314
          %1347 = vst [vmem:[#allocation2 + $0xb8] sm:$0xff] %v1315
          %1348 = vst [vmem:[#allocation2 + $0xc0] sm:$0xff] %v1316
          %1349 = vst [vmem:[#allocation2 + $0xc8] sm:$0xff] %v1317
          %1350 = vst [vmem:[#allocation2 + $0xd0] sm:$0xff] %v1318
          %1351 = vst [vmem:[#allocation2 + $0xd8] sm:$0xff] %v1319
          %1352 = vst [vmem:[#allocation2 + $0xe0] sm:$0xff] %v1320
          %1353 = vst [vmem:[#allocation2 + $0xe8] sm:$0xff] %v1321
          %1354 = vst [vmem:[#allocation2 + $0xf0] sm:$0xff] %v1322
          %1355 = vst [vmem:[#allocation2 + $0xf8] sm:$0xff] %v1323
        $region90: #{jknet_forward.5} parent=77 // pred_fallthru
          _
        %p1356 = scmp.eq.s32.totalorder %s27, 2
        // Predicated region
        $region91: #{jknet_forward.5} parent=77 // pred_check
          %p1357 = pneg %p1356
        $region92: #{jknet_forward.5} parent=77 // pred_check_branch
          %1359 = sbr.rel (%p1357) target = $region94
        $region93: #{jknet_forward.5} parent=77 // pred_region
          %v1360 = vld [vmem:[#allocation2] sm:$0xff]
          %v1361 = vld [vmem:[#allocation2 + $0x8] sm:$0xff]
          %v1362 = vld [vmem:[#allocation2 + $0x10] sm:$0xff]
          %v1363 = vld [vmem:[#allocation2 + $0x18] sm:$0xff]
          %v1364 = vld [vmem:[#allocation2 + $0x20] sm:$0xff]
          %v1365 = vld [vmem:[#allocation2 + $0x28] sm:$0xff]
          %v1366 = vld [vmem:[#allocation2 + $0x30] sm:$0xff]
          %v1367 = vld [vmem:[#allocation2 + $0x38] sm:$0xff]
          %v1368 = vld [vmem:[#allocation2 + $0x40] sm:$0xff]
          %v1369 = vld [vmem:[#allocation2 + $0x48] sm:$0xff]
          %v1370 = vld [vmem:[#allocation2 + $0x50] sm:$0xff]
          %v1371 = vld [vmem:[#allocation2 + $0x58] sm:$0xff]
          %v1372 = vld [vmem:[#allocation2 + $0x60] sm:$0xff]
          %v1373 = vld [vmem:[#allocation2 + $0x68] sm:$0xff]
          %v1374 = vld [vmem:[#allocation2 + $0x70] sm:$0xff]
          %v1375 = vld [vmem:[#allocation2 + $0x78] sm:$0xff]
          %v1376 = vld [vmem:[#allocation2 + $0x80] sm:$0xff]
          %v1377 = vld [vmem:[#allocation2 + $0x88] sm:$0xff]
          %v1378 = vld [vmem:[#allocation2 + $0x90] sm:$0xff]
          %v1379 = vld [vmem:[#allocation2 + $0x98] sm:$0xff]
          %v1380 = vld [vmem:[#allocation2 + $0xa0] sm:$0xff]
          %v1381 = vld [vmem:[#allocation2 + $0xa8] sm:$0xff]
          %v1382 = vld [vmem:[#allocation2 + $0xb0] sm:$0xff]
          %v1383 = vld [vmem:[#allocation2 + $0xb8] sm:$0xff]
          %v1384 = vld [vmem:[#allocation2 + $0xc0] sm:$0xff]
          %v1385 = vld [vmem:[#allocation2 + $0xc8] sm:$0xff]
          %v1386 = vld [vmem:[#allocation2 + $0xd0] sm:$0xff]
          %v1387 = vld [vmem:[#allocation2 + $0xd8] sm:$0xff]
          %v1388 = vld [vmem:[#allocation2 + $0xe0] sm:$0xff]
          %v1389 = vld [vmem:[#allocation2 + $0xe8] sm:$0xff]
          %v1390 = vld [vmem:[#allocation2 + $0xf0] sm:$0xff]
          %v1391 = vld [vmem:[#allocation2 + $0xf8] sm:$0xff]
          %v1392 = vld [vmem:[%s3] sm:$0x1]
          %v1394 = vlaneseq
          %v1395 = vshrl.u32 %v1394, 7
          %v1396 = vsub.s32 0, %v1395
          %v1397 = vrot.slane %v1392, %v1396
          %v1399 = vadd.f32 %v1360, %v1397
          %v1400 = vadd.f32 %v1361, %v1397
          %v1401 = vadd.f32 %v1362, %v1397
          %v1402 = vadd.f32 %v1363, %v1397
          %v1403 = vadd.f32 %v1364, %v1397
          %v1404 = vadd.f32 %v1365, %v1397
          %v1405 = vadd.f32 %v1366, %v1397
          %v1406 = vadd.f32 %v1367, %v1397
          %v1407 = vadd.f32 %v1368, %v1397
          %v1408 = vadd.f32 %v1369, %v1397
          %v1409 = vadd.f32 %v1370, %v1397
          %v1410 = vadd.f32 %v1371, %v1397
          %v1411 = vadd.f32 %v1372, %v1397
          %v1412 = vadd.f32 %v1373, %v1397
          %v1413 = vadd.f32 %v1374, %v1397
          %v1414 = vadd.f32 %v1375, %v1397
          %v1415 = vadd.f32 %v1376, %v1397
          %v1416 = vadd.f32 %v1377, %v1397
          %v1417 = vadd.f32 %v1378, %v1397
          %v1418 = vadd.f32 %v1379, %v1397
          %v1419 = vadd.f32 %v1380, %v1397
          %v1420 = vadd.f32 %v1381, %v1397
          %v1421 = vadd.f32 %v1382, %v1397
          %v1422 = vadd.f32 %v1383, %v1397
          %v1423 = vadd.f32 %v1384, %v1397
          %v1424 = vadd.f32 %v1385, %v1397
          %v1425 = vadd.f32 %v1386, %v1397
          %v1426 = vadd.f32 %v1387, %v1397
          %v1427 = vadd.f32 %v1388, %v1397
          %v1428 = vadd.f32 %v1389, %v1397
          %v1429 = vadd.f32 %v1390, %v1397
          %v1430 = vadd.f32 %v1391, %v1397
          %v1431 = vpack.c.bf16 %v1400, %v1399
          %v1432 = vpack.c.bf16 %v1402, %v1401
          %v1433 = vpack.c.bf16 %v1404, %v1403
          %v1434 = vpack.c.bf16 %v1406, %v1405
          %v1435 = vpack.c.bf16 %v1408, %v1407
          %v1436 = vpack.c.bf16 %v1410, %v1409
          %v1437 = vpack.c.bf16 %v1412, %v1411
          %v1438 = vpack.c.bf16 %v1414, %v1413
          %v1439 = vpack.c.bf16 %v1416, %v1415
          %v1440 = vpack.c.bf16 %v1418, %v1417
          %v1441 = vpack.c.bf16 %v1420, %v1419
          %v1442 = vpack.c.bf16 %v1422, %v1421
          %v1443 = vpack.c.bf16 %v1424, %v1423
          %v1444 = vpack.c.bf16 %v1426, %v1425
          %v1445 = vpack.c.bf16 %v1428, %v1427
          %v1446 = vpack.c.bf16 %v1430, %v1429
          %v1463 = vunpack.c.l.b16 %v1431
          %v1464 = vunpack.c.h.b16 %v1431
          %v1465 = vunpack.c.l.b16 %v1432
          %v1466 = vunpack.c.h.b16 %v1432
          %v1467 = vunpack.c.l.b16 %v1433
          %v1468 = vunpack.c.h.b16 %v1433
          %v1469 = vunpack.c.l.b16 %v1434
          %v1470 = vunpack.c.h.b16 %v1434
          %v1471 = vunpack.c.l.b16 %v1435
          %v1472 = vunpack.c.h.b16 %v1435
          %v1473 = vunpack.c.l.b16 %v1436
          %v1474 = vunpack.c.h.b16 %v1436
          %v1475 = vunpack.c.l.b16 %v1437
          %v1476 = vunpack.c.h.b16 %v1437
          %v1477 = vunpack.c.l.b16 %v1438
          %v1478 = vunpack.c.h.b16 %v1438
          %v1479 = vunpack.c.l.b16 %v1439
          %v1480 = vunpack.c.h.b16 %v1439
          %v1481 = vunpack.c.l.b16 %v1440
          %v1482 = vunpack.c.h.b16 %v1440
          %v1483 = vunpack.c.l.b16 %v1441
          %v1484 = vunpack.c.h.b16 %v1441
          %v1485 = vunpack.c.l.b16 %v1442
          %v1486 = vunpack.c.h.b16 %v1442
          %v1487 = vunpack.c.l.b16 %v1443
          %v1488 = vunpack.c.h.b16 %v1443
          %v1489 = vunpack.c.l.b16 %v1444
          %v1490 = vunpack.c.h.b16 %v1444
          %v1491 = vunpack.c.l.b16 %v1445
          %v1492 = vunpack.c.h.b16 %v1445
          %v1493 = vunpack.c.l.b16 %v1446
          %v1494 = vunpack.c.h.b16 %v1446
          %v1495 = vpack.c.b16 %v1463, %v1463
          %v1496 = vpack.c.b16 %v1464, %v1464
          %v1497 = vpack.c.b16 %v1465, %v1465
          %v1498 = vpack.c.b16 %v1466, %v1466
          %v1499 = vpack.c.b16 %v1467, %v1467
          %v1500 = vpack.c.b16 %v1468, %v1468
          %v1501 = vpack.c.b16 %v1469, %v1469
          %v1502 = vpack.c.b16 %v1470, %v1470
          %v1503 = vpack.c.b16 %v1471, %v1471
          %v1504 = vpack.c.b16 %v1472, %v1472
          %v1505 = vpack.c.b16 %v1473, %v1473
          %v1506 = vpack.c.b16 %v1474, %v1474
          %v1507 = vpack.c.b16 %v1475, %v1475
          %v1508 = vpack.c.b16 %v1476, %v1476
          %v1509 = vpack.c.b16 %v1477, %v1477
          %v1510 = vpack.c.b16 %v1478, %v1478
          %v1511 = vpack.c.b16 %v1479, %v1479
          %v1512 = vpack.c.b16 %v1480, %v1480
          %v1513 = vpack.c.b16 %v1481, %v1481
          %v1514 = vpack.c.b16 %v1482, %v1482
          %v1515 = vpack.c.b16 %v1483, %v1483
          %v1516 = vpack.c.b16 %v1484, %v1484
          %v1517 = vpack.c.b16 %v1485, %v1485
          %v1518 = vpack.c.b16 %v1486, %v1486
          %v1519 = vpack.c.b16 %v1487, %v1487
          %v1520 = vpack.c.b16 %v1488, %v1488
          %v1521 = vpack.c.b16 %v1489, %v1489
          %v1522 = vpack.c.b16 %v1490, %v1490
          %v1523 = vpack.c.b16 %v1491, %v1491
          %v1524 = vpack.c.b16 %v1492, %v1492
          %v1525 = vpack.c.b16 %v1493, %v1493
          %v1526 = vpack.c.b16 %v1494, %v1494
          %1559 = vst [vmem:[%s469] sm:$0xf] %v1495
          %1560 = vst [vmem:[%s469 + $0x4] sm:$0xf] %v1496
          %1561 = vst [vmem:[%s469 + $0x8] sm:$0xf] %v1497
          %1562 = vst [vmem:[%s469 + $0xc] sm:$0xf] %v1498
          %1563 = vst [vmem:[%s469 + $0x10] sm:$0xf] %v1499
          %1564 = vst [vmem:[%s469 + $0x14] sm:$0xf] %v1500
          %1565 = vst [vmem:[%s469 + $0x18] sm:$0xf] %v1501
          %1566 = vst [vmem:[%s469 + $0x1c] sm:$0xf] %v1502
          %1567 = vst [vmem:[%s469 + $0x20] sm:$0xf] %v1503
          %1568 = vst [vmem:[%s469 + $0x24] sm:$0xf] %v1504
          %1569 = vst [vmem:[%s469 + $0x28] sm:$0xf] %v1505
          %1570 = vst [vmem:[%s469 + $0x2c] sm:$0xf] %v1506
          %1571 = vst [vmem:[%s469 + $0x30] sm:$0xf] %v1507
          %1572 = vst [vmem:[%s469 + $0x34] sm:$0xf] %v1508
          %1573 = vst [vmem:[%s469 + $0x38] sm:$0xf] %v1509
          %1574 = vst [vmem:[%s469 + $0x3c] sm:$0xf] %v1510
          %1575 = vst [vmem:[%s469 + $0x40] sm:$0xf] %v1511
          %1576 = vst [vmem:[%s469 + $0x44] sm:$0xf] %v1512
          %1577 = vst [vmem:[%s469 + $0x48] sm:$0xf] %v1513
          %1578 = vst [vmem:[%s469 + $0x4c] sm:$0xf] %v1514
          %1579 = vst [vmem:[%s469 + $0x50] sm:$0xf] %v1515
          %1580 = vst [vmem:[%s469 + $0x54] sm:$0xf] %v1516
          %1581 = vst [vmem:[%s469 + $0x58] sm:$0xf] %v1517
          %1582 = vst [vmem:[%s469 + $0x5c] sm:$0xf] %v1518
          %1583 = vst [vmem:[%s469 + $0x60] sm:$0xf] %v1519
          %1584 = vst [vmem:[%s469 + $0x64] sm:$0xf] %v1520
          %1585 = vst [vmem:[%s469 + $0x68] sm:$0xf] %v1521
          %1586 = vst [vmem:[%s469 + $0x6c] sm:$0xf] %v1522
          %1587 = vst [vmem:[%s469 + $0x70] sm:$0xf] %v1523
          %1588 = vst [vmem:[%s469 + $0x74] sm:$0xf] %v1524
          %1589 = vst [vmem:[%s469 + $0x78] sm:$0xf] %v1525
          %1590 = vst [vmem:[%s469 + $0x7c] sm:$0xf] %v1526
          %v1591 = vld [vmem:[%s483] sm:$0xff]
          %v1592 = vld [vmem:[%s483 + $0x8] sm:$0xff]
          %v1593 = vld [vmem:[%s483 + $0x10] sm:$0xff]
          %v1594 = vld [vmem:[%s483 + $0x18] sm:$0xff]
          %v1595 = vld [vmem:[%s483 + $0x20] sm:$0xff]
          %v1596 = vld [vmem:[%s483 + $0x28] sm:$0xff]
          %v1597 = vld [vmem:[%s483 + $0x30] sm:$0xff]
          %v1598 = vld [vmem:[%s483 + $0x38] sm:$0xff]
          %v1599 = vld [vmem:[%s483 + $0x40] sm:$0xff]
          %v1600 = vld [vmem:[%s483 + $0x48] sm:$0xff]
          %v1601 = vld [vmem:[%s483 + $0x50] sm:$0xff]
          %v1602 = vld [vmem:[%s483 + $0x58] sm:$0xff]
          %v1603 = vld [vmem:[%s483 + $0x60] sm:$0xff]
          %v1604 = vld [vmem:[%s483 + $0x68] sm:$0xff]
          %v1605 = vld [vmem:[%s483 + $0x70] sm:$0xff]
          %v1606 = vld [vmem:[%s483 + $0x78] sm:$0xff]
          %v1607 = vld [vmem:[%s483 + $0x80] sm:$0xff]
          %v1608 = vld [vmem:[%s483 + $0x88] sm:$0xff]
          %v1609 = vld [vmem:[%s483 + $0x90] sm:$0xff]
          %v1610 = vld [vmem:[%s483 + $0x98] sm:$0xff]
          %v1611 = vld [vmem:[%s483 + $0xa0] sm:$0xff]
          %v1612 = vld [vmem:[%s483 + $0xa8] sm:$0xff]
          %v1613 = vld [vmem:[%s483 + $0xb0] sm:$0xff]
          %v1614 = vld [vmem:[%s483 + $0xb8] sm:$0xff]
          %v1615 = vld [vmem:[%s483 + $0xc0] sm:$0xff]
          %v1616 = vld [vmem:[%s483 + $0xc8] sm:$0xff]
          %v1617 = vld [vmem:[%s483 + $0xd0] sm:$0xff]
          %v1618 = vld [vmem:[%s483 + $0xd8] sm:$0xff]
          %v1619 = vld [vmem:[%s483 + $0xe0] sm:$0xff]
          %v1620 = vld [vmem:[%s483 + $0xe8] sm:$0xff]
          %v1621 = vld [vmem:[%s483 + $0xf0] sm:$0xff]
          %v1622 = vld [vmem:[%s483 + $0xf8] sm:$0xff]
          %v1623 = vld [vmem:[%s4] sm:$0xf]
          %v1624 = vld [vmem:[%s4 + $0x4] sm:$0xf]
          %v1625 = vld [vmem:[%s4 + $0x8] sm:$0xf]
          %v1626 = vld [vmem:[%s4 + $0xc] sm:$0xf]
          %v1627 = vld [vmem:[%s4 + $0x10] sm:$0xf]
          %v1628 = vld [vmem:[%s4 + $0x14] sm:$0xf]
          %v1629 = vld [vmem:[%s4 + $0x18] sm:$0xf]
          %v1630 = vld [vmem:[%s4 + $0x1c] sm:$0xf]
          %v1631 = vld [vmem:[%s4 + $0x20] sm:$0xf]
          %v1632 = vld [vmem:[%s4 + $0x24] sm:$0xf]
          %v1633 = vld [vmem:[%s4 + $0x28] sm:$0xf]
          %v1634 = vld [vmem:[%s4 + $0x2c] sm:$0xf]
          %v1635 = vld [vmem:[%s4 + $0x30] sm:$0xf]
          %v1636 = vld [vmem:[%s4 + $0x34] sm:$0xf]
          %v1637 = vld [vmem:[%s4 + $0x38] sm:$0xf]
          %v1638 = vld [vmem:[%s4 + $0x3c] sm:$0xf]
          %v1655 = vunpack.c.l.b16 %v1623
          %v1656 = vunpack.c.l.b16 %v1624
          %v1657 = vunpack.c.l.b16 %v1625
          %v1658 = vunpack.c.l.b16 %v1626
          %v1659 = vunpack.c.l.b16 %v1627
          %v1660 = vunpack.c.l.b16 %v1628
          %v1661 = vunpack.c.l.b16 %v1629
          %v1662 = vunpack.c.l.b16 %v1630
          %v1663 = vunpack.c.l.b16 %v1631
          %v1664 = vunpack.c.l.b16 %v1632
          %v1665 = vunpack.c.l.b16 %v1633
          %v1666 = vunpack.c.l.b16 %v1634
          %v1667 = vunpack.c.l.b16 %v1635
          %v1668 = vunpack.c.l.b16 %v1636
          %v1669 = vunpack.c.l.b16 %v1637
          %v1670 = vunpack.c.l.b16 %v1638
          %v1671 = vpack.c.b16 %v1656, %v1655
          %v1672 = vpack.c.b16 %v1658, %v1657
          %v1673 = vpack.c.b16 %v1660, %v1659
          %v1674 = vpack.c.b16 %v1662, %v1661
          %v1675 = vpack.c.b16 %v1664, %v1663
          %v1676 = vpack.c.b16 %v1666, %v1665
          %v1677 = vpack.c.b16 %v1668, %v1667
          %v1678 = vpack.c.b16 %v1670, %v1669
          %1687 = vmatprep.subr.bf16.mxu0 0
          %1688 = vmatpush1.bf16.msra.mxu0 %v1671
          %1689 = vmatprep.subr.bf16.mxu0 0
          %1690 = vmatpush1.bf16.msra.mxu0 %v1672
          %1691 = vmatprep.subr.bf16.mxu0 0
          %1692 = vmatpush1.bf16.msra.mxu0 %v1673
          %1693 = vmatprep.subr.bf16.mxu0 0
          %1694 = vmatpush1.bf16.msra.mxu0 %v1674
          %1695 = vmatprep.subr.bf16.mxu0 0
          %1696 = vmatpush1.bf16.msra.mxu0 %v1675
          %1697 = vmatprep.subr.bf16.mxu0 0
          %1698 = vmatpush1.bf16.msra.mxu0 %v1676
          %1699 = vmatprep.subr.bf16.mxu0 0
          %1700 = vmatpush1.bf16.msra.mxu0 %v1677
          %1701 = vmatprep.subr.bf16.mxu0 0
          %1702 = vmatpush1.bf16.msra.mxu0 %v1678
          %1703 = vmatprep.subr.bf16.mxu0 0
          %1704 = vmatpush1.bf16.msra.mxu0 0
          %1705 = vmatprep.subr.bf16.mxu0 0
          %1706 = vmatpush1.bf16.msra.mxu0 0
          %1707 = vmatprep.subr.bf16.mxu0 0
          %1708 = vmatpush1.bf16.msra.mxu0 0
          %1709 = vmatprep.subr.bf16.mxu0 0
          %1710 = vmatpush1.bf16.msra.mxu0 0
          %1711 = vmatprep.subr.bf16.mxu0 0
          %1712 = vmatpush1.bf16.msra.mxu0 0
          %1713 = vmatprep.subr.bf16.mxu0 0
          %1714 = vmatpush1.bf16.msra.mxu0 0
          %1715 = vmatprep.subr.bf16.mxu0 0
          %1716 = vmatpush1.bf16.msra.mxu0 0
          %1717 = vmatprep.subr.bf16.mxu0 0
          %1718 = vmatpush1.bf16.msra.mxu0 0
          %1719 = vmatprep.mubr.bf16.mxu0 0
          %1720 = vmatmul.mubr.bf16.gmra.mrb[0].mxu0 %v1431
          %v1721 = vpop.f32.mrb[0].mxu0
          %v1722 = vadd.f32 0.0, %v1721
          %v1723 = vpop.f32.mrb[0].mxu0
          %v1724 = vpop.f32.mrb[0].mxu0
          %v1725 = vadd.f32 0.0, %v1724
          %v1726 = vpop.f32.mrb[0].mxu0
          %1727 = vmatprep.mubr.bf16.mxu0 0
          %1728 = vmatmul.mubr.bf16.gmra.mrb[0].mxu0 %v1432
          %v1729 = vpop.f32.mrb[0].mxu0
          %v1730 = vadd.f32 0.0, %v1729
          %v1731 = vpop.f32.mrb[0].mxu0
          %v1732 = vpop.f32.mrb[0].mxu0
          %v1733 = vadd.f32 0.0, %v1732
          %v1734 = vpop.f32.mrb[0].mxu0
          %1735 = vmatprep.mubr.bf16.mxu0 0
          %1736 = vmatmul.mubr.bf16.gmra.mrb[0].mxu0 %v1433
          %v1737 = vpop.f32.mrb[0].mxu0
          %v1738 = vadd.f32 0.0, %v1737
          %v1739 = vpop.f32.mrb[0].mxu0
          %v1740 = vpop.f32.mrb[0].mxu0
          %v1741 = vadd.f32 0.0, %v1740
          %v1742 = vpop.f32.mrb[0].mxu0
          %1743 = vmatprep.mubr.bf16.mxu0 0
          %1744 = vmatmul.mubr.bf16.gmra.mrb[0].mxu0 %v1434
          %v1745 = vpop.f32.mrb[0].mxu0
          %v1746 = vadd.f32 0.0, %v1745
          %v1747 = vpop.f32.mrb[0].mxu0
          %v1748 = vpop.f32.mrb[0].mxu0
          %v1749 = vadd.f32 0.0, %v1748
          %v1750 = vpop.f32.mrb[0].mxu0
          %1751 = vmatprep.mubr.bf16.mxu0 0
          %1752 = vmatmul.mubr.bf16.gmra.mrb[0].mxu0 %v1435
          %v1753 = vpop.f32.mrb[0].mxu0
          %v1754 = vadd.f32 0.0, %v1753
          %v1755 = vpop.f32.mrb[0].mxu0
          %v1756 = vpop.f32.mrb[0].mxu0
          %v1757 = vadd.f32 0.0, %v1756
          %v1758 = vpop.f32.mrb[0].mxu0
          %1759 = vmatprep.mubr.bf16.mxu0 0
          %1760 = vmatmul.mubr.bf16.gmra.mrb[0].mxu0 %v1436
          %v1761 = vpop.f32.mrb[0].mxu0
          %v1762 = vadd.f32 0.0, %v1761
          %v1763 = vpop.f32.mrb[0].mxu0
          %v1764 = vpop.f32.mrb[0].mxu0
          %v1765 = vadd.f32 0.0, %v1764
          %v1766 = vpop.f32.mrb[0].mxu0
          %1767 = vmatprep.mubr.bf16.mxu0 0
          %1768 = vmatmul.mubr.bf16.gmra.mrb[0].mxu0 %v1437
          %v1769 = vpop.f32.mrb[0].mxu0
          %v1770 = vadd.f32 0.0, %v1769
          %v1771 = vpop.f32.mrb[0].mxu0
          %v1772 = vpop.f32.mrb[0].mxu0
          %v1773 = vadd.f32 0.0, %v1772
          %v1774 = vpop.f32.mrb[0].mxu0
          %1775 = vmatprep.mubr.bf16.mxu0 0
          %1776 = vmatmul.mubr.bf16.gmra.mrb[0].mxu0 %v1438
          %v1777 = vpop.f32.mrb[0].mxu0
          %v1778 = vadd.f32 0.0, %v1777
          %v1779 = vpop.f32.mrb[0].mxu0
          %v1780 = vpop.f32.mrb[0].mxu0
          %v1781 = vadd.f32 0.0, %v1780
          %v1782 = vpop.f32.mrb[0].mxu0
          %1783 = vmatprep.mubr.bf16.mxu0 0
          %1784 = vmatmul.mubr.bf16.gmra.mrb[0].mxu0 %v1439
          %v1785 = vpop.f32.mrb[0].mxu0
          %v1786 = vadd.f32 0.0, %v1785
          %v1787 = vpop.f32.mrb[0].mxu0
          %v1788 = vpop.f32.mrb[0].mxu0
          %v1789 = vadd.f32 0.0, %v1788
          %v1790 = vpop.f32.mrb[0].mxu0
          %1791 = vmatprep.mubr.bf16.mxu0 0
          %1792 = vmatmul.mubr.bf16.gmra.mrb[0].mxu0 %v1440
          %v1793 = vpop.f32.mrb[0].mxu0
          %v1794 = vadd.f32 0.0, %v1793
          %v1795 = vpop.f32.mrb[0].mxu0
          %v1796 = vpop.f32.mrb[0].mxu0
          %v1797 = vadd.f32 0.0, %v1796
          %v1798 = vpop.f32.mrb[0].mxu0
          %1799 = vmatprep.mubr.bf16.mxu0 0
          %1800 = vmatmul.mubr.bf16.gmra.mrb[0].mxu0 %v1441
          %v1801 = vpop.f32.mrb[0].mxu0
          %v1802 = vadd.f32 0.0, %v1801
          %v1803 = vpop.f32.mrb[0].mxu0
          %v1804 = vpop.f32.mrb[0].mxu0
          %v1805 = vadd.f32 0.0, %v1804
          %v1806 = vpop.f32.mrb[0].mxu0
          %1807 = vmatprep.mubr.bf16.mxu0 0
          %1808 = vmatmul.mubr.bf16.gmra.mrb[0].mxu0 %v1442
          %v1809 = vpop.f32.mrb[0].mxu0
          %v1810 = vadd.f32 0.0, %v1809
          %v1811 = vpop.f32.mrb[0].mxu0
          %v1812 = vpop.f32.mrb[0].mxu0
          %v1813 = vadd.f32 0.0, %v1812
          %v1814 = vpop.f32.mrb[0].mxu0
          %1815 = vmatprep.mubr.bf16.mxu0 0
          %1816 = vmatmul.mubr.bf16.gmra.mrb[0].mxu0 %v1443
          %v1817 = vpop.f32.mrb[0].mxu0
          %v1818 = vadd.f32 0.0, %v1817
          %v1819 = vpop.f32.mrb[0].mxu0
          %v1820 = vpop.f32.mrb[0].mxu0
          %v1821 = vadd.f32 0.0, %v1820
          %v1822 = vpop.f32.mrb[0].mxu0
          %1823 = vmatprep.mubr.bf16.mxu0 0
          %1824 = vmatmul.mubr.bf16.gmra.mrb[0].mxu0 %v1444
          %v1825 = vpop.f32.mrb[0].mxu0
          %v1826 = vadd.f32 0.0, %v1825
          %v1827 = vpop.f32.mrb[0].mxu0
          %v1828 = vpop.f32.mrb[0].mxu0
          %v1829 = vadd.f32 0.0, %v1828
          %v1830 = vpop.f32.mrb[0].mxu0
          %1831 = vmatprep.mubr.bf16.mxu0 0
          %1832 = vmatmul.mubr.bf16.gmra.mrb[0].mxu0 %v1445
          %v1833 = vpop.f32.mrb[0].mxu0
          %v1834 = vadd.f32 0.0, %v1833
          %v1835 = vpop.f32.mrb[0].mxu0
          %v1836 = vpop.f32.mrb[0].mxu0
          %v1837 = vadd.f32 0.0, %v1836
          %v1838 = vpop.f32.mrb[0].mxu0
          %1839 = vmatprep.mubr.bf16.mxu0 0
          %1840 = vmatmul.mubr.bf16.gmra.mrb[0].mxu0 %v1446
          %v1841 = vpop.f32.mrb[0].mxu0
          %v1842 = vadd.f32 0.0, %v1841
          %v1843 = vpop.f32.mrb[0].mxu0
          %v1844 = vpop.f32.mrb[0].mxu0
          %v1845 = vadd.f32 0.0, %v1844
          %v1846 = vpop.f32.mrb[0].mxu0
          %1847 = vdwg.mxu0
          %v1848 = vadd.f32 %v1591, %v1722
          %v1849 = vadd.f32 %v1592, %v1725
          %v1850 = vadd.f32 %v1593, %v1730
          %v1851 = vadd.f32 %v1594, %v1733
          %v1852 = vadd.f32 %v1595, %v1738
          %v1853 = vadd.f32 %v1596, %v1741
          %v1854 = vadd.f32 %v1597, %v1746
          %v1855 = vadd.f32 %v1598, %v1749
          %v1856 = vadd.f32 %v1599, %v1754
          %v1857 = vadd.f32 %v1600, %v1757
          %v1858 = vadd.f32 %v1601, %v1762
          %v1859 = vadd.f32 %v1602, %v1765
          %v1860 = vadd.f32 %v1603, %v1770
          %v1861 = vadd.f32 %v1604, %v1773
          %v1862 = vadd.f32 %v1605, %v1778
          %v1863 = vadd.f32 %v1606, %v1781
          %v1864 = vadd.f32 %v1607, %v1786
          %v1865 = vadd.f32 %v1608, %v1789
          %v1866 = vadd.f32 %v1609, %v1794
          %v1867 = vadd.f32 %v1610, %v1797
          %v1868 = vadd.f32 %v1611, %v1802
          %v1869 = vadd.f32 %v1612, %v1805
          %v1870 = vadd.f32 %v1613, %v1810
          %v1871 = vadd.f32 %v1614, %v1813
          %v1872 = vadd.f32 %v1615, %v1818
          %v1873 = vadd.f32 %v1616, %v1821
          %v1874 = vadd.f32 %v1617, %v1826
          %v1875 = vadd.f32 %v1618, %v1829
          %v1876 = vadd.f32 %v1619, %v1834
          %v1877 = vadd.f32 %v1620, %v1837
          %v1878 = vadd.f32 %v1621, %v1842
          %v1879 = vadd.f32 %v1622, %v1845
          %1880 = vst [vmem:[%s490] sm:$0xff] %v1848
          %1881 = vst [vmem:[%s490 + $0x8] sm:$0xff] %v1849
          %1882 = vst [vmem:[%s490 + $0x10] sm:$0xff] %v1850
          %1883 = vst [vmem:[%s490 + $0x18] sm:$0xff] %v1851
          %1884 = vst [vmem:[%s490 + $0x20] sm:$0xff] %v1852
          %1885 = vst [vmem:[%s490 + $0x28] sm:$0xff] %v1853
          %1886 = vst [vmem:[%s490 + $0x30] sm:$0xff] %v1854
          %1887 = vst [vmem:[%s490 + $0x38] sm:$0xff] %v1855
          %1888 = vst [vmem:[%s490 + $0x40] sm:$0xff] %v1856
          %1889 = vst [vmem:[%s490 + $0x48] sm:$0xff] %v1857
          %1890 = vst [vmem:[%s490 + $0x50] sm:$0xff] %v1858
          %1891 = vst [vmem:[%s490 + $0x58] sm:$0xff] %v1859
          %1892 = vst [vmem:[%s490 + $0x60] sm:$0xff] %v1860
          %1893 = vst [vmem:[%s490 + $0x68] sm:$0xff] %v1861
          %1894 = vst [vmem:[%s490 + $0x70] sm:$0xff] %v1862
          %1895 = vst [vmem:[%s490 + $0x78] sm:$0xff] %v1863
          %1896 = vst [vmem:[%s490 + $0x80] sm:$0xff] %v1864
          %1897 = vst [vmem:[%s490 + $0x88] sm:$0xff] %v1865
          %1898 = vst [vmem:[%s490 + $0x90] sm:$0xff] %v1866
          %1899 = vst [vmem:[%s490 + $0x98] sm:$0xff] %v1867
          %1900 = vst [vmem:[%s490 + $0xa0] sm:$0xff] %v1868
          %1901 = vst [vmem:[%s490 + $0xa8] sm:$0xff] %v1869
          %1902 = vst [vmem:[%s490 + $0xb0] sm:$0xff] %v1870
          %1903 = vst [vmem:[%s490 + $0xb8] sm:$0xff] %v1871
          %1904 = vst [vmem:[%s490 + $0xc0] sm:$0xff] %v1872
          %1905 = vst [vmem:[%s490 + $0xc8] sm:$0xff] %v1873
          %1906 = vst [vmem:[%s490 + $0xd0] sm:$0xff] %v1874
          %1907 = vst [vmem:[%s490 + $0xd8] sm:$0xff] %v1875
          %1908 = vst [vmem:[%s490 + $0xe0] sm:$0xff] %v1876
          %1909 = vst [vmem:[%s490 + $0xe8] sm:$0xff] %v1877
          %1910 = vst [vmem:[%s490 + $0xf0] sm:$0xff] %v1878
          %1911 = vst [vmem:[%s490 + $0xf8] sm:$0xff] %v1879
        $region94: #{jknet_forward.5} parent=77 // pred_fallthru
          _
        %s1912 = sand.u32 %s180, 1
        %s1913 = scalar_lea.sflag [#allocation5], %s1912
        %s1914 = sand.u32 %s180, 1
        %s1915 = smul.addr %s1914, 128
        %s1916 = scalar_lea.vmem [#allocation4], %s1915
        %s1917 = smul.u32 32, %s26
        %p1918 = scmp.lt.s32.totalorder %s1917, 95
        %s1919 = scalar_select %p1918, %s1917, 95
        %s1920 = smul.addr %s1919, 8
        %s1921 = scalar_lea.vmem %s7, %s1920
        // Predicated region
        $region95: #{jknet_forward.5} parent=77 // pred_check
          %p1922 = pneg %p190
        $region96: #{jknet_forward.5} parent=77 // pred_check_branch
          %1924 = sbr.rel (%p1922) target = $region98
        $region97: #{jknet_forward.5} parent=77 // pred_region
          %s1925 = smul.u32 32, %s26
          %s1927 = ssub.s32 2048, 2048
          %1928 = vsyncadd %s1913, %s1927
          %s1929 = smul.addr %s1925, 64
          %s1930 = scalar_lea.hbm %s6, %s1929
          %s1931 = sshll.u32 %s1916, 4
          %s1932 = int_to_ptr.vmem [resolvable:$true] %s1931
          %1937 = dma.vmem_to_hbm [thread:$0]  %s1932, 2048, %s1930, %s1913, 64, 64, 4
        $region98: #{jknet_forward.5} parent=77 // pred_fallthru
          _
        // Predicated region
        $region99: #{jknet_forward.5} parent=77 // pred_check
          %p1938 = pneg %p216
        $region100: #{jknet_forward.5} parent=77 // pred_check_branch
          %1940 = sbr.rel (%p1938) target = $region102
        $region101: #{jknet_forward.5} parent=77 // pred_region
          %s1941 = smul.u32 32, %s26
        $region102: #{jknet_forward.5} parent=77 // pred_fallthru
          _
      $region78: #{jknet_forward.5} parent=5 // pred_fallthru
        _
      %p1942 = scmp.le.s32.totalorder 2, %s17
      // Predicated region
      $region103: #{jknet_forward.5} parent=5 // pred_check
        %p1943 = pneg %p1942
      $region104: #{jknet_forward.5} parent=5 // pred_check_branch
        %1945 = sbr.rel (%p1943) target = $region106
      $region105: #{jknet_forward.5} parent=5 // pred_region
        %s1946 = ssub.s32 %s17, 2
        // Predicated region
        $region107: #{jknet_forward.5} parent=105 // pred_check
          %p1947 = pneg %p196
        $region108: #{jknet_forward.5} parent=105 // pred_check_branch
          %1949 = sbr.rel (%p1947) target = $region110
        $region109: #{jknet_forward.5} parent=105 // pred_region
          %s1950 = sand.u32 %s181, 1
          %s1951 = scalar_lea.sflag [#allocation5], %s1950
          %s1952 = sand.u32 %s181, 1
          %s1953 = smul.addr %s1952, 128
          %s1954 = scalar_lea.vmem [#allocation4], %s1953
          %1955 = dma.done %s1951, 2048
        $region110: #{jknet_forward.5} parent=105 // pred_fallthru
          _
        // Predicated region
        $region111: #{jknet_forward.5} parent=105 // pred_check
          %p1956 = pneg %p222
        $region112: #{jknet_forward.5} parent=105 // pred_check_branch
          %1958 = sbr.rel (%p1956) target = $region114
        $region113: #{jknet_forward.5} parent=105 // pred_region
          %s1959 = smul.u32 32, %s28
          %p1960 = scmp.lt.s32.totalorder %s1959, 95
          %s1961 = scalar_select %p1960, %s1959, 95
          %s1962 = smul.addr %s1961, 8
          %s1963 = scalar_lea.vmem %s7, %s1962
        $region114: #{jknet_forward.5} parent=105 // pred_fallthru
          _
      $region106: #{jknet_forward.5} parent=5 // pred_fallthru
        _
    $region6: #{jknet_forward.5} parent=1 // loop_footer
      %s21 = sadd.s32 1, %s17
    $region7: #{jknet_forward.5} parent=1 // loop_footer_branch
      %16 = sbr.rel target = $region3
    $region8: #{jknet_forward.5} parent=1 // loop_exit
      _
    %1964 = vsyncpa [#allocation5], 1
    %s1965 = scalar_lea.sflag [#allocation5], 1
    %1966 = vsyncpa %s1965, 1

// kernel: jknet_forward.3
$region0: #{jknet_forward.3}
  #allocation0 [shape = 'u32[]', space=smem, size = 0x4, offset = 0x4, fixed_abs, tag = 'smem constant byte address 0x4 - core index']
  #allocation1 [shape = 'u32[144,128]{1,0:T(1,128)}', space=vmem, size = 0x12000, scoped, tag = 'internal scratch']
  #allocation2 [shape = 'f32[256,128]{1,0:T(8,128)}', space=vmem, size = 0x20000, scoped, tag = 'scratch operand']
  %s0 = inlined_call_operand.vmem [shape: bf16[768,768], index: 0, kind: input, shape index: {}]
  %s1 = inlined_call_operand.vmem [shape: bf16[768,128], index: 1, kind: input, shape index: {}]
  %s2 = inlined_call_operand.vmem [shape: bf16[128,128], index: 2, kind: input, shape index: {}]
  %s3 = inlined_call_operand.vmem [shape: f32[1,128], index: 3, kind: input, shape index: {}]
  %s4 = inlined_call_operand.vmem [shape: bf16[128,128], index: 4, kind: input, shape index: {}]
  %s5 = inlined_call_operand.vmem [shape: f32[768,128], index: 5, kind: input, shape index: {}, may-alias: {5,7}]
  %s6 = inlined_call_operand.vmem [shape: bf16[768,128], index: 6, kind: output, shape index: {0}]
  %s7 = inlined_call_operand.vmem [shape: f32[768,128], index: 7, kind: output, shape index: {1}, may-alias: {5,7}]
  %8 = xla_tuple %s6, %s7
  %s9 = sld [smem:[#allocation0]]
  $region115: #{jknet_forward.3} parent=0
    _
  %s11 = ssub.s32 1, %s9
  %s12 = scalar_select 0, %s11, %s9
  $region1: #{jknet_forward.3} parent=0
    #allocation3 [shape = 'u8[262144]{0}', space=vmem, size = 0x40000, scoped, tag = 'input window, operand 0']
    loop: start=0, step=1, limit=11
    $region2: #{jknet_forward.3} parent=1 // loop_pre_header
      _
    $region3: #{jknet_forward.3} parent=1 // loop_header
      %s14 = sphi 0, %s18
      %p15 = scmp.ge.s32.totalorder %s14, 11
      %s21 = sphi 0, %s33
      %s22 = sphi 0, %s29
      %s23 = sphi 0, %s21
      %s24 = sphi 0, %s22
      %s25 = sphi 0, %s23
      %s26 = sphi 0, %s24
      %s38 = sphi 0, %s40
      %s41 = sphi 0, %s38
      %s42 = sphi 0, %s41
      %s58 = sphi 0, %s42
      %s62 = sphi 0, %s62
      %s64 = sphi 0, %s62
      %s65 = sphi 0, %s64
      %s79 = sphi 0, %s65
      %s83 = sphi 0, %s83
      %s85 = sphi 0, %s83
      %s86 = sphi 0, %s85
      %s100 = sphi 0, %s86
      %s104 = sphi 0, %s104
      %s106 = sphi 0, %s104
      %s107 = sphi 0, %s106
      %s121 = sphi 0, %s107
      %s125 = sphi 0, %s125
      %s127 = sphi 0, %s125
      %s128 = sphi 0, %s127
      %s142 = sphi 0, %s128
      %s148 = sphi 0, %s150
      %s151 = sphi 0, %s148
      %s152 = sphi 0, %s151
      %s168 = sphi 0, %s152
      %s174 = sphi 0, %s176
      %s177 = sphi 0, %s174
      %s178 = sphi 0, %s177
      %s194 = sphi 0, %s178
      %s200 = sphi 0, %s202
      %s203 = sphi 0, %s200
      %s204 = sphi 0, %s203
      %s220 = sphi 0, %s204
    $region4: #{jknet_forward.3} parent=1 // loop_header_branch
      %17 = sbr.rel (%p15) target = $region8
    $region5: #{jknet_forward.3} parent=1 // loop_body
      %s19 = ssub.s32 %s14, 1
      %s20 = ssub.s32 %s14, 2
      %s27 = sadd.s32 1, %s22
      %p28 = scmp.ge.s32.totalorder %s27, 3
      %s29 = scalar_select %p28, 0, %s27
      %s30 = sadd.s32 1, %s21
      %s31 = scalar_select %p28, %s30, %s21
      %p32 = scmp.ge.s32.totalorder %s31, 3
      %s33 = scalar_select %p32, 0, %s31
      %s34 = ssub.s32 %s21, %s33
      %s35 = ssub.s32 %s22, %s29
      %s36 = sor.u32 %s34, %s35
      %p37 = scmp.eq.s32.totalorder %s36, 0
      %s39 = sadd.s32 %s38, 1
      %s40 = scalar_select %p37, %s38, %s39
      %p43 = pneg %p37
      %p44 = scmp.eq.s32.totalorder %s14, 8
      %p45 = por %p43, %p44
      %p46 = scmp.ne.s32.totalorder %s38, %s41
      %p47 = scmp.eq.s32.totalorder %s14, 0
      %p48 = por %p46, %p47
      %p49 = scmp.ne.s32.totalorder %s38, %s41
      %p50 = scmp.eq.s32.totalorder %s19, 8
      %p51 = por %p49, %p50
      %p52 = scmp.ne.s32.totalorder %s41, %s42
      %p53 = scmp.eq.s32.totalorder %s19, 0
      %p54 = por %p52, %p53
      %p55 = scmp.ne.s32.totalorder %s41, %s42
      %p56 = scmp.eq.s32.totalorder %s20, 8
      %p57 = por %p55, %p56
      %p59 = scmp.ne.s32.totalorder %s42, %s58
      %p60 = scmp.eq.s32.totalorder %s20, 0
      %p61 = por %p59, %p60
      %s63 = sadd.s32 %s62, 1
      %p66 = scmp.eq.s32.totalorder %s14, 8
      %p67 = scmp.ne.s32.totalorder %s62, %s64
      %p68 = scmp.eq.s32.totalorder %s14, 0
      %p69 = por %p67, %p68
      %p70 = scmp.ne.s32.totalorder %s62, %s64
      %p71 = scmp.eq.s32.totalorder %s19, 8
      %p72 = por %p70, %p71
      %p73 = scmp.ne.s32.totalorder %s64, %s65
      %p74 = scmp.eq.s32.totalorder %s19, 0
      %p75 = por %p73, %p74
      %p76 = scmp.ne.s32.totalorder %s64, %s65
      %p77 = scmp.eq.s32.totalorder %s20, 8
      %p78 = por %p76, %p77
      %p80 = scmp.ne.s32.totalorder %s65, %s79
      %p81 = scmp.eq.s32.totalorder %s20, 0
      %p82 = por %p80, %p81
      %s84 = sadd.s32 %s83, 1
      %p87 = scmp.eq.s32.totalorder %s14, 8
      %p88 = scmp.ne.s32.totalorder %s83, %s85
      %p89 = scmp.eq.s32.totalorder %s14, 0
      %p90 = por %p88, %p89
      %p91 = scmp.ne.s32.totalorder %s83, %s85
      %p92 = scmp.eq.s32.totalorder %s19, 8
      %p93 = por %p91, %p92
      %p94 = scmp.ne.s32.totalorder %s85, %s86
      %p95 = scmp.eq.s32.totalorder %s19, 0
      %p96 = por %p94, %p95
      %p97 = scmp.ne.s32.totalorder %s85, %s86
      %p98 = scmp.eq.s32.totalorder %s20, 8
      %p99 = por %p97, %p98
      %p101 = scmp.ne.s32.totalorder %s86, %s100
      %p102 = scmp.eq.s32.totalorder %s20, 0
      %p103 = por %p101, %p102
      %s105 = sadd.s32 %s104, 1
      %p108 = scmp.eq.s32.totalorder %s14, 8
      %p109 = scmp.ne.s32.totalorder %s104, %s106
      %p110 = scmp.eq.s32.totalorder %s14, 0
      %p111 = por %p109, %p110
      %p112 = scmp.ne.s32.totalorder %s104, %s106
      %p113 = scmp.eq.s32.totalorder %s19, 8
      %p114 = por %p112, %p113
      %p115 = scmp.ne.s32.totalorder %s106, %s107
      %p116 = scmp.eq.s32.totalorder %s19, 0
      %p117 = por %p115, %p116
      %p118 = scmp.ne.s32.totalorder %s106, %s107
      %p119 = scmp.eq.s32.totalorder %s20, 8
      %p120 = por %p118, %p119
      %p122 = scmp.ne.s32.totalorder %s107, %s121
      %p123 = scmp.eq.s32.totalorder %s20, 0
      %p124 = por %p122, %p123
      %s126 = sadd.s32 %s125, 1
      %p129 = scmp.eq.s32.totalorder %s14, 8
      %p130 = scmp.ne.s32.totalorder %s125, %s127
      %p131 = scmp.eq.s32.totalorder %s14, 0
      %p132 = por %p130, %p131
      %p133 = scmp.ne.s32.totalorder %s125, %s127
      %p134 = scmp.eq.s32.totalorder %s19, 8
      %p135 = por %p133, %p134
      %p136 = scmp.ne.s32.totalorder %s127, %s128
      %p137 = scmp.eq.s32.totalorder %s19, 0
      %p138 = por %p136, %p137
      %p139 = scmp.ne.s32.totalorder %s127, %s128
      %p140 = scmp.eq.s32.totalorder %s20, 8
      %p141 = por %p139, %p140
      %p143 = scmp.ne.s32.totalorder %s128, %s142
      %p144 = scmp.eq.s32.totalorder %s20, 0
      %p145 = por %p143, %p144
      %s146 = ssub.s32 %s21, %s33
      %p147 = scmp.eq.s32.totalorder %s146, 0
      %s149 = sadd.s32 %s148, 1
      %s150 = scalar_select %p147, %s148, %s149
      %p153 = pneg %p147
      %p154 = scmp.eq.s32.totalorder %s14, 8
      %p155 = por %p153, %p154
      %p156 = scmp.ne.s32.totalorder %s148, %s151
      %p157 = scmp.eq.s32.totalorder %s14, 0
      %p158 = por %p156, %p157
      %p159 = scmp.ne.s32.totalorder %s148, %s151
      %p160 = scmp.eq.s32.totalorder %s19, 8
      %p161 = por %p159, %p160
      %p162 = scmp.ne.s32.totalorder %s151, %s152
      %p163 = scmp.eq.s32.totalorder %s19, 0
      %p164 = por %p162, %p163
      %p165 = scmp.ne.s32.totalorder %s151, %s152
      %p166 = scmp.eq.s32.totalorder %s20, 8
      %p167 = por %p165, %p166
      %p169 = scmp.ne.s32.totalorder %s152, %s168
      %p170 = scmp.eq.s32.totalorder %s20, 0
      %p171 = por %p169, %p170
      %s172 = ssub.s32 %s21, %s33
      %p173 = scmp.eq.s32.totalorder %s172, 0
      %s175 = sadd.s32 %s174, 1
      %s176 = scalar_select %p173, %s174, %s175
      %p179 = pneg %p173
      %p180 = scmp.eq.s32.totalorder %s14, 8
      %p181 = por %p179, %p180
      %p182 = scmp.ne.s32.totalorder %s174, %s177
      %p183 = scmp.eq.s32.totalorder %s14, 0
      %p184 = por %p182, %p183
      %p185 = scmp.ne.s32.totalorder %s174, %s177
      %p186 = scmp.eq.s32.totalorder %s19, 8
      %p187 = por %p185, %p186
      %p188 = scmp.ne.s32.totalorder %s177, %s178
      %p189 = scmp.eq.s32.totalorder %s19, 0
      %p190 = por %p188, %p189
      %p191 = scmp.ne.s32.totalorder %s177, %s178
      %p192 = scmp.eq.s32.totalorder %s20, 8
      %p193 = por %p191, %p192
      %p195 = scmp.ne.s32.totalorder %s178, %s194
      %p196 = scmp.eq.s32.totalorder %s20, 0
      %p197 = por %p195, %p196
      %s198 = ssub.s32 %s21, %s33
      %p199 = scmp.eq.s32.totalorder %s198, 0
      %s201 = sadd.s32 %s200, 1
      %s202 = scalar_select %p199, %s200, %s201
      %p205 = pneg %p199
      %p206 = scmp.eq.s32.totalorder %s14, 8
      %p207 = por %p205, %p206
      %p208 = scmp.ne.s32.totalorder %s200, %s203
      %p209 = scmp.eq.s32.totalorder %s14, 0
      %p210 = por %p208, %p209
      %p211 = scmp.ne.s32.totalorder %s200, %s203
      %p212 = scmp.eq.s32.totalorder %s19, 8
      %p213 = por %p211, %p212
      %p214 = scmp.ne.s32.totalorder %s203, %s204
      %p215 = scmp.eq.s32.totalorder %s19, 0
      %p216 = por %p214, %p215
      %p217 = scmp.ne.s32.totalorder %s203, %s204
      %p218 = scmp.eq.s32.totalorder %s20, 8
      %p219 = por %p217, %p218
      %p221 = scmp.ne.s32.totalorder %s204, %s220
      %p222 = scmp.eq.s32.totalorder %s20, 0
      %p223 = por %p221, %p222
      %p224 = scmp.le.s32.totalorder 1, %s14
      %p225 = scmp.lt.s32.totalorder %s14, 10
      %p226 = pnand %p224, %p225
      %p227 = pneg %p226
      // Predicated region
      $region9: #{jknet_forward.3} parent=5 // pred_check
        _
      $region10: #{jknet_forward.3} parent=5 // pred_check_branch
        %229 = sbr.rel (%p226) target = $region12
      $region11: #{jknet_forward.3} parent=5 // pred_region
        %s230 = ssub.s32 %s14, 1
        // Predicated region
        $region13: #{jknet_forward.3} parent=11 // pred_check
          %p231 = pneg %p75
        $region14: #{jknet_forward.3} parent=11 // pred_check_branch
          %233 = sbr.rel (%p231) target = $region16
        $region15: #{jknet_forward.3} parent=11 // pred_region
          _
        $region16: #{jknet_forward.3} parent=11 // pred_fallthru
          _
        // Predicated region
        $region17: #{jknet_forward.3} parent=11 // pred_check
          %p234 = pneg %p96
        $region18: #{jknet_forward.3} parent=11 // pred_check_branch
          %236 = sbr.rel (%p234) target = $region20
        $region19: #{jknet_forward.3} parent=11 // pred_region
          _
        $region20: #{jknet_forward.3} parent=11 // pred_fallthru
          _
        // Predicated region
        $region21: #{jknet_forward.3} parent=11 // pred_check
          %p237 = pneg %p117
        $region22: #{jknet_forward.3} parent=11 // pred_check_branch
          %239 = sbr.rel (%p237) target = $region24
        $region23: #{jknet_forward.3} parent=11 // pred_region
          _
        $region24: #{jknet_forward.3} parent=11 // pred_fallthru
          _
        // Predicated region
        $region25: #{jknet_forward.3} parent=11 // pred_check
          %p240 = pneg %p138
        $region26: #{jknet_forward.3} parent=11 // pred_check_branch
          %242 = sbr.rel (%p240) target = $region28
        $region27: #{jknet_forward.3} parent=11 // pred_region
          _
        $region28: #{jknet_forward.3} parent=11 // pred_fallthru
          _
      $region12: #{jknet_forward.3} parent=5 // pred_fallthru
        _
      %p243 = scmp.lt.s32.totalorder %s14, 9
      // Predicated region
      $region29: #{jknet_forward.3} parent=5 // pred_check
        %p244 = pneg %p243
      $region30: #{jknet_forward.3} parent=5 // pred_check_branch
        %246 = sbr.rel (%p244) target = $region32
      $region31: #{jknet_forward.3} parent=5 // pred_region
        // Predicated region
        $region33: #{jknet_forward.3} parent=31 // pred_check
          %p247 = pneg %p48
        $region34: #{jknet_forward.3} parent=31 // pred_check_branch
          %249 = sbr.rel (%p247) target = $region36
        $region35: #{jknet_forward.3} parent=31 // pred_region
          %s250 = sand.u32 %s38, 1
          %s251 = sand.u32 %s38, 1
          %s252 = smul.addr %s251, 256
          %s253 = scalar_lea.vmem [#allocation3], %s252
          %s254 = smul.u32 32, %s21
          %s255 = smul.u32 2, %s22
          %s256 = smul.addr %s254, 6
          %s257 = sadd.s32 %s255, %s256
          %s258 = smul.addr %s257, 4
          %s259 = scalar_lea.vmem %s0, %s258
          // Predicated region
          $region37: #{jknet_forward.3} parent=35 // pred_check
            _
          $region38: #{jknet_forward.3} parent=35 // pred_check_branch
            %261 = sbr.rel (0) target = $region40
          $region39: #{jknet_forward.3} parent=35 // pred_region
            // Predicated region
            $region41: #{jknet_forward.3} parent=39 // pred_check
              _
            $region42: #{jknet_forward.3} parent=39 // pred_check_branch
              %263 = sbr.rel (0) target = $region44
            $region43: #{jknet_forward.3} parent=39 // pred_region
              // Predicated region
              $region56: #{jknet_forward.3} parent=43 // pred_check
                _
              $region57: #{jknet_forward.3} parent=43 // pred_check_branch
                %340 = sbr.rel (0) target = $region59
              $region58: #{jknet_forward.3} parent=43 // pred_region
                loop: start=0, step=1, limit=1
                $region60: #{jknet_forward.3} parent=58 // loop_pre_header
                  _
                $region61: #{jknet_forward.3} parent=58 // loop_header
                  %s342 = sphi 0, %s346
                  %p343 = scmp.ge.s32.totalorder %s342, 1
                  %s347 = sphi %s259, %s259
                  %s348 = sphi %s253, %s253
                $region62: #{jknet_forward.3} parent=58 // loop_header_branch
                  %345 = sbr.rel (%p343) target = $region66
                $region63: #{jknet_forward.3} parent=58 // loop_body
                  %v349 = vld [vmem:[%s347] sm:$0xff]
                  %350 = vst [vmem:[%s348] sm:$0xff] %v349
                  %v351 = vld [vmem:[%s347 + $0x18] sm:$0xff]
                  %352 = vst [vmem:[%s348 + $0x8] sm:$0xff] %v351
                  %v353 = vld [vmem:[%s347 + $0x30] sm:$0xff]
                  %354 = vst [vmem:[%s348 + $0x10] sm:$0xff] %v353
                  %v355 = vld [vmem:[%s347 + $0x48] sm:$0xff]
                  %356 = vst [vmem:[%s348 + $0x18] sm:$0xff] %v355
                  %v357 = vld [vmem:[%s347 + $0x60] sm:$0xff]
                  %358 = vst [vmem:[%s348 + $0x20] sm:$0xff] %v357
                  %v359 = vld [vmem:[%s347 + $0x78] sm:$0xff]
                  %360 = vst [vmem:[%s348 + $0x28] sm:$0xff] %v359
                  %v361 = vld [vmem:[%s347 + $0x90] sm:$0xff]
                  %362 = vst [vmem:[%s348 + $0x30] sm:$0xff] %v361
                  %v363 = vld [vmem:[%s347 + $0xa8] sm:$0xff]
                  %364 = vst [vmem:[%s348 + $0x38] sm:$0xff] %v363
                  %v365 = vld [vmem:[%s347 + $0xc0] sm:$0xff]
                  %366 = vst [vmem:[%s348 + $0x40] sm:$0xff] %v365
                  %v367 = vld [vmem:[%s347 + $0xd8] sm:$0xff]
                  %368 = vst [vmem:[%s348 + $0x48] sm:$0xff] %v367
                  %v369 = vld [vmem:[%s347 + $0xf0] sm:$0xff]
                  %370 = vst [vmem:[%s348 + $0x50] sm:$0xff] %v369
                  %v371 = vld [vmem:[%s347 + $0x108] sm:$0xff]
                  %372 = vst [vmem:[%s348 + $0x58] sm:$0xff] %v371
                  %v373 = vld [vmem:[%s347 + $0x120] sm:$0xff]
                  %374 = vst [vmem:[%s348 + $0x60] sm:$0xff] %v373
                  %v375 = vld [vmem:[%s347 + $0x138] sm:$0xff]
                  %376 = vst [vmem:[%s348 + $0x68] sm:$0xff] %v375
                  %v377 = vld [vmem:[%s347 + $0x150] sm:$0xff]
                  %378 = vst [vmem:[%s348 + $0x70] sm:$0xff] %v377
                  %v379 = vld [vmem:[%s347 + $0x168] sm:$0xff]
                  %380 = vst [vmem:[%s348 + $0x78] sm:$0xff] %v379
                  %v381 = vld [vmem:[%s347 + $0x180] sm:$0xff]
                  %382 = vst [vmem:[%s348 + $0x80] sm:$0xff] %v381
                  %v383 = vld [vmem:[%s347 + $0x198] sm:$0xff]
                  %384 = vst [vmem:[%s348 + $0x88] sm:$0xff] %v383
                  %v385 = vld [vmem:[%s347 + $0x1b0] sm:$0xff]
                  %386 = vst [vmem:[%s348 + $0x90] sm:$0xff] %v385
                  %v387 = vld [vmem:[%s347 + $0x1c8] sm:$0xff]
                  %388 = vst [vmem:[%s348 + $0x98] sm:$0xff] %v387
                  %v389 = vld [vmem:[%s347 + $0x1e0] sm:$0xff]
                  %390 = vst [vmem:[%s348 + $0xa0] sm:$0xff] %v389
                  %v391 = vld [vmem:[%s347 + $0x1f8] sm:$0xff]
                  %392 = vst [vmem:[%s348 + $0xa8] sm:$0xff] %v391
                  %v393 = vld [vmem:[%s347 + $0x210] sm:$0xff]
                  %394 = vst [vmem:[%s348 + $0xb0] sm:$0xff] %v393
                  %v395 = vld [vmem:[%s347 + $0x228] sm:$0xff]
                  %396 = vst [vmem:[%s348 + $0xb8] sm:$0xff] %v395
                  %v397 = vld [vmem:[%s347 + $0x240] sm:$0xff]
                  %398 = vst [vmem:[%s348 + $0xc0] sm:$0xff] %v397
                  %v399 = vld [vmem:[%s347 + $0x258] sm:$0xff]
                  %400 = vst [vmem:[%s348 + $0xc8] sm:$0xff] %v399
                  %v401 = vld [vmem:[%s347 + $0x270] sm:$0xff]
                  %402 = vst [vmem:[%s348 + $0xd0] sm:$0xff] %v401
                  %v403 = vld [vmem:[%s347 + $0x288] sm:$0xff]
                  %404 = vst [vmem:[%s348 + $0xd8] sm:$0xff] %v403
                  %v405 = vld [vmem:[%s347 + $0x2a0] sm:$0xff]
                  %406 = vst [vmem:[%s348 + $0xe0] sm:$0xff] %v405
                  %v407 = vld [vmem:[%s347 + $0x2b8] sm:$0xff]
                  %408 = vst [vmem:[%s348 + $0xe8] sm:$0xff] %v407
                  %v409 = vld [vmem:[%s347 + $0x2d0] sm:$0xff]
                  %410 = vst [vmem:[%s348 + $0xf0] sm:$0xff] %v409
                  %v411 = vld [vmem:[%s347 + $0x2e8] sm:$0xff]
                  %412 = vst [vmem:[%s348 + $0xf8] sm:$0xff] %v411
                $region64: #{jknet_forward.3} parent=58 // loop_footer
                  %s346 = sadd.s32 1, %s342
                $region65: #{jknet_forward.3} parent=58 // loop_footer_branch
                  %341 = sbr.rel target = $region61
                $region66: #{jknet_forward.3} parent=58 // loop_exit
                  _
              $region59: #{jknet_forward.3} parent=43 // pred_fallthru
                _
              // Predicated region
              $region67: #{jknet_forward.3} parent=43 // pred_check
                _
              $region68: #{jknet_forward.3} parent=43 // pred_check_branch
                %414 = sbr.rel target = $region70
              $region69: #{jknet_forward.3} parent=43 // pred_region
                _
              $region70: #{jknet_forward.3} parent=43 // pred_fallthru
                _
            $region44: #{jknet_forward.3} parent=39 // pred_fallthru
              _
            // Predicated region
            $region45: #{jknet_forward.3} parent=39 // pred_check
              _
            $region46: #{jknet_forward.3} parent=39 // pred_check_branch
              %265 = sbr.rel target = $region48
            $region47: #{jknet_forward.3} parent=39 // pred_region
              loop: start=0, step=1, limit=1
              $region49: #{jknet_forward.3} parent=47 // loop_pre_header
                _
              $region50: #{jknet_forward.3} parent=47 // loop_header
                %s268 = sphi 0, %s272
                %p269 = scmp.ge.s32.totalorder %s268, 1
                %s273 = sphi %s259, %s259
                %s274 = sphi %s253, %s253
              $region51: #{jknet_forward.3} parent=47 // loop_header_branch
                %271 = sbr.rel (%p269) target = $region55
              $region52: #{jknet_forward.3} parent=47 // loop_body
                %v275 = vld [vmem:[%s273] sm:$0xff]
                %276 = vst [vmem:[%s274] sm:$0xff] %v275
                %v277 = vld [vmem:[%s273 + $0x18] sm:$0xff]
                %278 = vst [vmem:[%s274 + $0x8] sm:$0xff] %v277
                %v279 = vld [vmem:[%s273 + $0x30] sm:$0xff]
                %280 = vst [vmem:[%s274 + $0x10] sm:$0xff] %v279
                %v281 = vld [vmem:[%s273 + $0x48] sm:$0xff]
                %282 = vst [vmem:[%s274 + $0x18] sm:$0xff] %v281
                %v283 = vld [vmem:[%s273 + $0x60] sm:$0xff]
                %284 = vst [vmem:[%s274 + $0x20] sm:$0xff] %v283
                %v285 = vld [vmem:[%s273 + $0x78] sm:$0xff]
                %286 = vst [vmem:[%s274 + $0x28] sm:$0xff] %v285
                %v287 = vld [vmem:[%s273 + $0x90] sm:$0xff]
                %288 = vst [vmem:[%s274 + $0x30] sm:$0xff] %v287
                %v289 = vld [vmem:[%s273 + $0xa8] sm:$0xff]
                %290 = vst [vmem:[%s274 + $0x38] sm:$0xff] %v289
                %v291 = vld [vmem:[%s273 + $0xc0] sm:$0xff]
                %292 = vst [vmem:[%s274 + $0x40] sm:$0xff] %v291
                %v293 = vld [vmem:[%s273 + $0xd8] sm:$0xff]
                %294 = vst [vmem:[%s274 + $0x48] sm:$0xff] %v293
                %v295 = vld [vmem:[%s273 + $0xf0] sm:$0xff]
                %296 = vst [vmem:[%s274 + $0x50] sm:$0xff] %v295
                %v297 = vld [vmem:[%s273 + $0x108] sm:$0xff]
                %298 = vst [vmem:[%s274 + $0x58] sm:$0xff] %v297
                %v299 = vld [vmem:[%s273 + $0x120] sm:$0xff]
                %300 = vst [vmem:[%s274 + $0x60] sm:$0xff] %v299
                %v301 = vld [vmem:[%s273 + $0x138] sm:$0xff]
                %302 = vst [vmem:[%s274 + $0x68] sm:$0xff] %v301
                %v303 = vld [vmem:[%s273 + $0x150] sm:$0xff]
                %304 = vst [vmem:[%s274 + $0x70] sm:$0xff] %v303
                %v305 = vld [vmem:[%s273 + $0x168] sm:$0xff]
                %306 = vst [vmem:[%s274 + $0x78] sm:$0xff] %v305
                %v307 = vld [vmem:[%s273 + $0x180] sm:$0xff]
                %308 = vst [vmem:[%s274 + $0x80] sm:$0xff] %v307
                %v309 = vld [vmem:[%s273 + $0x198] sm:$0xff]
                %310 = vst [vmem:[%s274 + $0x88] sm:$0xff] %v309
                %v311 = vld [vmem:[%s273 + $0x1b0] sm:$0xff]
                %312 = vst [vmem:[%s274 + $0x90] sm:$0xff] %v311
                %v313 = vld [vmem:[%s273 + $0x1c8] sm:$0xff]
                %314 = vst [vmem:[%s274 + $0x98] sm:$0xff] %v313
                %v315 = vld [vmem:[%s273 + $0x1e0] sm:$0xff]
                %316 = vst [vmem:[%s274 + $0xa0] sm:$0xff] %v315
                %v317 = vld [vmem:[%s273 + $0x1f8] sm:$0xff]
                %318 = vst [vmem:[%s274 + $0xa8] sm:$0xff] %v317
                %v319 = vld [vmem:[%s273 + $0x210] sm:$0xff]
                %320 = vst [vmem:[%s274 + $0xb0] sm:$0xff] %v319
                %v321 = vld [vmem:[%s273 + $0x228] sm:$0xff]
                %322 = vst [vmem:[%s274 + $0xb8] sm:$0xff] %v321
                %v323 = vld [vmem:[%s273 + $0x240] sm:$0xff]
                %324 = vst [vmem:[%s274 + $0xc0] sm:$0xff] %v323
                %v325 = vld [vmem:[%s273 + $0x258] sm:$0xff]
                %326 = vst [vmem:[%s274 + $0xc8] sm:$0xff] %v325
                %v327 = vld [vmem:[%s273 + $0x270] sm:$0xff]
                %328 = vst [vmem:[%s274 + $0xd0] sm:$0xff] %v327
                %v329 = vld [vmem:[%s273 + $0x288] sm:$0xff]
                %330 = vst [vmem:[%s274 + $0xd8] sm:$0xff] %v329
                %v331 = vld [vmem:[%s273 + $0x2a0] sm:$0xff]
                %332 = vst [vmem:[%s274 + $0xe0] sm:$0xff] %v331
                %v333 = vld [vmem:[%s273 + $0x2b8] sm:$0xff]
                %334 = vst [vmem:[%s274 + $0xe8] sm:$0xff] %v333
                %v335 = vld [vmem:[%s273 + $0x2d0] sm:$0xff]
                %336 = vst [vmem:[%s274 + $0xf0] sm:$0xff] %v335
                %v337 = vld [vmem:[%s273 + $0x2e8] sm:$0xff]
                %338 = vst [vmem:[%s274 + $0xf8] sm:$0xff] %v337
              $region53: #{jknet_forward.3} parent=47 // loop_footer
                %s272 = sadd.s32 1, %s268
              $region54: #{jknet_forward.3} parent=47 // loop_footer_branch
                %267 = sbr.rel target = $region50
              $region55: #{jknet_forward.3} parent=47 // loop_exit
                _
            $region48: #{jknet_forward.3} parent=39 // pred_fallthru
              _
          $region40: #{jknet_forward.3} parent=35 // pred_fallthru
            _
          %415 = vnop
        $region36: #{jknet_forward.3} parent=31 // pred_fallthru
          _
        // Predicated region
        $region71: #{jknet_forward.3} parent=31 // pred_check
          %p416 = pneg %p158
        $region72: #{jknet_forward.3} parent=31 // pred_check_branch
          %418 = sbr.rel (%p416) target = $region74
        $region73: #{jknet_forward.3} parent=31 // pred_region
          %s419 = smul.u32 32, %s21
          %p420 = scmp.lt.s32.totalorder %s419, 95
          %s421 = scalar_select %p420, %s419, 95
          %s422 = smul.addr %s421, 8
          %s423 = scalar_lea.vmem %s5, %s422
          %s424 = smul.u32 32, %s21
        $region74: #{jknet_forward.3} parent=31 // pred_fallthru
          _
      $region32: #{jknet_forward.3} parent=5 // pred_fallthru
        _
      %p425 = scmp.le.s32.totalorder 1, %s14
      %p426 = scmp.lt.s32.totalorder %s14, 10
      %p427 = pnand %p425, %p426
      %p428 = pneg %p427
      // Predicated region
      $region75: #{jknet_forward.3} parent=5 // pred_check
        _
      $region76: #{jknet_forward.3} parent=5 // pred_check_branch
        %430 = sbr.rel (%p427) target = $region78
      $region77: #{jknet_forward.3} parent=5 // pred_region
        %s431 = ssub.s32 %s14, 1
        %s432 = sand.u32 %s41, 1
        %s433 = sand.u32 %s41, 1
        %s434 = smul.addr %s433, 256
        %s435 = scalar_lea.vmem [#allocation3], %s434
        // Predicated region
        $region79: #{jknet_forward.3} parent=77 // pred_check
          %p436 = pneg %p54
        $region80: #{jknet_forward.3} parent=77 // pred_check_branch
          %438 = sbr.rel (%p436) target = $region82
        $region81: #{jknet_forward.3} parent=77 // pred_region
          _
        $region82: #{jknet_forward.3} parent=77 // pred_fallthru
          _
        %s439 = sand.u32 %s41, 1
        %s440 = sand.u32 %s41, 1
        %s441 = smul.addr %s440, 256
        %s442 = scalar_lea.vmem [#allocation3], %s441
        %p443 = pneg %p54
        %p444 = pneg %p51
        %p445 = pneg %p75
        %p446 = pneg %p72
        %p447 = pneg %p96
        %p448 = pneg %p93
        %p449 = pneg %p117
        %p450 = pneg %p114
        %p451 = pneg %p138
        %p452 = pneg %p135
        %s453 = smul.u32 32, %s23
        %p454 = scmp.lt.s32.totalorder %s453, 95
        %s455 = scalar_select %p454, %s453, 95
        %s456 = smul.addr %s455, 8
        %s457 = scalar_lea.vmem %s5, %s456
        %p458 = pneg %p164
        %p459 = pneg %p161
        %p460 = pneg %p190
        %p461 = pneg %p187
        %s462 = smul.u32 32, %s23
        %p463 = scmp.lt.s32.totalorder %s462, 95
        %s464 = scalar_select %p463, %s462, 95
        %s465 = smul.addr %s464, 4
        %s466 = scalar_lea.vmem %s6, %s465
        %p467 = pneg %p216
        %p468 = pneg %p213
        %s469 = smul.u32 32, %s23
        %p470 = scmp.lt.s32.totalorder %s469, 95
        %s471 = scalar_select %p470, %s469, 95
        %s472 = smul.addr %s471, 8
        %s473 = scalar_lea.vmem %s7, %s472
        %s474 = smul.u32 32, %s23
        %s475 = smul.u32 2, %s24
        %s476 = smul.u32 32, %s23
        %p477 = scmp.lt.s32.totalorder %s476, 95
        %s478 = scalar_select %p477, %s476, 95
        %s479 = smul.addr %s478, 8
        %s480 = scalar_lea.vmem %s5, %s479
        %s481 = smul.u32 32, %s23
        %s482 = smul.u32 32, %s23
        %p483 = scmp.lt.s32.totalorder %s482, 95
        %s484 = scalar_select %p483, %s482, 95
        %s485 = smul.addr %s484, 4
        %s486 = scalar_lea.vmem %s6, %s485
        %s487 = smul.u32 32, %s23
        %s488 = smul.u32 32, %s23
        %p489 = scmp.lt.s32.totalorder %s488, 95
        %s490 = scalar_select %p489, %s488, 95
        %s491 = smul.addr %s490, 8
        %s492 = scalar_lea.vmem %s7, %s491
        %s493 = smul.u32 32, %s23
        %s495 = smul.u32 %s24, 256
        %s496 = sshra.s32 %s495, 3
        %s497 = sand.u32 %s495, 7
        %s498 = smul.addr %s496, 4
        %s499 = scalar_lea.vmem %s1, %s498
        %v500 = vld [vmem:[%s499] sm:$0xf]
        %v501 = vld [vmem:[%s499 + $0x4] sm:$0xf]
        %v502 = vld [vmem:[%s499 + $0x8] sm:$0xf]
        %v503 = vld [vmem:[%s499 + $0xc] sm:$0xf]
        %v504 = vld [vmem:[%s499 + $0x10] sm:$0xf]
        %v505 = vld [vmem:[%s499 + $0x14] sm:$0xf]
        %v506 = vld [vmem:[%s499 + $0x18] sm:$0xf]
        %v507 = vld [vmem:[%s499 + $0x1c] sm:$0xf]
        %v508 = vld [vmem:[%s499 + $0x20] sm:$0xf]
        %v509 = vld [vmem:[%s499 + $0x24] sm:$0xf]
        %v510 = vld [vmem:[%s499 + $0x28] sm:$0xf]
        %v511 = vld [vmem:[%s499 + $0x2c] sm:$0xf]
        %v512 = vld [vmem:[%s499 + $0x30] sm:$0xf]
        %v513 = vld [vmem:[%s499 + $0x34] sm:$0xf]
        %v514 = vld [vmem:[%s499 + $0x38] sm:$0xf]
        %v515 = vld [vmem:[%s499 + $0x3c] sm:$0xf]
        %v516 = vld [vmem:[%s499 + $0x40] sm:$0xf]
        %v517 = vld [vmem:[%s499 + $0x44] sm:$0xf]
        %v518 = vld [vmem:[%s499 + $0x48] sm:$0xf]
        %v519 = vld [vmem:[%s499 + $0x4c] sm:$0xf]
        %v520 = vld [vmem:[%s499 + $0x50] sm:$0xf]
        %v521 = vld [vmem:[%s499 + $0x54] sm:$0xf]
        %v522 = vld [vmem:[%s499 + $0x58] sm:$0xf]
        %v523 = vld [vmem:[%s499 + $0x5c] sm:$0xf]
        %v524 = vld [vmem:[%s499 + $0x60] sm:$0xf]
        %v525 = vld [vmem:[%s499 + $0x64] sm:$0xf]
        %v526 = vld [vmem:[%s499 + $0x68] sm:$0xf]
        %v527 = vld [vmem:[%s499 + $0x6c] sm:$0xf]
        %v528 = vld [vmem:[%s499 + $0x70] sm:$0xf]
        %v529 = vld [vmem:[%s499 + $0x74] sm:$0xf]
        %v530 = vld [vmem:[%s499 + $0x78] sm:$0xf]
        %v531 = vld [vmem:[%s499 + $0x7c] sm:$0xf]
        %v532 = vld [vmem:[%s2] sm:$0xf]
        %v533 = vld [vmem:[%s2 + $0x4] sm:$0xf]
        %v534 = vld [vmem:[%s2 + $0x8] sm:$0xf]
        %v535 = vld [vmem:[%s2 + $0xc] sm:$0xf]
        %v536 = vld [vmem:[%s2 + $0x10] sm:$0xf]
        %v537 = vld [vmem:[%s2 + $0x14] sm:$0xf]
        %v538 = vld [vmem:[%s2 + $0x18] sm:$0xf]
        %v539 = vld [vmem:[%s2 + $0x1c] sm:$0xf]
        %v540 = vld [vmem:[%s2 + $0x20] sm:$0xf]
        %v541 = vld [vmem:[%s2 + $0x24] sm:$0xf]
        %v542 = vld [vmem:[%s2 + $0x28] sm:$0xf]
        %v543 = vld [vmem:[%s2 + $0x2c] sm:$0xf]
        %v544 = vld [vmem:[%s2 + $0x30] sm:$0xf]
        %v545 = vld [vmem:[%s2 + $0x34] sm:$0xf]
        %v546 = vld [vmem:[%s2 + $0x38] sm:$0xf]
        %v547 = vld [vmem:[%s2 + $0x3c] sm:$0xf]
        %v580 = vunpack.c.l.b16 %v500
        %v581 = vunpack.c.l.b16 %v501
        %v582 = vunpack.c.l.b16 %v502
        %v583 = vunpack.c.l.b16 %v503
        %v584 = vunpack.c.l.b16 %v504
        %v585 = vunpack.c.l.b16 %v505
        %v586 = vunpack.c.l.b16 %v506
        %v587 = vunpack.c.l.b16 %v507
        %v588 = vunpack.c.l.b16 %v508
        %v589 = vunpack.c.l.b16 %v509
        %v590 = vunpack.c.l.b16 %v510
        %v591 = vunpack.c.l.b16 %v511
        %v592 = vunpack.c.l.b16 %v512
        %v593 = vunpack.c.l.b16 %v513
        %v594 = vunpack.c.l.b16 %v514
        %v595 = vunpack.c.l.b16 %v515
        %v596 = vunpack.c.l.b16 %v516
        %v597 = vunpack.c.l.b16 %v517
        %v598 = vunpack.c.l.b16 %v518
        %v599 = vunpack.c.l.b16 %v519
        %v600 = vunpack.c.l.b16 %v520
        %v601 = vunpack.c.l.b16 %v521
        %v602 = vunpack.c.l.b16 %v522
        %v603 = vunpack.c.l.b16 %v523
        %v604 = vunpack.c.l.b16 %v524
        %v605 = vunpack.c.l.b16 %v525
        %v606 = vunpack.c.l.b16 %v526
        %v607 = vunpack.c.l.b16 %v527
        %v608 = vunpack.c.l.b16 %v528
        %v609 = vunpack.c.l.b16 %v529
        %v610 = vunpack.c.l.b16 %v530
        %v611 = vunpack.c.l.b16 %v531
        %v612 = vpack.c.b16 %v581, %v580
        %v613 = vpack.c.b16 %v583, %v582
        %v614 = vpack.c.b16 %v585, %v584
        %v615 = vpack.c.b16 %v587, %v586
        %v616 = vpack.c.b16 %v589, %v588
        %v617 = vpack.c.b16 %v591, %v590
        %v618 = vpack.c.b16 %v593, %v592
        %v619 = vpack.c.b16 %v595, %v594
        %v620 = vpack.c.b16 %v597, %v596
        %v621 = vpack.c.b16 %v599, %v598
        %v622 = vpack.c.b16 %v601, %v600
        %v623 = vpack.c.b16 %v603, %v602
        %v624 = vpack.c.b16 %v605, %v604
        %v625 = vpack.c.b16 %v607, %v606
        %v626 = vpack.c.b16 %v609, %v608
        %v627 = vpack.c.b16 %v611, %v610
        %v660 = vunpack.c.l.b16 %v532
        %v661 = vunpack.c.l.b16 %v533
        %v662 = vunpack.c.l.b16 %v534
        %v663 = vunpack.c.l.b16 %v535
        %v664 = vunpack.c.l.b16 %v536
        %v665 = vunpack.c.l.b16 %v537
        %v666 = vunpack.c.l.b16 %v538
        %v667 = vunpack.c.l.b16 %v539
        %v668 = vunpack.c.l.b16 %v540
        %v669 = vunpack.c.l.b16 %v541
        %v670 = vunpack.c.l.b16 %v542
        %v671 = vunpack.c.l.b16 %v543
        %v672 = vunpack.c.l.b16 %v544
        %v673 = vunpack.c.l.b16 %v545
        %v674 = vunpack.c.l.b16 %v546
        %v675 = vunpack.c.l.b16 %v547
        %v676 = vpack.c.b16 %v661, %v660
        %v677 = vpack.c.b16 %v663, %v662
        %v678 = vpack.c.b16 %v665, %v664
        %v679 = vpack.c.b16 %v667, %v666
        %v680 = vpack.c.b16 %v669, %v668
        %v681 = vpack.c.b16 %v671, %v670
        %v682 = vpack.c.b16 %v673, %v672
        %v683 = vpack.c.b16 %v675, %v674
        %692 = vmatprep.subr.bf16.mxu0 0
        %693 = vmatpush1.bf16.msra.mxu0 %v676
        %694 = vmatprep.subr.bf16.mxu0 0
        %695 = vmatpush1.bf16.msra.mxu0 %v677
        %696 = vmatprep.subr.bf16.mxu0 0
        %697 = vmatpush1.bf16.msra.mxu0 %v678
        %698 = vmatprep.subr.bf16.mxu0 0
        %699 = vmatpush1.bf16.msra.mxu0 %v679
        %700 = vmatprep.subr.bf16.mxu0 0
        %701 = vmatpush1.bf16.msra.mxu0 %v680
        %702 = vmatprep.subr.bf16.mxu0 0
        %703 = vmatpush1.bf16.msra.mxu0 %v681
        %704 = vmatprep.subr.bf16.mxu0 0
        %705 = vmatpush1.bf16.msra.mxu0 %v682
        %706 = vmatprep.subr.bf16.mxu0 0
        %707 = vmatpush1.bf16.msra.mxu0 %v683
        %708 = vmatprep.subr.bf16.mxu0 0
        %709 = vmatpush1.bf16.msra.mxu0 0
        %710 = vmatprep.subr.bf16.mxu0 0
        %711 = vmatpush1.bf16.msra.mxu0 0
        %712 = vmatprep.subr.bf16.mxu0 0
        %713 = vmatpush1.bf16.msra.mxu0 0
        %714 = vmatprep.subr.bf16.mxu0 0
        %715 = vmatpush1.bf16.msra.mxu0 0
        %716 = vmatprep.subr.bf16.mxu0 0
        %717 = vmatpush1.bf16.msra.mxu0 0
        %718 = vmatprep.subr.bf16.mxu0 0
        %719 = vmatpush1.bf16.msra.mxu0 0
        %720 = vmatprep.subr.bf16.mxu0 0
        %721 = vmatpush1.bf16.msra.mxu0 0
        %722 = vmatprep.subr.bf16.mxu0 0
        %723 = vmatpush1.bf16.msra.mxu0 0
        %724 = vmatprep.mubr.bf16.mxu0 0
        %725 = vmatmul.mubr.bf16.gmra.mrb[0].mxu0 %v612
        %v726 = vpop.f32.mrb[0].mxu0
        %v727 = vadd.f32 0.0, %v726
        %v728 = vpop.f32.mrb[0].mxu0
        %v729 = vpop.f32.mrb[0].mxu0
        %v730 = vadd.f32 0.0, %v729
        %v731 = vpop.f32.mrb[0].mxu0
        %732 = vmatprep.mubr.bf16.mxu0 0
        %733 = vmatmul.mubr.bf16.gmra.mrb[0].mxu0 %v613
        %v734 = vpop.f32.mrb[0].mxu0
        %v735 = vadd.f32 0.0, %v734
        %v736 = vpop.f32.mrb[0].mxu0
        %v737 = vpop.f32.mrb[0].mxu0
        %v738 = vadd.f32 0.0, %v737
        %v739 = vpop.f32.mrb[0].mxu0
        %740 = vmatprep.mubr.bf16.mxu0 0
        %741 = vmatmul.mubr.bf16.gmra.mrb[0].mxu0 %v614
        %v742 = vpop.f32.mrb[0].mxu0
        %v743 = vadd.f32 0.0, %v742
        %v744 = vpop.f32.mrb[0].mxu0
        %v745 = vpop.f32.mrb[0].mxu0
        %v746 = vadd.f32 0.0, %v745
        %v747 = vpop.f32.mrb[0].mxu0
        %748 = vmatprep.mubr.bf16.mxu0 0
        %749 = vmatmul.mubr.bf16.gmra.mrb[0].mxu0 %v615
        %v750 = vpop.f32.mrb[0].mxu0
        %v751 = vadd.f32 0.0, %v750
        %v752 = vpop.f32.mrb[0].mxu0
        %v753 = vpop.f32.mrb[0].mxu0
        %v754 = vadd.f32 0.0, %v753
        %v755 = vpop.f32.mrb[0].mxu0
        %756 = vmatprep.mubr.bf16.mxu0 0
        %757 = vmatmul.mubr.bf16.gmra.mrb[0].mxu0 %v616
        %v758 = vpop.f32.mrb[0].mxu0
        %v759 = vadd.f32 0.0, %v758
        %v760 = vpop.f32.mrb[0].mxu0
        %v761 = vpop.f32.mrb[0].mxu0
        %v762 = vadd.f32 0.0, %v761
        %v763 = vpop.f32.mrb[0].mxu0
        %764 = vmatprep.mubr.bf16.mxu0 0
        %765 = vmatmul.mubr.bf16.gmra.mrb[0].mxu0 %v617
        %v766 = vpop.f32.mrb[0].mxu0
        %v767 = vadd.f32 0.0, %v766
        %v768 = vpop.f32.mrb[0].mxu0
        %v769 = vpop.f32.mrb[0].mxu0
        %v770 = vadd.f32 0.0, %v769
        %v771 = vpop.f32.mrb[0].mxu0
        %772 = vmatprep.mubr.bf16.mxu0 0
        %773 = vmatmul.mubr.bf16.gmra.mrb[0].mxu0 %v618
        %v774 = vpop.f32.mrb[0].mxu0
        %v775 = vadd.f32 0.0, %v774
        %v776 = vpop.f32.mrb[0].mxu0
        %v777 = vpop.f32.mrb[0].mxu0
        %v778 = vadd.f32 0.0, %v777
        %v779 = vpop.f32.mrb[0].mxu0
        %780 = vmatprep.mubr.bf16.mxu0 0
        %781 = vmatmul.mubr.bf16.gmra.mrb[0].mxu0 %v619
        %v782 = vpop.f32.mrb[0].mxu0
        %v783 = vadd.f32 0.0, %v782
        %v784 = vpop.f32.mrb[0].mxu0
        %v785 = vpop.f32.mrb[0].mxu0
        %v786 = vadd.f32 0.0, %v785
        %v787 = vpop.f32.mrb[0].mxu0
        %788 = vmatprep.mubr.bf16.mxu0 0
        %789 = vmatmul.mubr.bf16.gmra.mrb[0].mxu0 %v620
        %v790 = vpop.f32.mrb[0].mxu0
        %v791 = vadd.f32 0.0, %v790
        %v792 = vpop.f32.mrb[0].mxu0
        %v793 = vpop.f32.mrb[0].mxu0
        %v794 = vadd.f32 0.0, %v793
        %v795 = vpop.f32.mrb[0].mxu0
        %796 = vmatprep.mubr.bf16.mxu0 0
        %797 = vmatmul.mubr.bf16.gmra.mrb[0].mxu0 %v621
        %v798 = vpop.f32.mrb[0].mxu0
        %v799 = vadd.f32 0.0, %v798
        %v800 = vpop.f32.mrb[0].mxu0
        %v801 = vpop.f32.mrb[0].mxu0
        %v802 = vadd.f32 0.0, %v801
        %v803 = vpop.f32.mrb[0].mxu0
        %804 = vmatprep.mubr.bf16.mxu0 0
        %805 = vmatmul.mubr.bf16.gmra.mrb[0].mxu0 %v622
        %v806 = vpop.f32.mrb[0].mxu0
        %v807 = vadd.f32 0.0, %v806
        %v808 = vpop.f32.mrb[0].mxu0
        %v809 = vpop.f32.mrb[0].mxu0
        %v810 = vadd.f32 0.0, %v809
        %v811 = vpop.f32.mrb[0].mxu0
        %812 = vmatprep.mubr.bf16.mxu0 0
        %813 = vmatmul.mubr.bf16.gmra.mrb[0].mxu0 %v623
        %v814 = vpop.f32.mrb[0].mxu0
        %v815 = vadd.f32 0.0, %v814
        %v816 = vpop.f32.mrb[0].mxu0
        %v817 = vpop.f32.mrb[0].mxu0
        %v818 = vadd.f32 0.0, %v817
        %v819 = vpop.f32.mrb[0].mxu0
        %820 = vmatprep.mubr.bf16.mxu0 0
        %821 = vmatmul.mubr.bf16.gmra.mrb[0].mxu0 %v624
        %v822 = vpop.f32.mrb[0].mxu0
        %v823 = vadd.f32 0.0, %v822
        %v824 = vpop.f32.mrb[0].mxu0
        %v825 = vpop.f32.mrb[0].mxu0
        %v826 = vadd.f32 0.0, %v825
        %v827 = vpop.f32.mrb[0].mxu0
        %828 = vmatprep.mubr.bf16.mxu0 0
        %829 = vmatmul.mubr.bf16.gmra.mrb[0].mxu0 %v625
        %v830 = vpop.f32.mrb[0].mxu0
        %v831 = vadd.f32 0.0, %v830
        %v832 = vpop.f32.mrb[0].mxu0
        %v833 = vpop.f32.mrb[0].mxu0
        %v834 = vadd.f32 0.0, %v833
        %v835 = vpop.f32.mrb[0].mxu0
        %836 = vmatprep.mubr.bf16.mxu0 0
        %837 = vmatmul.mubr.bf16.gmra.mrb[0].mxu0 %v626
        %v838 = vpop.f32.mrb[0].mxu0
        %v839 = vadd.f32 0.0, %v838
        %v840 = vpop.f32.mrb[0].mxu0
        %v841 = vpop.f32.mrb[0].mxu0
        %v842 = vadd.f32 0.0, %v841
        %v843 = vpop.f32.mrb[0].mxu0
        %844 = vmatprep.mubr.bf16.mxu0 0
        %845 = vmatmul.mubr.bf16.gmra.mrb[0].mxu0 %v627
        %v846 = vpop.f32.mrb[0].mxu0
        %v847 = vadd.f32 0.0, %v846
        %v848 = vpop.f32.mrb[0].mxu0
        %v849 = vpop.f32.mrb[0].mxu0
        %v850 = vadd.f32 0.0, %v849
        %v851 = vpop.f32.mrb[0].mxu0
        %852 = vdwg.mxu0
        %v853 = vpack.c.bf16 %v730, %v727
        %v854 = vpack.c.bf16 %v738, %v735
        %v855 = vpack.c.bf16 %v746, %v743
        %v856 = vpack.c.bf16 %v754, %v751
        %v857 = vpack.c.bf16 %v762, %v759
        %v858 = vpack.c.bf16 %v770, %v767
        %v859 = vpack.c.bf16 %v778, %v775
        %v860 = vpack.c.bf16 %v786, %v783
        %v861 = vpack.c.bf16 %v794, %v791
        %v862 = vpack.c.bf16 %v802, %v799
        %v863 = vpack.c.bf16 %v810, %v807
        %v864 = vpack.c.bf16 %v818, %v815
        %v865 = vpack.c.bf16 %v826, %v823
        %v866 = vpack.c.bf16 %v834, %v831
        %v867 = vpack.c.bf16 %v842, %v839
        %v868 = vpack.c.bf16 %v850, %v847
        %v869 = vld [vmem:[%s435] sm:$0xff]
        %v870 = vld [vmem:[%s435 + $0x8] sm:$0xff]
        %v871 = vld [vmem:[%s435 + $0x10] sm:$0xff]
        %v872 = vld [vmem:[%s435 + $0x18] sm:$0xff]
        %v873 = vld [vmem:[%s435 + $0x20] sm:$0xff]
        %v874 = vld [vmem:[%s435 + $0x28] sm:$0xff]
        %v875 = vld [vmem:[%s435 + $0x30] sm:$0xff]
        %v876 = vld [vmem:[%s435 + $0x38] sm:$0xff]
        %v877 = vld [vmem:[%s435 + $0x40] sm:$0xff]
        %v878 = vld [vmem:[%s435 + $0x48] sm:$0xff]
        %v879 = vld [vmem:[%s435 + $0x50] sm:$0xff]
        %v880 = vld [vmem:[%s435 + $0x58] sm:$0xff]
        %v881 = vld [vmem:[%s435 + $0x60] sm:$0xff]
        %v882 = vld [vmem:[%s435 + $0x68] sm:$0xff]
        %v883 = vld [vmem:[%s435 + $0x70] sm:$0xff]
        %v884 = vld [vmem:[%s435 + $0x78] sm:$0xff]
        %v885 = vld [vmem:[%s435 + $0x80] sm:$0xff]
        %v886 = vld [vmem:[%s435 + $0x88] sm:$0xff]
        %v887 = vld [vmem:[%s435 + $0x90] sm:$0xff]
        %v888 = vld [vmem:[%s435 + $0x98] sm:$0xff]
        %v889 = vld [vmem:[%s435 + $0xa0] sm:$0xff]
        %v890 = vld [vmem:[%s435 + $0xa8] sm:$0xff]
        %v891 = vld [vmem:[%s435 + $0xb0] sm:$0xff]
        %v892 = vld [vmem:[%s435 + $0xb8] sm:$0xff]
        %v893 = vld [vmem:[%s435 + $0xc0] sm:$0xff]
        %v894 = vld [vmem:[%s435 + $0xc8] sm:$0xff]
        %v895 = vld [vmem:[%s435 + $0xd0] sm:$0xff]
        %v896 = vld [vmem:[%s435 + $0xd8] sm:$0xff]
        %v897 = vld [vmem:[%s435 + $0xe0] sm:$0xff]
        %v898 = vld [vmem:[%s435 + $0xe8] sm:$0xff]
        %v899 = vld [vmem:[%s435 + $0xf0] sm:$0xff]
        %v900 = vld [vmem:[%s435 + $0xf8] sm:$0xff]
        %v933 = vunpack.c.l.b16 %v869
        %v934 = vunpack.c.h.b16 %v869
        %v935 = vunpack.c.l.b16 %v870
        %v936 = vunpack.c.h.b16 %v870
        %v937 = vunpack.c.l.b16 %v871
        %v938 = vunpack.c.h.b16 %v871
        %v939 = vunpack.c.l.b16 %v872
        %v940 = vunpack.c.h.b16 %v872
        %v941 = vunpack.c.l.b16 %v873
        %v942 = vunpack.c.h.b16 %v873
        %v943 = vunpack.c.l.b16 %v874
        %v944 = vunpack.c.h.b16 %v874
        %v945 = vunpack.c.l.b16 %v875
        %v946 = vunpack.c.h.b16 %v875
        %v947 = vunpack.c.l.b16 %v876
        %v948 = vunpack.c.h.b16 %v876
        %v949 = vunpack.c.l.b16 %v877
        %v950 = vunpack.c.h.b16 %v877
        %v951 = vunpack.c.l.b16 %v878
        %v952 = vunpack.c.h.b16 %v878
        %v953 = vunpack.c.l.b16 %v879
        %v954 = vunpack.c.h.b16 %v879
        %v955 = vunpack.c.l.b16 %v880
        %v956 = vunpack.c.h.b16 %v880
        %v957 = vunpack.c.l.b16 %v881
        %v958 = vunpack.c.h.b16 %v881
        %v959 = vunpack.c.l.b16 %v882
        %v960 = vunpack.c.h.b16 %v882
        %v961 = vunpack.c.l.b16 %v883
        %v962 = vunpack.c.h.b16 %v883
        %v963 = vunpack.c.l.b16 %v884
        %v964 = vunpack.c.h.b16 %v884
        %v965 = vunpack.c.l.b16 %v885
        %v966 = vunpack.c.h.b16 %v885
        %v967 = vunpack.c.l.b16 %v886
        %v968 = vunpack.c.h.b16 %v886
        %v969 = vunpack.c.l.b16 %v887
        %v970 = vunpack.c.h.b16 %v887
        %v971 = vunpack.c.l.b16 %v888
        %v972 = vunpack.c.h.b16 %v888
        %v973 = vunpack.c.l.b16 %v889
        %v974 = vunpack.c.h.b16 %v889
        %v975 = vunpack.c.l.b16 %v890
        %v976 = vunpack.c.h.b16 %v890
        %v977 = vunpack.c.l.b16 %v891
        %v978 = vunpack.c.h.b16 %v891
        %v979 = vunpack.c.l.b16 %v892
        %v980 = vunpack.c.h.b16 %v892
        %v981 = vunpack.c.l.b16 %v893
        %v982 = vunpack.c.h.b16 %v893
        %v983 = vunpack.c.l.b16 %v894
        %v984 = vunpack.c.h.b16 %v894
        %v985 = vunpack.c.l.b16 %v895
        %v986 = vunpack.c.h.b16 %v895
        %v987 = vunpack.c.l.b16 %v896
        %v988 = vunpack.c.h.b16 %v896
        %v989 = vunpack.c.l.b16 %v897
        %v990 = vunpack.c.h.b16 %v897
        %v991 = vunpack.c.l.b16 %v898
        %v992 = vunpack.c.h.b16 %v898
        %v993 = vunpack.c.l.b16 %v899
        %v994 = vunpack.c.h.b16 %v899
        %v995 = vunpack.c.l.b16 %v900
        %v996 = vunpack.c.h.b16 %v900
        %v997 = vpack.c.b16 %v935, %v933
        %v998 = vpack.c.b16 %v936, %v934
        %v999 = vpack.c.b16 %v939, %v937
        %v1000 = vpack.c.b16 %v940, %v938
        %v1001 = vpack.c.b16 %v943, %v941
        %v1002 = vpack.c.b16 %v944, %v942
        %v1003 = vpack.c.b16 %v947, %v945
        %v1004 = vpack.c.b16 %v948, %v946
        %v1005 = vpack.c.b16 %v951, %v949
        %v1006 = vpack.c.b16 %v952, %v950
        %v1007 = vpack.c.b16 %v955, %v953
        %v1008 = vpack.c.b16 %v956, %v954
        %v1009 = vpack.c.b16 %v959, %v957
        %v1010 = vpack.c.b16 %v960, %v958
        %v1011 = vpack.c.b16 %v963, %v961
        %v1012 = vpack.c.b16 %v964, %v962
        %v1013 = vpack.c.b16 %v967, %v965
        %v1014 = vpack.c.b16 %v968, %v966
        %v1015 = vpack.c.b16 %v971, %v969
        %v1016 = vpack.c.b16 %v972, %v970
        %v1017 = vpack.c.b16 %v975, %v973
        %v1018 = vpack.c.b16 %v976, %v974
        %v1019 = vpack.c.b16 %v979, %v977
        %v1020 = vpack.c.b16 %v980, %v978
        %v1021 = vpack.c.b16 %v983, %v981
        %v1022 = vpack.c.b16 %v984, %v982
        %v1023 = vpack.c.b16 %v987, %v985
        %v1024 = vpack.c.b16 %v988, %v986
        %v1025 = vpack.c.b16 %v991, %v989
        %v1026 = vpack.c.b16 %v992, %v990
        %v1027 = vpack.c.b16 %v995, %v993
        %v1028 = vpack.c.b16 %v996, %v994
        %1061 = vmatprep.subr.bf16.mxu0 0
        %1062 = vmatpush1.bf16.msra.mxu0 %v853
        %1063 = vmatprep.subr.bf16.mxu0 0
        %1064 = vmatpush1.bf16.msra.mxu0 %v854
        %1065 = vmatprep.subr.bf16.mxu0 0
        %1066 = vmatpush1.bf16.msra.mxu0 %v855
        %1067 = vmatprep.subr.bf16.mxu0 0
        %1068 = vmatpush1.bf16.msra.mxu0 %v856
        %1069 = vmatprep.subr.bf16.mxu0 0
        %1070 = vmatpush1.bf16.msra.mxu0 %v857
        %1071 = vmatprep.subr.bf16.mxu0 0
        %1072 = vmatpush1.bf16.msra.mxu0 %v858
        %1073 = vmatprep.subr.bf16.mxu0 0
        %1074 = vmatpush1.bf16.msra.mxu0 %v859
        %1075 = vmatprep.subr.bf16.mxu0 0
        %1076 = vmatpush1.bf16.msra.mxu0 %v860
        %1077 = vmatprep.subr.bf16.mxu0 0
        %1078 = vmatpush1.bf16.msra.mxu0 %v861
        %1079 = vmatprep.subr.bf16.mxu0 0
        %1080 = vmatpush1.bf16.msra.mxu0 %v862
        %1081 = vmatprep.subr.bf16.mxu0 0
        %1082 = vmatpush1.bf16.msra.mxu0 %v863
        %1083 = vmatprep.subr.bf16.mxu0 0
        %1084 = vmatpush1.bf16.msra.mxu0 %v864
        %1085 = vmatprep.subr.bf16.mxu0 0
        %1086 = vmatpush1.bf16.msra.mxu0 %v865
        %1087 = vmatprep.subr.bf16.mxu0 0
        %1088 = vmatpush1.bf16.msra.mxu0 %v866
        %1089 = vmatprep.subr.bf16.mxu0 0
        %1090 = vmatpush1.bf16.msra.mxu0 %v867
        %1091 = vmatprep.subr.bf16.mxu0 0
        %1092 = vmatpush1.bf16.msra.mxu0 %v868
        %1093 = vmatprep.mubr.bf16.mxu0 %v998
        %1094 = vmatmul.mubr.bf16.gmra.mrb[0].mxu0 %v997
        %v1095 = vpop.f32.mrb[0].mxu0
        %v1096 = vadd.f32 0.0, %v1095
        %v1097 = vpop.f32.mrb[0].mxu0
        %v1098 = vpop.f32.mrb[0].mxu0
        %v1099 = vadd.f32 0.0, %v1098
        %v1100 = vpop.f32.mrb[0].mxu0
        %1101 = vmatprep.mubr.bf16.mxu0 %v1000
        %1102 = vmatmul.mubr.bf16.gmra.mrb[0].mxu0 %v999
        %v1103 = vpop.f32.mrb[0].mxu0
        %v1104 = vadd.f32 0.0, %v1103
        %v1105 = vpop.f32.mrb[0].mxu0
        %v1106 = vpop.f32.mrb[0].mxu0
        %v1107 = vadd.f32 0.0, %v1106
        %v1108 = vpop.f32.mrb[0].mxu0
        %1109 = vmatprep.mubr.bf16.mxu0 %v1002
        %1110 = vmatmul.mubr.bf16.gmra.mrb[0].mxu0 %v1001
        %v1111 = vpop.f32.mrb[0].mxu0
        %v1112 = vadd.f32 0.0, %v1111
        %v1113 = vpop.f32.mrb[0].mxu0
        %v1114 = vpop.f32.mrb[0].mxu0
        %v1115 = vadd.f32 0.0, %v1114
        %v1116 = vpop.f32.mrb[0].mxu0
        %1117 = vmatprep.mubr.bf16.mxu0 %v1004
        %1118 = vmatmul.mubr.bf16.gmra.mrb[0].mxu0 %v1003
        %v1119 = vpop.f32.mrb[0].mxu0
        %v1120 = vadd.f32 0.0, %v1119
        %v1121 = vpop.f32.mrb[0].mxu0
        %v1122 = vpop.f32.mrb[0].mxu0
        %v1123 = vadd.f32 0.0, %v1122
        %v1124 = vpop.f32.mrb[0].mxu0
        %1125 = vmatprep.mubr.bf16.mxu0 %v1006
        %1126 = vmatmul.mubr.bf16.gmra.mrb[0].mxu0 %v1005
        %v1127 = vpop.f32.mrb[0].mxu0
        %v1128 = vadd.f32 0.0, %v1127
        %v1129 = vpop.f32.mrb[0].mxu0
        %v1130 = vpop.f32.mrb[0].mxu0
        %v1131 = vadd.f32 0.0, %v1130
        %v1132 = vpop.f32.mrb[0].mxu0
        %1133 = vmatprep.mubr.bf16.mxu0 %v1008
        %1134 = vmatmul.mubr.bf16.gmra.mrb[0].mxu0 %v1007
        %v1135 = vpop.f32.mrb[0].mxu0
        %v1136 = vadd.f32 0.0, %v1135
        %v1137 = vpop.f32.mrb[0].mxu0
        %v1138 = vpop.f32.mrb[0].mxu0
        %v1139 = vadd.f32 0.0, %v1138
        %v1140 = vpop.f32.mrb[0].mxu0
        %1141 = vmatprep.mubr.bf16.mxu0 %v1010
        %1142 = vmatmul.mubr.bf16.gmra.mrb[0].mxu0 %v1009
        %v1143 = vpop.f32.mrb[0].mxu0
        %v1144 = vadd.f32 0.0, %v1143
        %v1145 = vpop.f32.mrb[0].mxu0
        %v1146 = vpop.f32.mrb[0].mxu0
        %v1147 = vadd.f32 0.0, %v1146
        %v1148 = vpop.f32.mrb[0].mxu0
        %1149 = vmatprep.mubr.bf16.mxu0 %v1012
        %1150 = vmatmul.mubr.bf16.gmra.mrb[0].mxu0 %v1011
        %v1151 = vpop.f32.mrb[0].mxu0
        %v1152 = vadd.f32 0.0, %v1151
        %v1153 = vpop.f32.mrb[0].mxu0
        %v1154 = vpop.f32.mrb[0].mxu0
        %v1155 = vadd.f32 0.0, %v1154
        %v1156 = vpop.f32.mrb[0].mxu0
        %1157 = vmatprep.mubr.bf16.mxu0 %v1014
        %1158 = vmatmul.mubr.bf16.gmra.mrb[0].mxu0 %v1013
        %v1159 = vpop.f32.mrb[0].mxu0
        %v1160 = vadd.f32 0.0, %v1159
        %v1161 = vpop.f32.mrb[0].mxu0
        %v1162 = vpop.f32.mrb[0].mxu0
        %v1163 = vadd.f32 0.0, %v1162
        %v1164 = vpop.f32.mrb[0].mxu0
        %1165 = vmatprep.mubr.bf16.mxu0 %v1016
        %1166 = vmatmul.mubr.bf16.gmra.mrb[0].mxu0 %v1015
        %v1167 = vpop.f32.mrb[0].mxu0
        %v1168 = vadd.f32 0.0, %v1167
        %v1169 = vpop.f32.mrb[0].mxu0
        %v1170 = vpop.f32.mrb[0].mxu0
        %v1171 = vadd.f32 0.0, %v1170
        %v1172 = vpop.f32.mrb[0].mxu0
        %1173 = vmatprep.mubr.bf16.mxu0 %v1018
        %1174 = vmatmul.mubr.bf16.gmra.mrb[0].mxu0 %v1017
        %v1175 = vpop.f32.mrb[0].mxu0
        %v1176 = vadd.f32 0.0, %v1175
        %v1177 = vpop.f32.mrb[0].mxu0
        %v1178 = vpop.f32.mrb[0].mxu0
        %v1179 = vadd.f32 0.0, %v1178
        %v1180 = vpop.f32.mrb[0].mxu0
        %1181 = vmatprep.mubr.bf16.mxu0 %v1020
        %1182 = vmatmul.mubr.bf16.gmra.mrb[0].mxu0 %v1019
        %v1183 = vpop.f32.mrb[0].mxu0
        %v1184 = vadd.f32 0.0, %v1183
        %v1185 = vpop.f32.mrb[0].mxu0
        %v1186 = vpop.f32.mrb[0].mxu0
        %v1187 = vadd.f32 0.0, %v1186
        %v1188 = vpop.f32.mrb[0].mxu0
        %1189 = vmatprep.mubr.bf16.mxu0 %v1022
        %1190 = vmatmul.mubr.bf16.gmra.mrb[0].mxu0 %v1021
        %v1191 = vpop.f32.mrb[0].mxu0
        %v1192 = vadd.f32 0.0, %v1191
        %v1193 = vpop.f32.mrb[0].mxu0
        %v1194 = vpop.f32.mrb[0].mxu0
        %v1195 = vadd.f32 0.0, %v1194
        %v1196 = vpop.f32.mrb[0].mxu0
        %1197 = vmatprep.mubr.bf16.mxu0 %v1024
        %1198 = vmatmul.mubr.bf16.gmra.mrb[0].mxu0 %v1023
        %v1199 = vpop.f32.mrb[0].mxu0
        %v1200 = vadd.f32 0.0, %v1199
        %v1201 = vpop.f32.mrb[0].mxu0
        %v1202 = vpop.f32.mrb[0].mxu0
        %v1203 = vadd.f32 0.0, %v1202
        %v1204 = vpop.f32.mrb[0].mxu0
        %1205 = vmatprep.mubr.bf16.mxu0 %v1026
        %1206 = vmatmul.mubr.bf16.gmra.mrb[0].mxu0 %v1025
        %v1207 = vpop.f32.mrb[0].mxu0
        %v1208 = vadd.f32 0.0, %v1207
        %v1209 = vpop.f32.mrb[0].mxu0
        %v1210 = vpop.f32.mrb[0].mxu0
        %v1211 = vadd.f32 0.0, %v1210
        %v1212 = vpop.f32.mrb[0].mxu0
        %1213 = vmatprep.mubr.bf16.mxu0 %v1028
        %1214 = vmatmul.mubr.bf16.gmra.mrb[0].mxu0 %v1027
        %v1215 = vpop.f32.mrb[0].mxu0
        %v1216 = vadd.f32 0.0, %v1215
        %v1217 = vpop.f32.mrb[0].mxu0
        %v1218 = vpop.f32.mrb[0].mxu0
        %v1219 = vadd.f32 0.0, %v1218
        %v1220 = vpop.f32.mrb[0].mxu0
        %1221 = vdwg.mxu0
        %p1222 = scmp.eq.s32.totalorder %s24, 0
        // Predicated region
        $region83: #{jknet_forward.3} parent=77 // pred_check
          %p1223 = pneg %p1222
        $region84: #{jknet_forward.3} parent=77 // pred_check_branch
          %1225 = sbr.rel (%p1223) target = $region86
        $region85: #{jknet_forward.3} parent=77 // pred_region
          %1226 = vst [vmem:[#allocation2] sm:$0xff] %v1096
          %1227 = vst [vmem:[#allocation2 + $0x8] sm:$0xff] %v1099
          %1228 = vst [vmem:[#allocation2 + $0x10] sm:$0xff] %v1104
          %1229 = vst [vmem:[#allocation2 + $0x18] sm:$0xff] %v1107
          %1230 = vst [vmem:[#allocation2 + $0x20] sm:$0xff] %v1112
          %1231 = vst [vmem:[#allocation2 + $0x28] sm:$0xff] %v1115
          %1232 = vst [vmem:[#allocation2 + $0x30] sm:$0xff] %v1120
          %1233 = vst [vmem:[#allocation2 + $0x38] sm:$0xff] %v1123
          %1234 = vst [vmem:[#allocation2 + $0x40] sm:$0xff] %v1128
          %1235 = vst [vmem:[#allocation2 + $0x48] sm:$0xff] %v1131
          %1236 = vst [vmem:[#allocation2 + $0x50] sm:$0xff] %v1136
          %1237 = vst [vmem:[#allocation2 + $0x58] sm:$0xff] %v1139
          %1238 = vst [vmem:[#allocation2 + $0x60] sm:$0xff] %v1144
          %1239 = vst [vmem:[#allocation2 + $0x68] sm:$0xff] %v1147
          %1240 = vst [vmem:[#allocation2 + $0x70] sm:$0xff] %v1152
          %1241 = vst [vmem:[#allocation2 + $0x78] sm:$0xff] %v1155
          %1242 = vst [vmem:[#allocation2 + $0x80] sm:$0xff] %v1160
          %1243 = vst [vmem:[#allocation2 + $0x88] sm:$0xff] %v1163
          %1244 = vst [vmem:[#allocation2 + $0x90] sm:$0xff] %v1168
          %1245 = vst [vmem:[#allocation2 + $0x98] sm:$0xff] %v1171
          %1246 = vst [vmem:[#allocation2 + $0xa0] sm:$0xff] %v1176
          %1247 = vst [vmem:[#allocation2 + $0xa8] sm:$0xff] %v1179
          %1248 = vst [vmem:[#allocation2 + $0xb0] sm:$0xff] %v1184
          %1249 = vst [vmem:[#allocation2 + $0xb8] sm:$0xff] %v1187
          %1250 = vst [vmem:[#allocation2 + $0xc0] sm:$0xff] %v1192
          %1251 = vst [vmem:[#allocation2 + $0xc8] sm:$0xff] %v1195
          %1252 = vst [vmem:[#allocation2 + $0xd0] sm:$0xff] %v1200
          %1253 = vst [vmem:[#allocation2 + $0xd8] sm:$0xff] %v1203
          %1254 = vst [vmem:[#allocation2 + $0xe0] sm:$0xff] %v1208
          %1255 = vst [vmem:[#allocation2 + $0xe8] sm:$0xff] %v1211
          %1256 = vst [vmem:[#allocation2 + $0xf0] sm:$0xff] %v1216
          %1257 = vst [vmem:[#allocation2 + $0xf8] sm:$0xff] %v1219
        $region86: #{jknet_forward.3} parent=77 // pred_fallthru
          _
        %p1258 = scmp.gt.s32.totalorder %s24, 0
        // Predicated region
        $region87: #{jknet_forward.3} parent=77 // pred_check
          %p1259 = pneg %p1258
        $region88: #{jknet_forward.3} parent=77 // pred_check_branch
          %1261 = sbr.rel (%p1259) target = $region90
        $region89: #{jknet_forward.3} parent=77 // pred_region
          %v1262 = vld [vmem:[#allocation2] sm:$0xff]
          %v1263 = vld [vmem:[#allocation2 + $0x8] sm:$0xff]
          %v1264 = vld [vmem:[#allocation2 + $0x10] sm:$0xff]
          %v1265 = vld [vmem:[#allocation2 + $0x18] sm:$0xff]
          %v1266 = vld [vmem:[#allocation2 + $0x20] sm:$0xff]
          %v1267 = vld [vmem:[#allocation2 + $0x28] sm:$0xff]
          %v1268 = vld [vmem:[#allocation2 + $0x30] sm:$0xff]
          %v1269 = vld [vmem:[#allocation2 + $0x38] sm:$0xff]
          %v1270 = vld [vmem:[#allocation2 + $0x40] sm:$0xff]
          %v1271 = vld [vmem:[#allocation2 + $0x48] sm:$0xff]
          %v1272 = vld [vmem:[#allocation2 + $0x50] sm:$0xff]
          %v1273 = vld [vmem:[#allocation2 + $0x58] sm:$0xff]
          %v1274 = vld [vmem:[#allocation2 + $0x60] sm:$0xff]
          %v1275 = vld [vmem:[#allocation2 + $0x68] sm:$0xff]
          %v1276 = vld [vmem:[#allocation2 + $0x70] sm:$0xff]
          %v1277 = vld [vmem:[#allocation2 + $0x78] sm:$0xff]
          %v1278 = vld [vmem:[#allocation2 + $0x80] sm:$0xff]
          %v1279 = vld [vmem:[#allocation2 + $0x88] sm:$0xff]
          %v1280 = vld [vmem:[#allocation2 + $0x90] sm:$0xff]
          %v1281 = vld [vmem:[#allocation2 + $0x98] sm:$0xff]
          %v1282 = vld [vmem:[#allocation2 + $0xa0] sm:$0xff]
          %v1283 = vld [vmem:[#allocation2 + $0xa8] sm:$0xff]
          %v1284 = vld [vmem:[#allocation2 + $0xb0] sm:$0xff]
          %v1285 = vld [vmem:[#allocation2 + $0xb8] sm:$0xff]
          %v1286 = vld [vmem:[#allocation2 + $0xc0] sm:$0xff]
          %v1287 = vld [vmem:[#allocation2 + $0xc8] sm:$0xff]
          %v1288 = vld [vmem:[#allocation2 + $0xd0] sm:$0xff]
          %v1289 = vld [vmem:[#allocation2 + $0xd8] sm:$0xff]
          %v1290 = vld [vmem:[#allocation2 + $0xe0] sm:$0xff]
          %v1291 = vld [vmem:[#allocation2 + $0xe8] sm:$0xff]
          %v1292 = vld [vmem:[#allocation2 + $0xf0] sm:$0xff]
          %v1293 = vld [vmem:[#allocation2 + $0xf8] sm:$0xff]
          %v1294 = vadd.f32 %v1262, %v1096
          %v1295 = vadd.f32 %v1263, %v1099
          %v1296 = vadd.f32 %v1264, %v1104
          %v1297 = vadd.f32 %v1265, %v1107
          %v1298 = vadd.f32 %v1266, %v1112
          %v1299 = vadd.f32 %v1267, %v1115
          %v1300 = vadd.f32 %v1268, %v1120
          %v1301 = vadd.f32 %v1269, %v1123
          %v1302 = vadd.f32 %v1270, %v1128
          %v1303 = vadd.f32 %v1271, %v1131
          %v1304 = vadd.f32 %v1272, %v1136
          %v1305 = vadd.f32 %v1273, %v1139
          %v1306 = vadd.f32 %v1274, %v1144
          %v1307 = vadd.f32 %v1275, %v1147
          %v1308 = vadd.f32 %v1276, %v1152
          %v1309 = vadd.f32 %v1277, %v1155
          %v1310 = vadd.f32 %v1278, %v1160
          %v1311 = vadd.f32 %v1279, %v1163
          %v1312 = vadd.f32 %v1280, %v1168
          %v1313 = vadd.f32 %v1281, %v1171
          %v1314 = vadd.f32 %v1282, %v1176
          %v1315 = vadd.f32 %v1283, %v1179
          %v1316 = vadd.f32 %v1284, %v1184
          %v1317 = vadd.f32 %v1285, %v1187
          %v1318 = vadd.f32 %v1286, %v1192
          %v1319 = vadd.f32 %v1287, %v1195
          %v1320 = vadd.f32 %v1288, %v1200
          %v1321 = vadd.f32 %v1289, %v1203
          %v1322 = vadd.f32 %v1290, %v1208
          %v1323 = vadd.f32 %v1291, %v1211
          %v1324 = vadd.f32 %v1292, %v1216
          %v1325 = vadd.f32 %v1293, %v1219
          %1326 = vst [vmem:[#allocation2] sm:$0xff] %v1294
          %1327 = vst [vmem:[#allocation2 + $0x8] sm:$0xff] %v1295
          %1328 = vst [vmem:[#allocation2 + $0x10] sm:$0xff] %v1296
          %1329 = vst [vmem:[#allocation2 + $0x18] sm:$0xff] %v1297
          %1330 = vst [vmem:[#allocation2 + $0x20] sm:$0xff] %v1298
          %1331 = vst [vmem:[#allocation2 + $0x28] sm:$0xff] %v1299
          %1332 = vst [vmem:[#allocation2 + $0x30] sm:$0xff] %v1300
          %1333 = vst [vmem:[#allocation2 + $0x38] sm:$0xff] %v1301
          %1334 = vst [vmem:[#allocation2 + $0x40] sm:$0xff] %v1302
          %1335 = vst [vmem:[#allocation2 + $0x48] sm:$0xff] %v1303
          %1336 = vst [vmem:[#allocation2 + $0x50] sm:$0xff] %v1304
          %1337 = vst [vmem:[#allocation2 + $0x58] sm:$0xff] %v1305
          %1338 = vst [vmem:[#allocation2 + $0x60] sm:$0xff] %v1306
          %1339 = vst [vmem:[#allocation2 + $0x68] sm:$0xff] %v1307
          %1340 = vst [vmem:[#allocation2 + $0x70] sm:$0xff] %v1308
          %1341 = vst [vmem:[#allocation2 + $0x78] sm:$0xff] %v1309
          %1342 = vst [vmem:[#allocation2 + $0x80] sm:$0xff] %v1310
          %1343 = vst [vmem:[#allocation2 + $0x88] sm:$0xff] %v1311
          %1344 = vst [vmem:[#allocation2 + $0x90] sm:$0xff] %v1312
          %1345 = vst [vmem:[#allocation2 + $0x98] sm:$0xff] %v1313
          %1346 = vst [vmem:[#allocation2 + $0xa0] sm:$0xff] %v1314
          %1347 = vst [vmem:[#allocation2 + $0xa8] sm:$0xff] %v1315
          %1348 = vst [vmem:[#allocation2 + $0xb0] sm:$0xff] %v1316
          %1349 = vst [vmem:[#allocation2 + $0xb8] sm:$0xff] %v1317
          %1350 = vst [vmem:[#allocation2 + $0xc0] sm:$0xff] %v1318
          %1351 = vst [vmem:[#allocation2 + $0xc8] sm:$0xff] %v1319
          %1352 = vst [vmem:[#allocation2 + $0xd0] sm:$0xff] %v1320
          %1353 = vst [vmem:[#allocation2 + $0xd8] sm:$0xff] %v1321
          %1354 = vst [vmem:[#allocation2 + $0xe0] sm:$0xff] %v1322
          %1355 = vst [vmem:[#allocation2 + $0xe8] sm:$0xff] %v1323
          %1356 = vst [vmem:[#allocation2 + $0xf0] sm:$0xff] %v1324
          %1357 = vst [vmem:[#allocation2 + $0xf8] sm:$0xff] %v1325
        $region90: #{jknet_forward.3} parent=77 // pred_fallthru
          _
        %p1358 = scmp.eq.s32.totalorder %s24, 2
        // Predicated region
        $region91: #{jknet_forward.3} parent=77 // pred_check
          %p1359 = pneg %p1358
        $region92: #{jknet_forward.3} parent=77 // pred_check_branch
          %1361 = sbr.rel (%p1359) target = $region94
        $region93: #{jknet_forward.3} parent=77 // pred_region
          %v1362 = vld [vmem:[#allocation2] sm:$0xff]
          %v1363 = vld [vmem:[#allocation2 + $0x8] sm:$0xff]
          %v1364 = vld [vmem:[#allocation2 + $0x10] sm:$0xff]
          %v1365 = vld [vmem:[#allocation2 + $0x18] sm:$0xff]
          %v1366 = vld [vmem:[#allocation2 + $0x20] sm:$0xff]
          %v1367 = vld [vmem:[#allocation2 + $0x28] sm:$0xff]
          %v1368 = vld [vmem:[#allocation2 + $0x30] sm:$0xff]
          %v1369 = vld [vmem:[#allocation2 + $0x38] sm:$0xff]
          %v1370 = vld [vmem:[#allocation2 + $0x40] sm:$0xff]
          %v1371 = vld [vmem:[#allocation2 + $0x48] sm:$0xff]
          %v1372 = vld [vmem:[#allocation2 + $0x50] sm:$0xff]
          %v1373 = vld [vmem:[#allocation2 + $0x58] sm:$0xff]
          %v1374 = vld [vmem:[#allocation2 + $0x60] sm:$0xff]
          %v1375 = vld [vmem:[#allocation2 + $0x68] sm:$0xff]
          %v1376 = vld [vmem:[#allocation2 + $0x70] sm:$0xff]
          %v1377 = vld [vmem:[#allocation2 + $0x78] sm:$0xff]
          %v1378 = vld [vmem:[#allocation2 + $0x80] sm:$0xff]
          %v1379 = vld [vmem:[#allocation2 + $0x88] sm:$0xff]
          %v1380 = vld [vmem:[#allocation2 + $0x90] sm:$0xff]
          %v1381 = vld [vmem:[#allocation2 + $0x98] sm:$0xff]
          %v1382 = vld [vmem:[#allocation2 + $0xa0] sm:$0xff]
          %v1383 = vld [vmem:[#allocation2 + $0xa8] sm:$0xff]
          %v1384 = vld [vmem:[#allocation2 + $0xb0] sm:$0xff]
          %v1385 = vld [vmem:[#allocation2 + $0xb8] sm:$0xff]
          %v1386 = vld [vmem:[#allocation2 + $0xc0] sm:$0xff]
          %v1387 = vld [vmem:[#allocation2 + $0xc8] sm:$0xff]
          %v1388 = vld [vmem:[#allocation2 + $0xd0] sm:$0xff]
          %v1389 = vld [vmem:[#allocation2 + $0xd8] sm:$0xff]
          %v1390 = vld [vmem:[#allocation2 + $0xe0] sm:$0xff]
          %v1391 = vld [vmem:[#allocation2 + $0xe8] sm:$0xff]
          %v1392 = vld [vmem:[#allocation2 + $0xf0] sm:$0xff]
          %v1393 = vld [vmem:[#allocation2 + $0xf8] sm:$0xff]
          %v1394 = vld [vmem:[%s3] sm:$0x1]
          %v1396 = vlaneseq
          %v1397 = vshrl.u32 %v1396, 7
          %v1398 = vsub.s32 0, %v1397
          %v1399 = vrot.slane %v1394, %v1398
          %v1401 = vadd.f32 %v1362, %v1399
          %v1402 = vadd.f32 %v1363, %v1399
          %v1403 = vadd.f32 %v1364, %v1399
          %v1404 = vadd.f32 %v1365, %v1399
          %v1405 = vadd.f32 %v1366, %v1399
          %v1406 = vadd.f32 %v1367, %v1399
          %v1407 = vadd.f32 %v1368, %v1399
          %v1408 = vadd.f32 %v1369, %v1399
          %v1409 = vadd.f32 %v1370, %v1399
          %v1410 = vadd.f32 %v1371, %v1399
          %v1411 = vadd.f32 %v1372, %v1399
          %v1412 = vadd.f32 %v1373, %v1399
          %v1413 = vadd.f32 %v1374, %v1399
          %v1414 = vadd.f32 %v1375, %v1399
          %v1415 = vadd.f32 %v1376, %v1399
          %v1416 = vadd.f32 %v1377, %v1399
          %v1417 = vadd.f32 %v1378, %v1399
          %v1418 = vadd.f32 %v1379, %v1399
          %v1419 = vadd.f32 %v1380, %v1399
          %v1420 = vadd.f32 %v1381, %v1399
          %v1421 = vadd.f32 %v1382, %v1399
          %v1422 = vadd.f32 %v1383, %v1399
          %v1423 = vadd.f32 %v1384, %v1399
          %v1424 = vadd.f32 %v1385, %v1399
          %v1425 = vadd.f32 %v1386, %v1399
          %v1426 = vadd.f32 %v1387, %v1399
          %v1427 = vadd.f32 %v1388, %v1399
          %v1428 = vadd.f32 %v1389, %v1399
          %v1429 = vadd.f32 %v1390, %v1399
          %v1430 = vadd.f32 %v1391, %v1399
          %v1431 = vadd.f32 %v1392, %v1399
          %v1432 = vadd.f32 %v1393, %v1399
          %v1433 = vmax.f32 %v1401, 0.0
          %v1434 = vmax.f32 %v1402, 0.0
          %v1435 = vmax.f32 %v1403, 0.0
          %v1436 = vmax.f32 %v1404, 0.0
          %v1437 = vmax.f32 %v1405, 0.0
          %v1438 = vmax.f32 %v1406, 0.0
          %v1439 = vmax.f32 %v1407, 0.0
          %v1440 = vmax.f32 %v1408, 0.0
          %v1441 = vmax.f32 %v1409, 0.0
          %v1442 = vmax.f32 %v1410, 0.0
          %v1443 = vmax.f32 %v1411, 0.0
          %v1444 = vmax.f32 %v1412, 0.0
          %v1445 = vmax.f32 %v1413, 0.0
          %v1446 = vmax.f32 %v1414, 0.0
          %v1447 = vmax.f32 %v1415, 0.0
          %v1448 = vmax.f32 %v1416, 0.0
          %v1449 = vmax.f32 %v1417, 0.0
          %v1450 = vmax.f32 %v1418, 0.0
          %v1451 = vmax.f32 %v1419, 0.0
          %v1452 = vmax.f32 %v1420, 0.0
          %v1453 = vmax.f32 %v1421, 0.0
          %v1454 = vmax.f32 %v1422, 0.0
          %v1455 = vmax.f32 %v1423, 0.0
          %v1456 = vmax.f32 %v1424, 0.0
          %v1457 = vmax.f32 %v1425, 0.0
          %v1458 = vmax.f32 %v1426, 0.0
          %v1459 = vmax.f32 %v1427, 0.0
          %v1460 = vmax.f32 %v1428, 0.0
          %v1461 = vmax.f32 %v1429, 0.0
          %v1462 = vmax.f32 %v1430, 0.0
          %v1463 = vmax.f32 %v1431, 0.0
          %v1464 = vmax.f32 %v1432, 0.0
          %v1465 = vpack.c.bf16 %v1434, %v1433
          %v1466 = vpack.c.bf16 %v1436, %v1435
          %v1467 = vpack.c.bf16 %v1438, %v1437
          %v1468 = vpack.c.bf16 %v1440, %v1439
          %v1469 = vpack.c.bf16 %v1442, %v1441
          %v1470 = vpack.c.bf16 %v1444, %v1443
          %v1471 = vpack.c.bf16 %v1446, %v1445
          %v1472 = vpack.c.bf16 %v1448, %v1447
          %v1473 = vpack.c.bf16 %v1450, %v1449
          %v1474 = vpack.c.bf16 %v1452, %v1451
          %v1475 = vpack.c.bf16 %v1454, %v1453
          %v1476 = vpack.c.bf16 %v1456, %v1455
          %v1477 = vpack.c.bf16 %v1458, %v1457
          %v1478 = vpack.c.bf16 %v1460, %v1459
          %v1479 = vpack.c.bf16 %v1462, %v1461
          %v1480 = vpack.c.bf16 %v1464, %v1463
          %v1497 = vunpack.c.l.b16 %v1465
          %v1498 = vunpack.c.h.b16 %v1465
          %v1499 = vunpack.c.l.b16 %v1466
          %v1500 = vunpack.c.h.b16 %v1466
          %v1501 = vunpack.c.l.b16 %v1467
          %v1502 = vunpack.c.h.b16 %v1467
          %v1503 = vunpack.c.l.b16 %v1468
          %v1504 = vunpack.c.h.b16 %v1468
          %v1505 = vunpack.c.l.b16 %v1469
          %v1506 = vunpack.c.h.b16 %v1469
          %v1507 = vunpack.c.l.b16 %v1470
          %v1508 = vunpack.c.h.b16 %v1470
          %v1509 = vunpack.c.l.b16 %v1471
          %v1510 = vunpack.c.h.b16 %v1471
          %v1511 = vunpack.c.l.b16 %v1472
          %v1512 = vunpack.c.h.b16 %v1472
          %v1513 = vunpack.c.l.b16 %v1473
          %v1514 = vunpack.c.h.b16 %v1473
          %v1515 = vunpack.c.l.b16 %v1474
          %v1516 = vunpack.c.h.b16 %v1474
          %v1517 = vunpack.c.l.b16 %v1475
          %v1518 = vunpack.c.h.b16 %v1475
          %v1519 = vunpack.c.l.b16 %v1476
          %v1520 = vunpack.c.h.b16 %v1476
          %v1521 = vunpack.c.l.b16 %v1477
          %v1522 = vunpack.c.h.b16 %v1477
          %v1523 = vunpack.c.l.b16 %v1478
          %v1524 = vunpack.c.h.b16 %v1478
          %v1525 = vunpack.c.l.b16 %v1479
          %v1526 = vunpack.c.h.b16 %v1479
          %v1527 = vunpack.c.l.b16 %v1480
          %v1528 = vunpack.c.h.b16 %v1480
          %v1529 = vpack.c.b16 %v1497, %v1497
          %v1530 = vpack.c.b16 %v1498, %v1498
          %v1531 = vpack.c.b16 %v1499, %v1499
          %v1532 = vpack.c.b16 %v1500, %v1500
          %v1533 = vpack.c.b16 %v1501, %v1501
          %v1534 = vpack.c.b16 %v1502, %v1502
          %v1535 = vpack.c.b16 %v1503, %v1503
          %v1536 = vpack.c.b16 %v1504, %v1504
          %v1537 = vpack.c.b16 %v1505, %v1505
          %v1538 = vpack.c.b16 %v1506, %v1506
          %v1539 = vpack.c.b16 %v1507, %v1507
          %v1540 = vpack.c.b16 %v1508, %v1508
          %v1541 = vpack.c.b16 %v1509, %v1509
          %v1542 = vpack.c.b16 %v1510, %v1510
          %v1543 = vpack.c.b16 %v1511, %v1511
          %v1544 = vpack.c.b16 %v1512, %v1512
          %v1545 = vpack.c.b16 %v1513, %v1513
          %v1546 = vpack.c.b16 %v1514, %v1514
          %v1547 = vpack.c.b16 %v1515, %v1515
          %v1548 = vpack.c.b16 %v1516, %v1516
          %v1549 = vpack.c.b16 %v1517, %v1517
          %v1550 = vpack.c.b16 %v1518, %v1518
          %v1551 = vpack.c.b16 %v1519, %v1519
          %v1552 = vpack.c.b16 %v1520, %v1520
          %v1553 = vpack.c.b16 %v1521, %v1521
          %v1554 = vpack.c.b16 %v1522, %v1522
          %v1555 = vpack.c.b16 %v1523, %v1523
          %v1556 = vpack.c.b16 %v1524, %v1524
          %v1557 = vpack.c.b16 %v1525, %v1525
          %v1558 = vpack.c.b16 %v1526, %v1526
          %v1559 = vpack.c.b16 %v1527, %v1527
          %v1560 = vpack.c.b16 %v1528, %v1528
          %1593 = vst [vmem:[%s486] sm:$0xf] %v1529
          %1594 = vst [vmem:[%s486 + $0x4] sm:$0xf] %v1530
          %1595 = vst [vmem:[%s486 + $0x8] sm:$0xf] %v1531
          %1596 = vst [vmem:[%s486 + $0xc] sm:$0xf] %v1532
          %1597 = vst [vmem:[%s486 + $0x10] sm:$0xf] %v1533
          %1598 = vst [vmem:[%s486 + $0x14] sm:$0xf] %v1534
          %1599 = vst [vmem:[%s486 + $0x18] sm:$0xf] %v1535
          %1600 = vst [vmem:[%s486 + $0x1c] sm:$0xf] %v1536
          %1601 = vst [vmem:[%s486 + $0x20] sm:$0xf] %v1537
          %1602 = vst [vmem:[%s486 + $0x24] sm:$0xf] %v1538
          %1603 = vst [vmem:[%s486 + $0x28] sm:$0xf] %v1539
          %1604 = vst [vmem:[%s486 + $0x2c] sm:$0xf] %v1540
          %1605 = vst [vmem:[%s486 + $0x30] sm:$0xf] %v1541
          %1606 = vst [vmem:[%s486 + $0x34] sm:$0xf] %v1542
          %1607 = vst [vmem:[%s486 + $0x38] sm:$0xf] %v1543
          %1608 = vst [vmem:[%s486 + $0x3c] sm:$0xf] %v1544
          %1609 = vst [vmem:[%s486 + $0x40] sm:$0xf] %v1545
          %1610 = vst [vmem:[%s486 + $0x44] sm:$0xf] %v1546
          %1611 = vst [vmem:[%s486 + $0x48] sm:$0xf] %v1547
          %1612 = vst [vmem:[%s486 + $0x4c] sm:$0xf] %v1548
          %1613 = vst [vmem:[%s486 + $0x50] sm:$0xf] %v1549
          %1614 = vst [vmem:[%s486 + $0x54] sm:$0xf] %v1550
          %1615 = vst [vmem:[%s486 + $0x58] sm:$0xf] %v1551
          %1616 = vst [vmem:[%s486 + $0x5c] sm:$0xf] %v1552
          %1617 = vst [vmem:[%s486 + $0x60] sm:$0xf] %v1553
          %1618 = vst [vmem:[%s486 + $0x64] sm:$0xf] %v1554
          %1619 = vst [vmem:[%s486 + $0x68] sm:$0xf] %v1555
          %1620 = vst [vmem:[%s486 + $0x6c] sm:$0xf] %v1556
          %1621 = vst [vmem:[%s486 + $0x70] sm:$0xf] %v1557
          %1622 = vst [vmem:[%s486 + $0x74] sm:$0xf] %v1558
          %1623 = vst [vmem:[%s486 + $0x78] sm:$0xf] %v1559
          %1624 = vst [vmem:[%s486 + $0x7c] sm:$0xf] %v1560
          %v1625 = vld [vmem:[%s480] sm:$0xff]
          %v1626 = vld [vmem:[%s480 + $0x8] sm:$0xff]
          %v1627 = vld [vmem:[%s480 + $0x10] sm:$0xff]
          %v1628 = vld [vmem:[%s480 + $0x18] sm:$0xff]
          %v1629 = vld [vmem:[%s480 + $0x20] sm:$0xff]
          %v1630 = vld [vmem:[%s480 + $0x28] sm:$0xff]
          %v1631 = vld [vmem:[%s480 + $0x30] sm:$0xff]
          %v1632 = vld [vmem:[%s480 + $0x38] sm:$0xff]
          %v1633 = vld [vmem:[%s480 + $0x40] sm:$0xff]
          %v1634 = vld [vmem:[%s480 + $0x48] sm:$0xff]
          %v1635 = vld [vmem:[%s480 + $0x50] sm:$0xff]
          %v1636 = vld [vmem:[%s480 + $0x58] sm:$0xff]
          %v1637 = vld [vmem:[%s480 + $0x60] sm:$0xff]
          %v1638 = vld [vmem:[%s480 + $0x68] sm:$0xff]
          %v1639 = vld [vmem:[%s480 + $0x70] sm:$0xff]
          %v1640 = vld [vmem:[%s480 + $0x78] sm:$0xff]
          %v1641 = vld [vmem:[%s480 + $0x80] sm:$0xff]
          %v1642 = vld [vmem:[%s480 + $0x88] sm:$0xff]
          %v1643 = vld [vmem:[%s480 + $0x90] sm:$0xff]
          %v1644 = vld [vmem:[%s480 + $0x98] sm:$0xff]
          %v1645 = vld [vmem:[%s480 + $0xa0] sm:$0xff]
          %v1646 = vld [vmem:[%s480 + $0xa8] sm:$0xff]
          %v1647 = vld [vmem:[%s480 + $0xb0] sm:$0xff]
          %v1648 = vld [vmem:[%s480 + $0xb8] sm:$0xff]
          %v1649 = vld [vmem:[%s480 + $0xc0] sm:$0xff]
          %v1650 = vld [vmem:[%s480 + $0xc8] sm:$0xff]
          %v1651 = vld [vmem:[%s480 + $0xd0] sm:$0xff]
          %v1652 = vld [vmem:[%s480 + $0xd8] sm:$0xff]
          %v1653 = vld [vmem:[%s480 + $0xe0] sm:$0xff]
          %v1654 = vld [vmem:[%s480 + $0xe8] sm:$0xff]
          %v1655 = vld [vmem:[%s480 + $0xf0] sm:$0xff]
          %v1656 = vld [vmem:[%s480 + $0xf8] sm:$0xff]
          %v1657 = vld [vmem:[%s4] sm:$0xf]
          %v1658 = vld [vmem:[%s4 + $0x4] sm:$0xf]
          %v1659 = vld [vmem:[%s4 + $0x8] sm:$0xf]
          %v1660 = vld [vmem:[%s4 + $0xc] sm:$0xf]
          %v1661 = vld [vmem:[%s4 + $0x10] sm:$0xf]
          %v1662 = vld [vmem:[%s4 + $0x14] sm:$0xf]
          %v1663 = vld [vmem:[%s4 + $0x18] sm:$0xf]
          %v1664 = vld [vmem:[%s4 + $0x1c] sm:$0xf]
          %v1665 = vld [vmem:[%s4 + $0x20] sm:$0xf]
          %v1666 = vld [vmem:[%s4 + $0x24] sm:$0xf]
          %v1667 = vld [vmem:[%s4 + $0x28] sm:$0xf]
          %v1668 = vld [vmem:[%s4 + $0x2c] sm:$0xf]
          %v1669 = vld [vmem:[%s4 + $0x30] sm:$0xf]
          %v1670 = vld [vmem:[%s4 + $0x34] sm:$0xf]
          %v1671 = vld [vmem:[%s4 + $0x38] sm:$0xf]
          %v1672 = vld [vmem:[%s4 + $0x3c] sm:$0xf]
          %v1689 = vunpack.c.l.b16 %v1657
          %v1690 = vunpack.c.l.b16 %v1658
          %v1691 = vunpack.c.l.b16 %v1659
          %v1692 = vunpack.c.l.b16 %v1660
          %v1693 = vunpack.c.l.b16 %v1661
          %v1694 = vunpack.c.l.b16 %v1662
          %v1695 = vunpack.c.l.b16 %v1663
          %v1696 = vunpack.c.l.b16 %v1664
          %v1697 = vunpack.c.l.b16 %v1665
          %v1698 = vunpack.c.l.b16 %v1666
          %v1699 = vunpack.c.l.b16 %v1667
          %v1700 = vunpack.c.l.b16 %v1668
          %v1701 = vunpack.c.l.b16 %v1669
          %v1702 = vunpack.c.l.b16 %v1670
          %v1703 = vunpack.c.l.b16 %v1671
          %v1704 = vunpack.c.l.b16 %v1672
          %v1705 = vpack.c.b16 %v1690, %v1689
          %v1706 = vpack.c.b16 %v1692, %v1691
          %v1707 = vpack.c.b16 %v1694, %v1693
          %v1708 = vpack.c.b16 %v1696, %v1695
          %v1709 = vpack.c.b16 %v1698, %v1697
          %v1710 = vpack.c.b16 %v1700, %v1699
          %v1711 = vpack.c.b16 %v1702, %v1701
          %v1712 = vpack.c.b16 %v1704, %v1703
          %1721 = vmatprep.subr.bf16.mxu0 0
          %1722 = vmatpush1.bf16.msra.mxu0 %v1705
          %1723 = vmatprep.subr.bf16.mxu0 0
          %1724 = vmatpush1.bf16.msra.mxu0 %v1706
          %1725 = vmatprep.subr.bf16.mxu0 0
          %1726 = vmatpush1.bf16.msra.mxu0 %v1707
          %1727 = vmatprep.subr.bf16.mxu0 0
          %1728 = vmatpush1.bf16.msra.mxu0 %v1708
          %1729 = vmatprep.subr.bf16.mxu0 0
          %1730 = vmatpush1.bf16.msra.mxu0 %v1709
          %1731 = vmatprep.subr.bf16.mxu0 0
          %1732 = vmatpush1.bf16.msra.mxu0 %v1710
          %1733 = vmatprep.subr.bf16.mxu0 0
          %1734 = vmatpush1.bf16.msra.mxu0 %v1711
          %1735 = vmatprep.subr.bf16.mxu0 0
          %1736 = vmatpush1.bf16.msra.mxu0 %v1712
          %1737 = vmatprep.subr.bf16.mxu0 0
          %1738 = vmatpush1.bf16.msra.mxu0 0
          %1739 = vmatprep.subr.bf16.mxu0 0
          %1740 = vmatpush1.bf16.msra.mxu0 0
          %1741 = vmatprep.subr.bf16.mxu0 0
          %1742 = vmatpush1.bf16.msra.mxu0 0
          %1743 = vmatprep.subr.bf16.mxu0 0
          %1744 = vmatpush1.bf16.msra.mxu0 0
          %1745 = vmatprep.subr.bf16.mxu0 0
          %1746 = vmatpush1.bf16.msra.mxu0 0
          %1747 = vmatprep.subr.bf16.mxu0 0
          %1748 = vmatpush1.bf16.msra.mxu0 0
          %1749 = vmatprep.subr.bf16.mxu0 0
          %1750 = vmatpush1.bf16.msra.mxu0 0
          %1751 = vmatprep.subr.bf16.mxu0 0
          %1752 = vmatpush1.bf16.msra.mxu0 0
          %1753 = vmatprep.mubr.bf16.mxu0 0
          %1754 = vmatmul.mubr.bf16.gmra.mrb[0].mxu0 %v1465
          %v1755 = vpop.f32.mrb[0].mxu0
          %v1756 = vadd.f32 0.0, %v1755
          %v1757 = vpop.f32.mrb[0].mxu0
          %v1758 = vpop.f32.mrb[0].mxu0
          %v1759 = vadd.f32 0.0, %v1758
          %v1760 = vpop.f32.mrb[0].mxu0
          %1761 = vmatprep.mubr.bf16.mxu0 0
          %1762 = vmatmul.mubr.bf16.gmra.mrb[0].mxu0 %v1466
          %v1763 = vpop.f32.mrb[0].mxu0
          %v1764 = vadd.f32 0.0, %v1763
          %v1765 = vpop.f32.mrb[0].mxu0
          %v1766 = vpop.f32.mrb[0].mxu0
          %v1767 = vadd.f32 0.0, %v1766
          %v1768 = vpop.f32.mrb[0].mxu0
          %1769 = vmatprep.mubr.bf16.mxu0 0
          %1770 = vmatmul.mubr.bf16.gmra.mrb[0].mxu0 %v1467
          %v1771 = vpop.f32.mrb[0].mxu0
          %v1772 = vadd.f32 0.0, %v1771
          %v1773 = vpop.f32.mrb[0].mxu0
          %v1774 = vpop.f32.mrb[0].mxu0
          %v1775 = vadd.f32 0.0, %v1774
          %v1776 = vpop.f32.mrb[0].mxu0
          %1777 = vmatprep.mubr.bf16.mxu0 0
          %1778 = vmatmul.mubr.bf16.gmra.mrb[0].mxu0 %v1468
          %v1779 = vpop.f32.mrb[0].mxu0
          %v1780 = vadd.f32 0.0, %v1779
          %v1781 = vpop.f32.mrb[0].mxu0
          %v1782 = vpop.f32.mrb[0].mxu0
          %v1783 = vadd.f32 0.0, %v1782
          %v1784 = vpop.f32.mrb[0].mxu0
          %1785 = vmatprep.mubr.bf16.mxu0 0
          %1786 = vmatmul.mubr.bf16.gmra.mrb[0].mxu0 %v1469
          %v1787 = vpop.f32.mrb[0].mxu0
          %v1788 = vadd.f32 0.0, %v1787
          %v1789 = vpop.f32.mrb[0].mxu0
          %v1790 = vpop.f32.mrb[0].mxu0
          %v1791 = vadd.f32 0.0, %v1790
          %v1792 = vpop.f32.mrb[0].mxu0
          %1793 = vmatprep.mubr.bf16.mxu0 0
          %1794 = vmatmul.mubr.bf16.gmra.mrb[0].mxu0 %v1470
          %v1795 = vpop.f32.mrb[0].mxu0
          %v1796 = vadd.f32 0.0, %v1795
          %v1797 = vpop.f32.mrb[0].mxu0
          %v1798 = vpop.f32.mrb[0].mxu0
          %v1799 = vadd.f32 0.0, %v1798
          %v1800 = vpop.f32.mrb[0].mxu0
          %1801 = vmatprep.mubr.bf16.mxu0 0
          %1802 = vmatmul.mubr.bf16.gmra.mrb[0].mxu0 %v1471
          %v1803 = vpop.f32.mrb[0].mxu0
          %v1804 = vadd.f32 0.0, %v1803
          %v1805 = vpop.f32.mrb[0].mxu0
          %v1806 = vpop.f32.mrb[0].mxu0
          %v1807 = vadd.f32 0.0, %v1806
          %v1808 = vpop.f32.mrb[0].mxu0
          %1809 = vmatprep.mubr.bf16.mxu0 0
          %1810 = vmatmul.mubr.bf16.gmra.mrb[0].mxu0 %v1472
          %v1811 = vpop.f32.mrb[0].mxu0
          %v1812 = vadd.f32 0.0, %v1811
          %v1813 = vpop.f32.mrb[0].mxu0
          %v1814 = vpop.f32.mrb[0].mxu0
          %v1815 = vadd.f32 0.0, %v1814
          %v1816 = vpop.f32.mrb[0].mxu0
          %1817 = vmatprep.mubr.bf16.mxu0 0
          %1818 = vmatmul.mubr.bf16.gmra.mrb[0].mxu0 %v1473
          %v1819 = vpop.f32.mrb[0].mxu0
          %v1820 = vadd.f32 0.0, %v1819
          %v1821 = vpop.f32.mrb[0].mxu0
          %v1822 = vpop.f32.mrb[0].mxu0
          %v1823 = vadd.f32 0.0, %v1822
          %v1824 = vpop.f32.mrb[0].mxu0
          %1825 = vmatprep.mubr.bf16.mxu0 0
          %1826 = vmatmul.mubr.bf16.gmra.mrb[0].mxu0 %v1474
          %v1827 = vpop.f32.mrb[0].mxu0
          %v1828 = vadd.f32 0.0, %v1827
          %v1829 = vpop.f32.mrb[0].mxu0
          %v1830 = vpop.f32.mrb[0].mxu0
          %v1831 = vadd.f32 0.0, %v1830
          %v1832 = vpop.f32.mrb[0].mxu0
          %1833 = vmatprep.mubr.bf16.mxu0 0
          %1834 = vmatmul.mubr.bf16.gmra.mrb[0].mxu0 %v1475
          %v1835 = vpop.f32.mrb[0].mxu0
          %v1836 = vadd.f32 0.0, %v1835
          %v1837 = vpop.f32.mrb[0].mxu0
          %v1838 = vpop.f32.mrb[0].mxu0
          %v1839 = vadd.f32 0.0, %v1838
          %v1840 = vpop.f32.mrb[0].mxu0
          %1841 = vmatprep.mubr.bf16.mxu0 0
          %1842 = vmatmul.mubr.bf16.gmra.mrb[0].mxu0 %v1476
          %v1843 = vpop.f32.mrb[0].mxu0
          %v1844 = vadd.f32 0.0, %v1843
          %v1845 = vpop.f32.mrb[0].mxu0
          %v1846 = vpop.f32.mrb[0].mxu0
          %v1847 = vadd.f32 0.0, %v1846
          %v1848 = vpop.f32.mrb[0].mxu0
          %1849 = vmatprep.mubr.bf16.mxu0 0
          %1850 = vmatmul.mubr.bf16.gmra.mrb[0].mxu0 %v1477
          %v1851 = vpop.f32.mrb[0].mxu0
          %v1852 = vadd.f32 0.0, %v1851
          %v1853 = vpop.f32.mrb[0].mxu0
          %v1854 = vpop.f32.mrb[0].mxu0
          %v1855 = vadd.f32 0.0, %v1854
          %v1856 = vpop.f32.mrb[0].mxu0
          %1857 = vmatprep.mubr.bf16.mxu0 0
          %1858 = vmatmul.mubr.bf16.gmra.mrb[0].mxu0 %v1478
          %v1859 = vpop.f32.mrb[0].mxu0
          %v1860 = vadd.f32 0.0, %v1859
          %v1861 = vpop.f32.mrb[0].mxu0
          %v1862 = vpop.f32.mrb[0].mxu0
          %v1863 = vadd.f32 0.0, %v1862
          %v1864 = vpop.f32.mrb[0].mxu0
          %1865 = vmatprep.mubr.bf16.mxu0 0
          %1866 = vmatmul.mubr.bf16.gmra.mrb[0].mxu0 %v1479
          %v1867 = vpop.f32.mrb[0].mxu0
          %v1868 = vadd.f32 0.0, %v1867
          %v1869 = vpop.f32.mrb[0].mxu0
          %v1870 = vpop.f32.mrb[0].mxu0
          %v1871 = vadd.f32 0.0, %v1870
          %v1872 = vpop.f32.mrb[0].mxu0
          %1873 = vmatprep.mubr.bf16.mxu0 0
          %1874 = vmatmul.mubr.bf16.gmra.mrb[0].mxu0 %v1480
          %v1875 = vpop.f32.mrb[0].mxu0
          %v1876 = vadd.f32 0.0, %v1875
          %v1877 = vpop.f32.mrb[0].mxu0
          %v1878 = vpop.f32.mrb[0].mxu0
          %v1879 = vadd.f32 0.0, %v1878
          %v1880 = vpop.f32.mrb[0].mxu0
          %1881 = vdwg.mxu0
          %v1882 = vadd.f32 %v1625, %v1756
          %v1883 = vadd.f32 %v1626, %v1759
          %v1884 = vadd.f32 %v1627, %v1764
          %v1885 = vadd.f32 %v1628, %v1767
          %v1886 = vadd.f32 %v1629, %v1772
          %v1887 = vadd.f32 %v1630, %v1775
          %v1888 = vadd.f32 %v1631, %v1780
          %v1889 = vadd.f32 %v1632, %v1783
          %v1890 = vadd.f32 %v1633, %v1788
          %v1891 = vadd.f32 %v1634, %v1791
          %v1892 = vadd.f32 %v1635, %v1796
          %v1893 = vadd.f32 %v1636, %v1799
          %v1894 = vadd.f32 %v1637, %v1804
          %v1895 = vadd.f32 %v1638, %v1807
          %v1896 = vadd.f32 %v1639, %v1812
          %v1897 = vadd.f32 %v1640, %v1815
          %v1898 = vadd.f32 %v1641, %v1820
          %v1899 = vadd.f32 %v1642, %v1823
          %v1900 = vadd.f32 %v1643, %v1828
          %v1901 = vadd.f32 %v1644, %v1831
          %v1902 = vadd.f32 %v1645, %v1836
          %v1903 = vadd.f32 %v1646, %v1839
          %v1904 = vadd.f32 %v1647, %v1844
          %v1905 = vadd.f32 %v1648, %v1847
          %v1906 = vadd.f32 %v1649, %v1852
          %v1907 = vadd.f32 %v1650, %v1855
          %v1908 = vadd.f32 %v1651, %v1860
          %v1909 = vadd.f32 %v1652, %v1863
          %v1910 = vadd.f32 %v1653, %v1868
          %v1911 = vadd.f32 %v1654, %v1871
          %v1912 = vadd.f32 %v1655, %v1876
          %v1913 = vadd.f32 %v1656, %v1879
          %1914 = vst [vmem:[%s492] sm:$0xff] %v1882
          %1915 = vst [vmem:[%s492 + $0x8] sm:$0xff] %v1883
          %1916 = vst [vmem:[%s492 + $0x10] sm:$0xff] %v1884
          %1917 = vst [vmem:[%s492 + $0x18] sm:$0xff] %v1885
          %1918 = vst [vmem:[%s492 + $0x20] sm:$0xff] %v1886
          %1919 = vst [vmem:[%s492 + $0x28] sm:$0xff] %v1887
          %1920 = vst [vmem:[%s492 + $0x30] sm:$0xff] %v1888
          %1921 = vst [vmem:[%s492 + $0x38] sm:$0xff] %v1889
          %1922 = vst [vmem:[%s492 + $0x40] sm:$0xff] %v1890
          %1923 = vst [vmem:[%s492 + $0x48] sm:$0xff] %v1891
          %1924 = vst [vmem:[%s492 + $0x50] sm:$0xff] %v1892
          %1925 = vst [vmem:[%s492 + $0x58] sm:$0xff] %v1893
          %1926 = vst [vmem:[%s492 + $0x60] sm:$0xff] %v1894
          %1927 = vst [vmem:[%s492 + $0x68] sm:$0xff] %v1895
          %1928 = vst [vmem:[%s492 + $0x70] sm:$0xff] %v1896
          %1929 = vst [vmem:[%s492 + $0x78] sm:$0xff] %v1897
          %1930 = vst [vmem:[%s492 + $0x80] sm:$0xff] %v1898
          %1931 = vst [vmem:[%s492 + $0x88] sm:$0xff] %v1899
          %1932 = vst [vmem:[%s492 + $0x90] sm:$0xff] %v1900
          %1933 = vst [vmem:[%s492 + $0x98] sm:$0xff] %v1901
          %1934 = vst [vmem:[%s492 + $0xa0] sm:$0xff] %v1902
          %1935 = vst [vmem:[%s492 + $0xa8] sm:$0xff] %v1903
          %1936 = vst [vmem:[%s492 + $0xb0] sm:$0xff] %v1904
          %1937 = vst [vmem:[%s492 + $0xb8] sm:$0xff] %v1905
          %1938 = vst [vmem:[%s492 + $0xc0] sm:$0xff] %v1906
          %1939 = vst [vmem:[%s492 + $0xc8] sm:$0xff] %v1907
          %1940 = vst [vmem:[%s492 + $0xd0] sm:$0xff] %v1908
          %1941 = vst [vmem:[%s492 + $0xd8] sm:$0xff] %v1909
          %1942 = vst [vmem:[%s492 + $0xe0] sm:$0xff] %v1910
          %1943 = vst [vmem:[%s492 + $0xe8] sm:$0xff] %v1911
          %1944 = vst [vmem:[%s492 + $0xf0] sm:$0xff] %v1912
          %1945 = vst [vmem:[%s492 + $0xf8] sm:$0xff] %v1913
        $region94: #{jknet_forward.3} parent=77 // pred_fallthru
          _
        %s1946 = smul.u32 32, %s23
        %p1947 = scmp.lt.s32.totalorder %s1946, 95
        %s1948 = scalar_select %p1947, %s1946, 95
        %s1949 = smul.addr %s1948, 4
        %s1950 = scalar_lea.vmem %s6, %s1949
        %s1951 = smul.u32 32, %s23
        %p1952 = scmp.lt.s32.totalorder %s1951, 95
        %s1953 = scalar_select %p1952, %s1951, 95
        %s1954 = smul.addr %s1953, 8
        %s1955 = scalar_lea.vmem %s7, %s1954
        // Predicated region
        $region95: #{jknet_forward.3} parent=77 // pred_check
          %p1956 = pneg %p187
        $region96: #{jknet_forward.3} parent=77 // pred_check_branch
          %1958 = sbr.rel (%p1956) target = $region98
        $region97: #{jknet_forward.3} parent=77 // pred_region
          %s1959 = smul.u32 32, %s23
        $region98: #{jknet_forward.3} parent=77 // pred_fallthru
          _
        // Predicated region
        $region99: #{jknet_forward.3} parent=77 // pred_check
          %p1960 = pneg %p213
        $region100: #{jknet_forward.3} parent=77 // pred_check_branch
          %1962 = sbr.rel (%p1960) target = $region102
        $region101: #{jknet_forward.3} parent=77 // pred_region
          %s1963 = smul.u32 32, %s23
        $region102: #{jknet_forward.3} parent=77 // pred_fallthru
          _
      $region78: #{jknet_forward.3} parent=5 // pred_fallthru
        _
      %p1964 = scmp.le.s32.totalorder 2, %s14
      // Predicated region
      $region103: #{jknet_forward.3} parent=5 // pred_check
        %p1965 = pneg %p1964
      $region104: #{jknet_forward.3} parent=5 // pred_check_branch
        %1967 = sbr.rel (%p1965) target = $region106
      $region105: #{jknet_forward.3} parent=5 // pred_region
        %s1968 = ssub.s32 %s14, 2
        // Predicated region
        $region107: #{jknet_forward.3} parent=105 // pred_check
          %p1969 = pneg %p193
        $region108: #{jknet_forward.3} parent=105 // pred_check_branch
          %1971 = sbr.rel (%p1969) target = $region110
        $region109: #{jknet_forward.3} parent=105 // pred_region
          %s1972 = smul.u32 32, %s25
          %p1973 = scmp.lt.s32.totalorder %s1972, 95
          %s1974 = scalar_select %p1973, %s1972, 95
          %s1975 = smul.addr %s1974, 4
          %s1976 = scalar_lea.vmem %s6, %s1975
        $region110: #{jknet_forward.3} parent=105 // pred_fallthru
          _
        // Predicated region
        $region111: #{jknet_forward.3} parent=105 // pred_check
          %p1977 = pneg %p219
        $region112: #{jknet_forward.3} parent=105 // pred_check_branch
          %1979 = sbr.rel (%p1977) target = $region114
        $region113: #{jknet_forward.3} parent=105 // pred_region
          %s1980 = smul.u32 32, %s25
          %p1981 = scmp.lt.s32.totalorder %s1980, 95
          %s1982 = scalar_select %p1981, %s1980, 95
          %s1983 = smul.addr %s1982, 8
          %s1984 = scalar_lea.vmem %s7, %s1983
        $region114: #{jknet_forward.3} parent=105 // pred_fallthru
          _
      $region106: #{jknet_forward.3} parent=5 // pred_fallthru
        _
    $region6: #{jknet_forward.3} parent=1 // loop_footer
      %s18 = sadd.s32 1, %s14
    $region7: #{jknet_forward.3} parent=1 // loop_footer_branch
      %13 = sbr.rel target = $region3
    $region8: #{jknet_forward.3} parent=1 // loop_exit
      _

</llo_original>
